<compile_context>
chip_gen: v5e
topology: v5e:2x2
jax: 0.10.0
libtpu: 0.0.40
codegen_flags: <defaults>
</compile_context>

<pallas_src>
import functools

import jax
import jax.numpy as jnp
import numpy as np
from jax import lax
from jax.experimental import pallas as pl
from jax.experimental.pallas import tpu as pltpu


# ----------------------------- Pallas kernels -------------------------------

def _relu_conv_kernel(x_ref, w_ref, b_ref, o_ref, *, k, s, Ho, Wo):
    """o = Conv3x3(ReLU(x)) + b for one sample (im2col fused, taps accumulated)."""
    Cout = w_ref.shape[-1]
    acc = jnp.zeros((Ho * Wo, Cout), jnp.float32)
    for ki in range(k):
        for kj in range(k):
            p = (ki % s) * s + (kj % s)          # parity plane of this tap
            oi, oj = ki // s, kj // s            # offset inside the plane
            win = x_ref[p, oi:oi + Ho, oj:oj + Wo, :]          # (Ho, Wo, Cin)
            patch = jnp.maximum(win, 0.0).reshape(Ho * Wo, -1)
            acc = acc + jnp.dot(patch, w_ref[ki * k + kj],
                                preferred_element_type=jnp.float32)
    o_ref[0] = acc + b_ref[...]


def _relu_conv_res_kernel(x_ref, w_ref, b_ref, r_ref, o_ref, *, k, s, Ho, Wo):
    """o = Conv3x3(ReLU(x)) + b + residual (residual add fused into the conv)."""
    Cout = w_ref.shape[-1]
    acc = jnp.zeros((Ho * Wo, Cout), jnp.float32)
    for ki in range(k):
        for kj in range(k):
            p = (ki % s) * s + (kj % s)
            oi, oj = ki // s, kj // s
            win = x_ref[p, oi:oi + Ho, oj:oj + Wo, :]
            patch = jnp.maximum(win, 0.0).reshape(Ho * Wo, -1)
            acc = acc + jnp.dot(patch, w_ref[ki * k + kj],
                                preferred_element_type=jnp.float32)
    o_ref[0] = acc + b_ref[...] + r_ref[0]


def _dual_conv_kernel(x_ref, wa_ref, ba_ref, wb_ref, bb_ref, oa_ref, ob_ref,
                      *, k, s, Ho, Wo):
    """Two convs sharing a single read of x:
         oa = Conv_wa(ReLU(x)) + ba   (main branch, ReLU fused)
         ob = Conv_wb(x)       + bb   (bypass branch, no ReLU)
    """
    Cout = wa_ref.shape[-1]
    acc_a = jnp.zeros((Ho * Wo, Cout), jnp.float32)
    acc_b = jnp.zeros((Ho * Wo, Cout), jnp.float32)
    for ki in range(k):
        for kj in range(k):
            p = (ki % s) * s + (kj % s)
            oi, oj = ki // s, kj // s
            win = x_ref[p, oi:oi + Ho, oj:oj + Wo, :]          # read once per tap
            patch = win.reshape(Ho * Wo, -1)
            tap = ki * k + kj
            acc_a = acc_a + jnp.dot(jnp.maximum(patch, 0.0), wa_ref[tap],
                                    preferred_element_type=jnp.float32)
            acc_b = acc_b + jnp.dot(patch, wb_ref[tap],
                                    preferred_element_type=jnp.float32)
    oa_ref[0] = acc_a + ba_ref[...]
    ob_ref[0] = acc_b + bb_ref[...]


# ------------------------------- wrappers ------------------------------------

def _make_planes(x_nhwc, k, s, padding):
    """Zero-pad spatially and split into the s*s sub-pixel (parity) planes so the
    kernel only ever does contiguous static slices (no strided reads, no dilation)."""
    N, H, W, C = x_nhwc.shape
    Ho = (H + 2 * padding - k) // s + 1
    Wo = (W + 2 * padding - k) // s + 1
    off = (k - 1) // s
    Hq, Wq = Ho + off, Wo + off
    Hp, Wp = s * Hq, s * Wq
    assert Hp >= H + padding and Wp >= W + padding
    xp = jnp.pad(x_nhwc, ((0, 0),
                          (padding, Hp - H - padding),
                          (padding, Wp - W - padding),
                          (0, 0)))
    planes = xp.reshape(N, Hq, s, Wq, s, C)
    planes = jnp.transpose(planes, (0, 2, 4, 1, 3, 5))        # (N, s, s, Hq, Wq, C)
    planes = planes.reshape(N * s * s, Hq, Wq, C)
    return planes, Ho, Wo, Hq, Wq


def _tap_weights(w):
    """torch Conv2d weight (Cout, Cin, k, k) -> (k*k, Cin, Cout) per-tap matrices."""
    Cout, Cin, k, _ = w.shape
    return jnp.transpose(w, (2, 3, 1, 0)).reshape(k * k, Cin, Cout)


def relu_conv2d(x_nhwc, w, b, *, stride, padding, residual=None):
    """y = Conv2d(ReLU(x); 3x3, stride, padding) + b [+ residual] as one Pallas call.
    Returns a (N, Ho*Wo, Cout) slab and (Ho, Wo)."""
    N, H, W, Cin = x_nhwc.shape
    Cout, _, k, _ = w.shape
    s = stride
    planes, Ho, Wo, Hq, Wq = _make_planes(x_nhwc, k, s, padding)

    in_specs = [pl.BlockSpec((s * s, Hq, Wq, Cin), lambda n: (n, 0, 0, 0)),
                pl.BlockSpec((k * k, Cin, Cout), lambda n: (0, 0, 0)),
                pl.BlockSpec((1, Cout), lambda n: (0, 0))]
    args = [planes, _tap_weights(w), b.reshape(1, Cout)]
    if residual is None:
        kern = functools.partial(_relu_conv_kernel, k=k, s=s, Ho=Ho, Wo=Wo)
    else:
        kern = functools.partial(_relu_conv_res_kernel, k=k, s=s, Ho=Ho, Wo=Wo)
        in_specs.append(pl.BlockSpec((1, Ho * Wo, Cout), lambda n: (n, 0, 0)))
        args.append(residual)

    out = pl.pallas_call(
        kern,
        out_shape=jax.ShapeDtypeStruct((N, Ho * Wo, Cout), jnp.float32),
        grid=(N,),
        in_specs=in_specs,
        out_specs=pl.BlockSpec((1, Ho * Wo, Cout), lambda n: (n, 0, 0)),
        compiler_params=pltpu.CompilerParams(dimension_semantics=("parallel",)),
    )(*args)
    return out, (Ho, Wo)


def dual_conv2d(x_nhwc, wa, ba, wb, bb, *, stride, padding):
    """From one read of x: (Conv(ReLU(x); wa)+ba, Conv(x; wb)+bb), same geometry."""
    N, H, W, Cin = x_nhwc.shape
    Cout, _, k, _ = wa.shape
    s = stride
    planes, Ho, Wo, Hq, Wq = _make_planes(x_nhwc, k, s, padding)
    kern = functools.partial(_dual_conv_kernel, k=k, s=s, Ho=Ho, Wo=Wo)
    out_sd = jax.ShapeDtypeStruct((N, Ho * Wo, Cout), jnp.float32)
    oa, ob = pl.pallas_call(
        kern,
        out_shape=(out_sd, out_sd),
        grid=(N,),
        in_specs=[pl.BlockSpec((s * s, Hq, Wq, Cin), lambda n: (n, 0, 0, 0)),
                  pl.BlockSpec((k * k, Cin, Cout), lambda n: (0, 0, 0)),
                  pl.BlockSpec((1, Cout), lambda n: (0, 0)),
                  pl.BlockSpec((k * k, Cin, Cout), lambda n: (0, 0, 0)),
                  pl.BlockSpec((1, Cout), lambda n: (0, 0))],
        out_specs=(pl.BlockSpec((1, Ho * Wo, Cout), lambda n: (n, 0, 0)),
                   pl.BlockSpec((1, Ho * Wo, Cout), lambda n: (n, 0, 0))),
        compiler_params=pltpu.CompilerParams(dimension_semantics=("parallel",)),
    )(planes, _tap_weights(wa), ba.reshape(1, Cout),
      _tap_weights(wb), bb.reshape(1, Cout))
    return oa, ob, (Ho, Wo)


# --------------------------- spectral norm (glue) ----------------------------

def _l2normalize(v, eps=1e-12):
    return v / (jnp.linalg.norm(v) + eps)


# TODO(synk): SpectralNorm's power iteration is a tiny (Cout x Cin*k*k) matvec on the
# weights; it stays in plain JAX -- far too small to benefit from a Pallas kernel.
def spectral_norm_weight(w, u, power_iterations=1):
    cout = w.shape[0]
    wmat = w.reshape(cout, -1)
    v = None
    for _ in range(power_iterations):
        v = _l2normalize(wmat.T @ u)
        u = _l2normalize(wmat @ v)
    sigma = jnp.dot(u, wmat @ v)
    return w / sigma


# ------------------------------ forward pass ---------------------------------

def res_block_discriminator_forward(x_nchw, params, *, stride):
    """Forward of ResBlockDiscriminator; input/output NCHW (PyTorch convention)."""
    N, Cin, H, W = x_nchw.shape
    x = jnp.transpose(x_nchw, (0, 2, 3, 1))                   # NHWC
    w1 = spectral_norm_weight(params['w1'], params['u1'])
    w2 = spectral_norm_weight(params['w2'], params['u2'])
    Cout = w1.shape[0]

    if stride != 1:
        # main conv1 (with fused ReLU) and the bypass conv share one read of x
        w3 = spectral_norm_weight(params['w3'], params['u3'])
        h2d, byp2d, (Ho, Wo) = dual_conv2d(x, w1, params['b1'], w3, params['b3'],
                                           stride=stride, padding=1)
    else:
        # bypass = nn.Sequential() identity (requires Cin == Cout, as in PyTorch)
        h2d, (Ho, Wo) = relu_conv2d(x, w1, params['b1'], stride=1, padding=1)
        byp2d = x.reshape(N, H * W, Cin)

    h = h2d.reshape(N, Ho, Wo, Cout)
    # second conv (stride 1) with ReLU, bias and residual add all fused
    out2d, (Ho2, Wo2) = relu_conv2d(h, w2, params['b2'], stride=1, padding=1,
                                    residual=byp2d)
    out = out2d.reshape(N, Ho2, Wo2, Cout)
    return jnp.transpose(out, (0, 3, 1, 2))                   # back to NCHW


# ----------------------- pure-JAX reference (for checking) -------------------

def _conv_ref(x, w, b, stride, padding):
    y = lax.conv_general_dilated(
        x, w, window_strides=(stride, stride),
        padding=[(padding, padding), (padding, padding)],
        dimension_numbers=('NCHW', 'OIHW', 'NCHW'),
        precision=lax.Precision.HIGHEST)
    return y + b.reshape(1, -1, 1, 1)


def _forward_ref(x, p, stride):
    w1 = spectral_norm_weight(p['w1'], p['u1'])
    w2 = spectral_norm_weight(p['w2'], p['u2'])
    h = _conv_ref(jax.nn.relu(x), w1, p['b1'], stride, 1)
    h = _conv_ref(jax.nn.relu(h), w2, p['b2'], 1, 1)
    if stride != 1:
        w3 = spectral_norm_weight(p['w3'], p['u3'])
        byp = _conv_ref(x, w3, p['b3'], stride, 1)
    else:
        byp = x
    return h + byp


# --------------------------------- main ---------------------------------------

if __name__ == "__main__":
    key = jax.random.PRNGKey(0)
    N, Cin, Cout, H, W, k, stride = 2, 4, 4, 16, 16, 3, 2
    ks = jax.random.split(key, 10)
    x = jax.random.normal(ks[0], (N, Cin, H, W), jnp.float32)

    params = dict(
        w1=0.2 * jax.random.normal(ks[1], (Cout, Cin, k, k), jnp.float32),
        b1=0.1 * jax.random.normal(ks[2], (Cout,), jnp.float32),
        u1=jax.random.normal(ks[3], (Cout,), jnp.float32),
        w2=0.2 * jax.random.normal(ks[4], (Cout, Cout, k, k), jnp.float32),
        b2=0.1 * jax.random.normal(ks[5], (Cout,), jnp.float32),
        u2=jax.random.normal(ks[6], (Cout,), jnp.float32),
        w3=0.2 * jax.random.normal(ks[7], (Cout, Cin, k, k), jnp.float32),
        b3=0.1 * jax.random.normal(ks[8], (Cout,), jnp.float32),
        u3=jax.random.normal(ks[9], (Cout,), jnp.float32),
    )

    # strided block (conv bypass)
    fwd2 = jax.jit(functools.partial(res_block_discriminator_forward, stride=stride))
    out2 = jax.block_until_ready(fwd2(x, params))
    ref2 = _forward_ref(x, params, stride)
    assert out2.shape == ref2.shape == (N, Cout, H // stride, W // stride)
    # tolerance covers default (bf16-pass) MXU precision in-kernel vs HIGHEST reference
    np.testing.assert_allclose(np.asarray(out2), np.asarray(ref2), rtol=4e-2, atol=4e-2)

    # stride=1 block (identity bypass)
    fwd1 = jax.jit(functools.partial(res_block_discriminator_forward, stride=1))
    out1 = jax.block_until_ready(fwd1(x, params))
    ref1 = _forward_ref(x, params, 1)
    assert out1.shape == ref1.shape == (N, Cout, H, W)
    np.testing.assert_allclose(np.asarray(out1), np.asarray(ref1), rtol=4e-2, atol=4e-2)

    print("KERNEL_OK")
</pallas_src>

<mosaic_0001>
module attributes {stable_mosaic.version = 11 : i64} {
  func.func @_relu_conv_res_kernel(%arg0: i32, %arg1: memref<1x10x10x4xf32, #tpu.memory_space<vmem>>, %arg2: memref<9x4x4xf32, #tpu.memory_space<vmem>>, %arg3: memref<1x4xf32, #tpu.memory_space<vmem>>, %arg4: memref<1x64x4xf32, #tpu.memory_space<vmem>>, %arg5: memref<1x64x4xf32, #tpu.memory_space<vmem>>) attributes {dimension_semantics = [#tpu.dimension_semantics<parallel>], iteration_bounds = array<i64: 2>, scalar_prefetch = 0 : i64, scratch_operands = 0 : i64, tpu.core_type = #tpu.core_type<tc>, window_params = [{transform_indices = @transform_0, window_bounds = array<i64: 1, 10, 10, 4>}, {pipeline_mode = #tpu.pipeline_mode<synchronous>, transform_indices = @transform_1, window_bounds = array<i64: 9, 4, 4>}, {pipeline_mode = #tpu.pipeline_mode<synchronous>, transform_indices = @transform_2, window_bounds = array<i64: 1, 4>}, {transform_indices = @transform_3, window_bounds = array<i64: 1, 64, 4>}, {transform_indices = @transform_4, window_bounds = array<i64: 1, 64, 4>}]} {
    %cst = arith.constant 0.000000e+00 : f32
    %0 = vector.broadcast %cst : f32 to vector<64x4xf32>
    %c0 = arith.constant 0 : index
    %c0_0 = arith.constant 0 : index
    %c0_1 = arith.constant 0 : index
    %c0_2 = arith.constant 0 : index
    %1 = vector.load %arg1[%c0, %c0_0, %c0_1, %c0_2] : memref<1x10x10x4xf32, #tpu.memory_space<vmem>>, vector<1x8x8x4xf32>
    %2 = vector.shape_cast %1 : vector<1x8x8x4xf32> to vector<8x8x4xf32>
    %cst_3 = arith.constant 0.000000e+00 : f32
    %3 = vector.broadcast %cst_3 : f32 to vector<8x8x4xf32>
    %4 = arith.maximumf %2, %3 : vector<8x8x4xf32>
    %5 = vector.shape_cast %4 : vector<8x8x4xf32> to vector<64x4xf32>
    %c0_4 = arith.constant 0 : index
    %c0_5 = arith.constant 0 : index
    %c0_6 = arith.constant 0 : index
    %6 = vector.load %arg2[%c0_4, %c0_5, %c0_6] : memref<9x4x4xf32, #tpu.memory_space<vmem>>, vector<1x4x4xf32>
    %7 = vector.shape_cast %6 : vector<1x4x4xf32> to vector<4x4xf32>
    %cst_7 = arith.constant dense<0.000000e+00> : vector<64x4xf32>
    %8 = tpu.matmul %5, %7, %cst_7 {dimension_numbers = #tpu.dot_dimension_numbers<[1], [0], [0], [1], [0, 0, 1, 1], [], []>} : vector<64x4xf32>, vector<4x4xf32>, vector<64x4xf32> -> vector<64x4xf32>
    %9 = arith.addf %0, %8 : vector<64x4xf32>
    %c0_8 = arith.constant 0 : index
    %c0_9 = arith.constant 0 : index
    %c1 = arith.constant 1 : index
    %c0_10 = arith.constant 0 : index
    %10 = vector.load %arg1[%c0_8, %c0_9, %c1, %c0_10] : memref<1x10x10x4xf32, #tpu.memory_space<vmem>>, vector<1x8x8x4xf32>
    %11 = vector.shape_cast %10 : vector<1x8x8x4xf32> to vector<8x8x4xf32>
    %cst_11 = arith.constant 0.000000e+00 : f32
    %12 = vector.broadcast %cst_11 : f32 to vector<8x8x4xf32>
    %13 = arith.maximumf %11, %12 : vector<8x8x4xf32>
    %14 = vector.shape_cast %13 : vector<8x8x4xf32> to vector<64x4xf32>
    %c1_12 = arith.constant 1 : index
    %c0_13 = arith.constant 0 : index
    %c0_14 = arith.constant 0 : index
    %15 = vector.load %arg2[%c1_12, %c0_13, %c0_14] : memref<9x4x4xf32, #tpu.memory_space<vmem>>, vector<1x4x4xf32>
    %16 = vector.shape_cast %15 : vector<1x4x4xf32> to vector<4x4xf32>
    %cst_15 = arith.constant dense<0.000000e+00> : vector<64x4xf32>
    %17 = tpu.matmul %14, %16, %cst_15 {dimension_numbers = #tpu.dot_dimension_numbers<[1], [0], [0], [1], [0, 0, 1, 1], [], []>} : vector<64x4xf32>, vector<4x4xf32>, vector<64x4xf32> -> vector<64x4xf32>
    %18 = arith.addf %9, %17 : vector<64x4xf32>
    %c0_16 = arith.constant 0 : index
    %c0_17 = arith.constant 0 : index
    %c2 = arith.constant 2 : index
    %c0_18 = arith.constant 0 : index
    %19 = vector.load %arg1[%c0_16, %c0_17, %c2, %c0_18] : memref<1x10x10x4xf32, #tpu.memory_space<vmem>>, vector<1x8x8x4xf32>
    %20 = vector.shape_cast %19 : vector<1x8x8x4xf32> to vector<8x8x4xf32>
    %cst_19 = arith.constant 0.000000e+00 : f32
    %21 = vector.broadcast %cst_19 : f32 to vector<8x8x4xf32>
    %22 = arith.maximumf %20, %21 : vector<8x8x4xf32>
    %23 = vector.shape_cast %22 : vector<8x8x4xf32> to vector<64x4xf32>
    %c2_20 = arith.constant 2 : index
    %c0_21 = arith.constant 0 : index
    %c0_22 = arith.constant 0 : index
    %24 = vector.load %arg2[%c2_20, %c0_21, %c0_22] : memref<9x4x4xf32, #tpu.memory_space<vmem>>, vector<1x4x4xf32>
    %25 = vector.shape_cast %24 : vector<1x4x4xf32> to vector<4x4xf32>
    %cst_23 = arith.constant dense<0.000000e+00> : vector<64x4xf32>
    %26 = tpu.matmul %23, %25, %cst_23 {dimension_numbers = #tpu.dot_dimension_numbers<[1], [0], [0], [1], [0, 0, 1, 1], [], []>} : vector<64x4xf32>, vector<4x4xf32>, vector<64x4xf32> -> vector<64x4xf32>
    %27 = arith.addf %18, %26 : vector<64x4xf32>
    %c0_24 = arith.constant 0 : index
    %c1_25 = arith.constant 1 : index
    %c0_26 = arith.constant 0 : index
    %c0_27 = arith.constant 0 : index
    %28 = vector.load %arg1[%c0_24, %c1_25, %c0_26, %c0_27] : memref<1x10x10x4xf32, #tpu.memory_space<vmem>>, vector<1x8x8x4xf32>
    %29 = vector.shape_cast %28 : vector<1x8x8x4xf32> to vector<8x8x4xf32>
    %cst_28 = arith.constant 0.000000e+00 : f32
    %30 = vector.broadcast %cst_28 : f32 to vector<8x8x4xf32>
    %31 = arith.maximumf %29, %30 : vector<8x8x4xf32>
    %32 = vector.shape_cast %31 : vector<8x8x4xf32> to vector<64x4xf32>
    %c3 = arith.constant 3 : index
    %c0_29 = arith.constant 0 : index
    %c0_30 = arith.constant 0 : index
    %33 = vector.load %arg2[%c3, %c0_29, %c0_30] : memref<9x4x4xf32, #tpu.memory_space<vmem>>, vector<1x4x4xf32>
    %34 = vector.shape_cast %33 : vector<1x4x4xf32> to vector<4x4xf32>
    %cst_31 = arith.constant dense<0.000000e+00> : vector<64x4xf32>
    %35 = tpu.matmul %32, %34, %cst_31 {dimension_numbers = #tpu.dot_dimension_numbers<[1], [0], [0], [1], [0, 0, 1, 1], [], []>} : vector<64x4xf32>, vector<4x4xf32>, vector<64x4xf32> -> vector<64x4xf32>
    %36 = arith.addf %27, %35 : vector<64x4xf32>
    %c0_32 = arith.constant 0 : index
    %c1_33 = arith.constant 1 : index
    %c1_34 = arith.constant 1 : index
    %c0_35 = arith.constant 0 : index
    %37 = vector.load %arg1[%c0_32, %c1_33, %c1_34, %c0_35] : memref<1x10x10x4xf32, #tpu.memory_space<vmem>>, vector<1x8x8x4xf32>
    %38 = vector.shape_cast %37 : vector<1x8x8x4xf32> to vector<8x8x4xf32>
    %cst_36 = arith.constant 0.000000e+00 : f32
    %39 = vector.broadcast %cst_36 : f32 to vector<8x8x4xf32>
    %40 = arith.maximumf %38, %39 : vector<8x8x4xf32>
    %41 = vector.shape_cast %40 : vector<8x8x4xf32> to vector<64x4xf32>
    %c4 = arith.constant 4 : index
    %c0_37 = arith.constant 0 : index
    %c0_38 = arith.constant 0 : index
    %42 = vector.load %arg2[%c4, %c0_37, %c0_38] : memref<9x4x4xf32, #tpu.memory_space<vmem>>, vector<1x4x4xf32>
    %43 = vector.shape_cast %42 : vector<1x4x4xf32> to vector<4x4xf32>
    %cst_39 = arith.constant dense<0.000000e+00> : vector<64x4xf32>
    %44 = tpu.matmul %41, %43, %cst_39 {dimension_numbers = #tpu.dot_dimension_numbers<[1], [0], [0], [1], [0, 0, 1, 1], [], []>} : vector<64x4xf32>, vector<4x4xf32>, vector<64x4xf32> -> vector<64x4xf32>
    %45 = arith.addf %36, %44 : vector<64x4xf32>
    %c0_40 = arith.constant 0 : index
    %c1_41 = arith.constant 1 : index
    %c2_42 = arith.constant 2 : index
    %c0_43 = arith.constant 0 : index
    %46 = vector.load %arg1[%c0_40, %c1_41, %c2_42, %c0_43] : memref<1x10x10x4xf32, #tpu.memory_space<vmem>>, vector<1x8x8x4xf32>
    %47 = vector.shape_cast %46 : vector<1x8x8x4xf32> to vector<8x8x4xf32>
    %cst_44 = arith.constant 0.000000e+00 : f32
    %48 = vector.broadcast %cst_44 : f32 to vector<8x8x4xf32>
    %49 = arith.maximumf %47, %48 : vector<8x8x4xf32>
    %50 = vector.shape_cast %49 : vector<8x8x4xf32> to vector<64x4xf32>
    %c5 = arith.constant 5 : index
    %c0_45 = arith.constant 0 : index
    %c0_46 = arith.constant 0 : index
    %51 = vector.load %arg2[%c5, %c0_45, %c0_46] : memref<9x4x4xf32, #tpu.memory_space<vmem>>, vector<1x4x4xf32>
    %52 = vector.shape_cast %51 : vector<1x4x4xf32> to vector<4x4xf32>
    %cst_47 = arith.constant dense<0.000000e+00> : vector<64x4xf32>
    %53 = tpu.matmul %50, %52, %cst_47 {dimension_numbers = #tpu.dot_dimension_numbers<[1], [0], [0], [1], [0, 0, 1, 1], [], []>} : vector<64x4xf32>, vector<4x4xf32>, vector<64x4xf32> -> vector<64x4xf32>
    %54 = arith.addf %45, %53 : vector<64x4xf32>
    %c0_48 = arith.constant 0 : index
    %c2_49 = arith.constant 2 : index
    %c0_50 = arith.constant 0 : index
    %c0_51 = arith.constant 0 : index
    %55 = vector.load %arg1[%c0_48, %c2_49, %c0_50, %c0_51] : memref<1x10x10x4xf32, #tpu.memory_space<vmem>>, vector<1x8x8x4xf32>
    %56 = vector.shape_cast %55 : vector<1x8x8x4xf32> to vector<8x8x4xf32>
    %cst_52 = arith.constant 0.000000e+00 : f32
    %57 = vector.broadcast %cst_52 : f32 to vector<8x8x4xf32>
    %58 = arith.maximumf %56, %57 : vector<8x8x4xf32>
    %59 = vector.shape_cast %58 : vector<8x8x4xf32> to vector<64x4xf32>
    %c6 = arith.constant 6 : index
    %c0_53 = arith.constant 0 : index
    %c0_54 = arith.constant 0 : index
    %60 = vector.load %arg2[%c6, %c0_53, %c0_54] : memref<9x4x4xf32, #tpu.memory_space<vmem>>, vector<1x4x4xf32>
    %61 = vector.shape_cast %60 : vector<1x4x4xf32> to vector<4x4xf32>
    %cst_55 = arith.constant dense<0.000000e+00> : vector<64x4xf32>
    %62 = tpu.matmul %59, %61, %cst_55 {dimension_numbers = #tpu.dot_dimension_numbers<[1], [0], [0], [1], [0, 0, 1, 1], [], []>} : vector<64x4xf32>, vector<4x4xf32>, vector<64x4xf32> -> vector<64x4xf32>
    %63 = arith.addf %54, %62 : vector<64x4xf32>
    %c0_56 = arith.constant 0 : index
    %c2_57 = arith.constant 2 : index
    %c1_58 = arith.constant 1 : index
    %c0_59 = arith.constant 0 : index
    %64 = vector.load %arg1[%c0_56, %c2_57, %c1_58, %c0_59] : memref<1x10x10x4xf32, #tpu.memory_space<vmem>>, vector<1x8x8x4xf32>
    %65 = vector.shape_cast %64 : vector<1x8x8x4xf32> to vector<8x8x4xf32>
    %cst_60 = arith.constant 0.000000e+00 : f32
    %66 = vector.broadcast %cst_60 : f32 to vector<8x8x4xf32>
    %67 = arith.maximumf %65, %66 : vector<8x8x4xf32>
    %68 = vector.shape_cast %67 : vector<8x8x4xf32> to vector<64x4xf32>
    %c7 = arith.constant 7 : index
    %c0_61 = arith.constant 0 : index
    %c0_62 = arith.constant 0 : index
    %69 = vector.load %arg2[%c7, %c0_61, %c0_62] : memref<9x4x4xf32, #tpu.memory_space<vmem>>, vector<1x4x4xf32>
    %70 = vector.shape_cast %69 : vector<1x4x4xf32> to vector<4x4xf32>
    %cst_63 = arith.constant dense<0.000000e+00> : vector<64x4xf32>
    %71 = tpu.matmul %68, %70, %cst_63 {dimension_numbers = #tpu.dot_dimension_numbers<[1], [0], [0], [1], [0, 0, 1, 1], [], []>} : vector<64x4xf32>, vector<4x4xf32>, vector<64x4xf32> -> vector<64x4xf32>
    %72 = arith.addf %63, %71 : vector<64x4xf32>
    %c0_64 = arith.constant 0 : index
    %c2_65 = arith.constant 2 : index
    %c2_66 = arith.constant 2 : index
    %c0_67 = arith.constant 0 : index
    %73 = vector.load %arg1[%c0_64, %c2_65, %c2_66, %c0_67] : memref<1x10x10x4xf32, #tpu.memory_space<vmem>>, vector<1x8x8x4xf32>
    %74 = vector.shape_cast %73 : vector<1x8x8x4xf32> to vector<8x8x4xf32>
    %cst_68 = arith.constant 0.000000e+00 : f32
    %75 = vector.broadcast %cst_68 : f32 to vector<8x8x4xf32>
    %76 = arith.maximumf %74, %75 : vector<8x8x4xf32>
    %77 = vector.shape_cast %76 : vector<8x8x4xf32> to vector<64x4xf32>
    %c8 = arith.constant 8 : index
    %c0_69 = arith.constant 0 : index
    %c0_70 = arith.constant 0 : index
    %78 = vector.load %arg2[%c8, %c0_69, %c0_70] : memref<9x4x4xf32, #tpu.memory_space<vmem>>, vector<1x4x4xf32>
    %79 = vector.shape_cast %78 : vector<1x4x4xf32> to vector<4x4xf32>
    %cst_71 = arith.constant dense<0.000000e+00> : vector<64x4xf32>
    %80 = tpu.matmul %77, %79, %cst_71 {dimension_numbers = #tpu.dot_dimension_numbers<[1], [0], [0], [1], [0, 0, 1, 1], [], []>} : vector<64x4xf32>, vector<4x4xf32>, vector<64x4xf32> -> vector<64x4xf32>
    %81 = arith.addf %72, %80 : vector<64x4xf32>
    %c0_72 = arith.constant 0 : index
    %c0_73 = arith.constant 0 : index
    %82 = vector.load %arg3[%c0_72, %c0_73] : memref<1x4xf32, #tpu.memory_space<vmem>>, vector<1x4xf32>
    %83 = vector.broadcast %82 : vector<1x4xf32> to vector<64x4xf32>
    %84 = arith.addf %81, %83 : vector<64x4xf32>
    %c0_74 = arith.constant 0 : index
    %c0_75 = arith.constant 0 : index
    %c0_76 = arith.constant 0 : index
    %85 = vector.load %arg4[%c0_74, %c0_75, %c0_76] : memref<1x64x4xf32, #tpu.memory_space<vmem>>, vector<1x64x4xf32>
    %86 = vector.shape_cast %85 : vector<1x64x4xf32> to vector<64x4xf32>
    %87 = arith.addf %84, %86 : vector<64x4xf32>
    %c0_77 = arith.constant 0 : index
    %c0_78 = arith.constant 0 : index
    %c0_79 = arith.constant 0 : index
    %88 = vector.load %arg5[%c0_77, %c0_78, %c0_79] : memref<1x64x4xf32, #tpu.memory_space<vmem>>, vector<1x64x4xf32>
    %89 = vector.shape_cast %88 : vector<1x64x4xf32> to vector<64x4xf32>
    %90 = vector.shape_cast %87 : vector<64x4xf32> to vector<1x64x4xf32>
    tpu.vector_store %arg5[%c0_77, %c0_78, %c0_79], %90 {strides = array<i32>} : memref<1x64x4xf32, #tpu.memory_space<vmem>>, vector<1x64x4xf32>,
    return
  }
  func.func @transform_0(%arg0: i32) -> (i32, i32, i32, i32) {
    %c0_i32 = arith.constant 0 : i32
    %c0_i32_0 = arith.constant 0 : i32
    %c0_i32_1 = arith.constant 0 : i32
    %c0_i32_2 = arith.constant 0 : i32
    return %arg0, %c0_i32, %c0_i32_0, %c0_i32_1 : i32, i32, i32, i32
  }
  func.func @transform_1(%arg0: i32) -> (i32, i32, i32) {
    %c0_i32 = arith.constant 0 : i32
    %c0_i32_0 = arith.constant 0 : i32
    %c0_i32_1 = arith.constant 0 : i32
    %c0_i32_2 = arith.constant 0 : i32
    return %c0_i32, %c0_i32_0, %c0_i32_1 : i32, i32, i32
  }
  func.func @transform_2(%arg0: i32) -> (i32, i32) {
    %c0_i32 = arith.constant 0 : i32
    %c0_i32_0 = arith.constant 0 : i32
    %c0_i32_1 = arith.constant 0 : i32
    return %c0_i32, %c0_i32_0 : i32, i32
  }
  func.func @transform_3(%arg0: i32) -> (i32, i32, i32) {
    %c0_i32 = arith.constant 0 : i32
    %c0_i32_0 = arith.constant 0 : i32
    %c0_i32_1 = arith.constant 0 : i32
    return %arg0, %c0_i32, %c0_i32_0 : i32, i32, i32
  }
  func.func @transform_4(%arg0: i32) -> (i32, i32, i32) {
    %c0_i32 = arith.constant 0 : i32
    %c0_i32_0 = arith.constant 0 : i32
    %c0_i32_1 = arith.constant 0 : i32
    return %arg0, %c0_i32, %c0_i32_0 : i32, i32, i32
  }
}

module attributes {stable_mosaic.version = 11 : i64} {
  func.func @_dual_conv_kernel(%arg0: i32, %arg1: memref<4x9x9x4xf32, #tpu.memory_space<vmem>>, %arg2: memref<9x4x4xf32, #tpu.memory_space<vmem>>, %arg3: memref<1x4xf32, #tpu.memory_space<vmem>>, %arg4: memref<9x4x4xf32, #tpu.memory_space<vmem>>, %arg5: memref<1x4xf32, #tpu.memory_space<vmem>>, %arg6: memref<1x64x4xf32, #tpu.memory_space<vmem>>, %arg7: memref<1x64x4xf32, #tpu.memory_space<vmem>>) attributes {dimension_semantics = [#tpu.dimension_semantics<parallel>], iteration_bounds = array<i64: 2>, scalar_prefetch = 0 : i64, scratch_operands = 0 : i64, tpu.core_type = #tpu.core_type<tc>, window_params = [{transform_indices = @transform_0, window_bounds = array<i64: 4, 9, 9, 4>}, {pipeline_mode = #tpu.pipeline_mode<synchronous>, transform_indices = @transform_1, window_bounds = array<i64: 9, 4, 4>}, {pipeline_mode = #tpu.pipeline_mode<synchronous>, transform_indices = @transform_2, window_bounds = array<i64: 1, 4>}, {pipeline_mode = #tpu.pipeline_mode<synchronous>, transform_indices = @transform_3, window_bounds = array<i64: 9, 4, 4>}, {pipeline_mode = #tpu.pipeline_mode<synchronous>, transform_indices = @transform_4, window_bounds = array<i64: 1, 4>}, {transform_indices = @transform_5, window_bounds = array<i64: 1, 64, 4>}, {transform_indices = @transform_6, window_bounds = array<i64: 1, 64, 4>}]} {
    %cst = arith.constant 0.000000e+00 : f32
    %0 = vector.broadcast %cst : f32 to vector<64x4xf32>
    %cst_0 = arith.constant 0.000000e+00 : f32
    %1 = vector.broadcast %cst_0 : f32 to vector<64x4xf32>
    %c0 = arith.constant 0 : index
    %c0_1 = arith.constant 0 : index
    %c0_2 = arith.constant 0 : index
    %c0_3 = arith.constant 0 : index
    %2 = vector.load %arg1[%c0, %c0_1, %c0_2, %c0_3] : memref<4x9x9x4xf32, #tpu.memory_space<vmem>>, vector<1x8x8x4xf32>
    %3 = vector.shape_cast %2 : vector<1x8x8x4xf32> to vector<8x8x4xf32>
    %4 = vector.shape_cast %3 : vector<8x8x4xf32> to vector<64x4xf32>
    %cst_4 = arith.constant 0.000000e+00 : f32
    %5 = vector.broadcast %cst_4 : f32 to vector<64x4xf32>
    %6 = arith.maximumf %4, %5 : vector<64x4xf32>
    %c0_5 = arith.constant 0 : index
    %c0_6 = arith.constant 0 : index
    %c0_7 = arith.constant 0 : index
    %7 = vector.load %arg2[%c0_5, %c0_6, %c0_7] : memref<9x4x4xf32, #tpu.memory_space<vmem>>, vector<1x4x4xf32>
    %8 = vector.shape_cast %7 : vector<1x4x4xf32> to vector<4x4xf32>
    %cst_8 = arith.constant dense<0.000000e+00> : vector<64x4xf32>
    %9 = tpu.matmul %6, %8, %cst_8 {dimension_numbers = #tpu.dot_dimension_numbers<[1], [0], [0], [1], [0, 0, 1, 1], [], []>} : vector<64x4xf32>, vector<4x4xf32>, vector<64x4xf32> -> vector<64x4xf32>
    %10 = arith.addf %0, %9 : vector<64x4xf32>
    %c0_9 = arith.constant 0 : index
    %c0_10 = arith.constant 0 : index
    %c0_11 = arith.constant 0 : index
    %11 = vector.load %arg4[%c0_9, %c0_10, %c0_11] : memref<9x4x4xf32, #tpu.memory_space<vmem>>, vector<1x4x4xf32>
    %12 = vector.shape_cast %11 : vector<1x4x4xf32> to vector<4x4xf32>
    %cst_12 = arith.constant dense<0.000000e+00> : vector<64x4xf32>
    %13 = tpu.matmul %4, %12, %cst_12 {dimension_numbers = #tpu.dot_dimension_numbers<[1], [0], [0], [1], [0, 0, 1, 1], [], []>} : vector<64x4xf32>, vector<4x4xf32>, vector<64x4xf32> -> vector<64x4xf32>
    %14 = arith.addf %1, %13 : vector<64x4xf32>
    %c1 = arith.constant 1 : index
    %c0_13 = arith.constant 0 : index
    %c0_14 = arith.constant 0 : index
    %c0_15 = arith.constant 0 : index
    %15 = vector.load %arg1[%c1, %c0_13, %c0_14, %c0_15] : memref<4x9x9x4xf32, #tpu.memory_space<vmem>>, vector<1x8x8x4xf32>
    %16 = vector.shape_cast %15 : vector<1x8x8x4xf32> to vector<8x8x4xf32>
    %17 = vector.shape_cast %16 : vector<8x8x4xf32> to vector<64x4xf32>
    %cst_16 = arith.constant 0.000000e+00 : f32
    %18 = vector.broadcast %cst_16 : f32 to vector<64x4xf32>
    %19 = arith.maximumf %17, %18 : vector<64x4xf32>
    %c1_17 = arith.constant 1 : index
    %c0_18 = arith.constant 0 : index
    %c0_19 = arith.constant 0 : index
    %20 = vector.load %arg2[%c1_17, %c0_18, %c0_19] : memref<9x4x4xf32, #tpu.memory_space<vmem>>, vector<1x4x4xf32>
    %21 = vector.shape_cast %20 : vector<1x4x4xf32> to vector<4x4xf32>
    %cst_20 = arith.constant dense<0.000000e+00> : vector<64x4xf32>
    %22 = tpu.matmul %19, %21, %cst_20 {dimension_numbers = #tpu.dot_dimension_numbers<[1], [0], [0], [1], [0, 0, 1, 1], [], []>} : vector<64x4xf32>, vector<4x4xf32>, vector<64x4xf32> -> vector<64x4xf32>
    %23 = arith.addf %10, %22 : vector<64x4xf32>
    %c1_21 = arith.constant 1 : index
    %c0_22 = arith.constant 0 : index
    %c0_23 = arith.constant 0 : index
    %24 = vector.load %arg4[%c1_21, %c0_22, %c0_23] : memref<9x4x4xf32, #tpu.memory_space<vmem>>, vector<1x4x4xf32>
    %25 = vector.shape_cast %24 : vector<1x4x4xf32> to vector<4x4xf32>
    %cst_24 = arith.constant dense<0.000000e+00> : vector<64x4xf32>
    %26 = tpu.matmul %17, %25, %cst_24 {dimension_numbers = #tpu.dot_dimension_numbers<[1], [0], [0], [1], [0, 0, 1, 1], [], []>} : vector<64x4xf32>, vector<4x4xf32>, vector<64x4xf32> -> vector<64x4xf32>
    %27 = arith.addf %14, %26 : vector<64x4xf32>
    %c0_25 = arith.constant 0 : index
    %c0_26 = arith.constant 0 : index
    %c1_27 = arith.constant 1 : index
    %c0_28 = arith.constant 0 : index
    %28 = vector.load %arg1[%c0_25, %c0_26, %c1_27, %c0_28] : memref<4x9x9x4xf32, #tpu.memory_space<vmem>>, vector<1x8x8x4xf32>
    %29 = vector.shape_cast %28 : vector<1x8x8x4xf32> to vector<8x8x4xf32>
    %30 = vector.shape_cast %29 : vector<8x8x4xf32> to vector<64x4xf32>
    %cst_29 = arith.constant 0.000000e+00 : f32
    %31 = vector.broadcast %cst_29 : f32 to vector<64x4xf32>
    %32 = arith.maximumf %30, %31 : vector<64x4xf32>
    %c2 = arith.constant 2 : index
    %c0_30 = arith.constant 0 : index
    %c0_31 = arith.constant 0 : index
    %33 = vector.load %arg2[%c2, %c0_30, %c0_31] : memref<9x4x4xf32, #tpu.memory_space<vmem>>, vector<1x4x4xf32>
    %34 = vector.shape_cast %33 : vector<1x4x4xf32> to vector<4x4xf32>
    %cst_32 = arith.constant dense<0.000000e+00> : vector<64x4xf32>
    %35 = tpu.matmul %32, %34, %cst_32 {dimension_numbers = #tpu.dot_dimension_numbers<[1], [0], [0], [1], [0, 0, 1, 1], [], []>} : vector<64x4xf32>, vector<4x4xf32>, vector<64x4xf32> -> vector<64x4xf32>
    %36 = arith.addf %23, %35 : vector<64x4xf32>
    %c2_33 = arith.constant 2 : index
    %c0_34 = arith.constant 0 : index
    %c0_35 = arith.constant 0 : index
    %37 = vector.load %arg4[%c2_33, %c0_34, %c0_35] : memref<9x4x4xf32, #tpu.memory_space<vmem>>, vector<1x4x4xf32>
    %38 = vector.shape_cast %37 : vector<1x4x4xf32> to vector<4x4xf32>
    %cst_36 = arith.constant dense<0.000000e+00> : vector<64x4xf32>
    %39 = tpu.matmul %30, %38, %cst_36 {dimension_numbers = #tpu.dot_dimension_numbers<[1], [0], [0], [1], [0, 0, 1, 1], [], []>} : vector<64x4xf32>, vector<4x4xf32>, vector<64x4xf32> -> vector<64x4xf32>
    %40 = arith.addf %27, %39 : vector<64x4xf32>
    %c2_37 = arith.constant 2 : index
    %c0_38 = arith.constant 0 : index
    %c0_39 = arith.constant 0 : index
    %c0_40 = arith.constant 0 : index
    %41 = vector.load %arg1[%c2_37, %c0_38, %c0_39, %c0_40] : memref<4x9x9x4xf32, #tpu.memory_space<vmem>>, vector<1x8x8x4xf32>
    %42 = vector.shape_cast %41 : vector<1x8x8x4xf32> to vector<8x8x4xf32>
    %43 = vector.shape_cast %42 : vector<8x8x4xf32> to vector<64x4xf32>
    %cst_41 = arith.constant 0.000000e+00 : f32
    %44 = vector.broadcast %cst_41 : f32 to vector<64x4xf32>
    %45 = arith.maximumf %43, %44 : vector<64x4xf32>
    %c3 = arith.constant 3 : index
    %c0_42 = arith.constant 0 : index
    %c0_43 = arith.constant 0 : index
    %46 = vector.load %arg2[%c3, %c0_42, %c0_43] : memref<9x4x4xf32, #tpu.memory_space<vmem>>, vector<1x4x4xf32>
    %47 = vector.shape_cast %46 : vector<1x4x4xf32> to vector<4x4xf32>
    %cst_44 = arith.constant dense<0.000000e+00> : vector<64x4xf32>
    %48 = tpu.matmul %45, %47, %cst_44 {dimension_numbers = #tpu.dot_dimension_numbers<[1], [0], [0], [1], [0, 0, 1, 1], [], []>} : vector<64x4xf32>, vector<4x4xf32>, vector<64x4xf32> -> vector<64x4xf32>
    %49 = arith.addf %36, %48 : vector<64x4xf32>
    %c3_45 = arith.constant 3 : index
    %c0_46 = arith.constant 0 : index
    %c0_47 = arith.constant 0 : index
    %50 = vector.load %arg4[%c3_45, %c0_46, %c0_47] : memref<9x4x4xf32, #tpu.memory_space<vmem>>, vector<1x4x4xf32>
    %51 = vector.shape_cast %50 : vector<1x4x4xf32> to vector<4x4xf32>
    %cst_48 = arith.constant dense<0.000000e+00> : vector<64x4xf32>
    %52 = tpu.matmul %43, %51, %cst_48 {dimension_numbers = #tpu.dot_dimension_numbers<[1], [0], [0], [1], [0, 0, 1, 1], [], []>} : vector<64x4xf32>, vector<4x4xf32>, vector<64x4xf32> -> vector<64x4xf32>
    %53 = arith.addf %40, %52 : vector<64x4xf32>
    %c3_49 = arith.constant 3 : index
    %c0_50 = arith.constant 0 : index
    %c0_51 = arith.constant 0 : index
    %c0_52 = arith.constant 0 : index
    %54 = vector.load %arg1[%c3_49, %c0_50, %c0_51, %c0_52] : memref<4x9x9x4xf32, #tpu.memory_space<vmem>>, vector<1x8x8x4xf32>
    %55 = vector.shape_cast %54 : vector<1x8x8x4xf32> to vector<8x8x4xf32>
    %56 = vector.shape_cast %55 : vector<8x8x4xf32> to vector<64x4xf32>
    %cst_53 = arith.constant 0.000000e+00 : f32
    %57 = vector.broadcast %cst_53 : f32 to vector<64x4xf32>
    %58 = arith.maximumf %56, %57 : vector<64x4xf32>
    %c4 = arith.constant 4 : index
    %c0_54 = arith.constant 0 : index
    %c0_55 = arith.constant 0 : index
    %59 = vector.load %arg2[%c4, %c0_54, %c0_55] : memref<9x4x4xf32, #tpu.memory_space<vmem>>, vector<1x4x4xf32>
    %60 = vector.shape_cast %59 : vector<1x4x4xf32> to vector<4x4xf32>
    %cst_56 = arith.constant dense<0.000000e+00> : vector<64x4xf32>
    %61 = tpu.matmul %58, %60, %cst_56 {dimension_numbers = #tpu.dot_dimension_numbers<[1], [0], [0], [1], [0, 0, 1, 1], [], []>} : vector<64x4xf32>, vector<4x4xf32>, vector<64x4xf32> -> vector<64x4xf32>
    %62 = arith.addf %49, %61 : vector<64x4xf32>
    %c4_57 = arith.constant 4 : index
    %c0_58 = arith.constant 0 : index
    %c0_59 = arith.constant 0 : index
    %63 = vector.load %arg4[%c4_57, %c0_58, %c0_59] : memref<9x4x4xf32, #tpu.memory_space<vmem>>, vector<1x4x4xf32>
    %64 = vector.shape_cast %63 : vector<1x4x4xf32> to vector<4x4xf32>
    %cst_60 = arith.constant dense<0.000000e+00> : vector<64x4xf32>
    %65 = tpu.matmul %56, %64, %cst_60 {dimension_numbers = #tpu.dot_dimension_numbers<[1], [0], [0], [1], [0, 0, 1, 1], [], []>} : vector<64x4xf32>, vector<4x4xf32>, vector<64x4xf32> -> vector<64x4xf32>
    %66 = arith.addf %53, %65 : vector<64x4xf32>
    %c2_61 = arith.constant 2 : index
    %c0_62 = arith.constant 0 : index
    %c1_63 = arith.constant 1 : index
    %c0_64 = arith.constant 0 : index
    %67 = vector.load %arg1[%c2_61, %c0_62, %c1_63, %c0_64] : memref<4x9x9x4xf32, #tpu.memory_space<vmem>>, vector<1x8x8x4xf32>
    %68 = vector.shape_cast %67 : vector<1x8x8x4xf32> to vector<8x8x4xf32>
    %69 = vector.shape_cast %68 : vector<8x8x4xf32> to vector<64x4xf32>
    %cst_65 = arith.constant 0.000000e+00 : f32
    %70 = vector.broadcast %cst_65 : f32 to vector<64x4xf32>
    %71 = arith.maximumf %69, %70 : vector<64x4xf32>
    %c5 = arith.constant 5 : index
    %c0_66 = arith.constant 0 : index
    %c0_67 = arith.constant 0 : index
    %72 = vector.load %arg2[%c5, %c0_66, %c0_67] : memref<9x4x4xf32, #tpu.memory_space<vmem>>, vector<1x4x4xf32>
    %73 = vector.shape_cast %72 : vector<1x4x4xf32> to vector<4x4xf32>
    %cst_68 = arith.constant dense<0.000000e+00> : vector<64x4xf32>
    %74 = tpu.matmul %71, %73, %cst_68 {dimension_numbers = #tpu.dot_dimension_numbers<[1], [0], [0], [1], [0, 0, 1, 1], [], []>} : vector<64x4xf32>, vector<4x4xf32>, vector<64x4xf32> -> vector<64x4xf32>
    %75 = arith.addf %62, %74 : vector<64x4xf32>
    %c5_69 = arith.constant 5 : index
    %c0_70 = arith.constant 0 : index
    %c0_71 = arith.constant 0 : index
    %76 = vector.load %arg4[%c5_69, %c0_70, %c0_71] : memref<9x4x4xf32, #tpu.memory_space<vmem>>, vector<1x4x4xf32>
    %77 = vector.shape_cast %76 : vector<1x4x4xf32> to vector<4x4xf32>
    %cst_72 = arith.constant dense<0.000000e+00> : vector<64x4xf32>
    %78 = tpu.matmul %69, %77, %cst_72 {dimension_numbers = #tpu.dot_dimension_numbers<[1], [0], [0], [1], [0, 0, 1, 1], [], []>} : vector<64x4xf32>, vector<4x4xf32>, vector<64x4xf32> -> vector<64x4xf32>
    %79 = arith.addf %66, %78 : vector<64x4xf32>
    %c0_73 = arith.constant 0 : index
    %c1_74 = arith.constant 1 : index
    %c0_75 = arith.constant 0 : index
    %c0_76 = arith.constant 0 : index
    %80 = vector.load %arg1[%c0_73, %c1_74, %c0_75, %c0_76] : memref<4x9x9x4xf32, #tpu.memory_space<vmem>>, vector<1x8x8x4xf32>
    %81 = vector.shape_cast %80 : vector<1x8x8x4xf32> to vector<8x8x4xf32>
    %82 = vector.shape_cast %81 : vector<8x8x4xf32> to vector<64x4xf32>
    %cst_77 = arith.constant 0.000000e+00 : f32
    %83 = vector.broadcast %cst_77 : f32 to vector<64x4xf32>
    %84 = arith.maximumf %82, %83 : vector<64x4xf32>
    %c6 = arith.constant 6 : index
    %c0_78 = arith.constant 0 : index
    %c0_79 = arith.constant 0 : index
    %85 = vector.load %arg2[%c6, %c0_78, %c0_79] : memref<9x4x4xf32, #tpu.memory_space<vmem>>, vector<1x4x4xf32>
    %86 = vector.shape_cast %85 : vector<1x4x4xf32> to vector<4x4xf32>
    %cst_80 = arith.constant dense<0.000000e+00> : vector<64x4xf32>
    %87 = tpu.matmul %84, %86, %cst_80 {dimension_numbers = #tpu.dot_dimension_numbers<[1], [0], [0], [1], [0, 0, 1, 1], [], []>} : vector<64x4xf32>, vector<4x4xf32>, vector<64x4xf32> -> vector<64x4xf32>
    %88 = arith.addf %75, %87 : vector<64x4xf32>
    %c6_81 = arith.constant 6 : index
    %c0_82 = arith.constant 0 : index
    %c0_83 = arith.constant 0 : index
    %89 = vector.load %arg4[%c6_81, %c0_82, %c0_83] : memref<9x4x4xf32, #tpu.memory_space<vmem>>, vector<1x4x4xf32>
    %90 = vector.shape_cast %89 : vector<1x4x4xf32> to vector<4x4xf32>
    %cst_84 = arith.constant dense<0.000000e+00> : vector<64x4xf32>
    %91 = tpu.matmul %82, %90, %cst_84 {dimension_numbers = #tpu.dot_dimension_numbers<[1], [0], [0], [1], [0, 0, 1, 1], [], []>} : vector<64x4xf32>, vector<4x4xf32>, vector<64x4xf32> -> vector<64x4xf32>
    %92 = arith.addf %79, %91 : vector<64x4xf32>
    %c1_85 = arith.constant 1 : index
    %c1_86 = arith.constant 1 : index
    %c0_87 = arith.constant 0 : index
    %c0_88 = arith.constant 0 : index
    %93 = vector.load %arg1[%c1_85, %c1_86, %c0_87, %c0_88] : memref<4x9x9x4xf32, #tpu.memory_space<vmem>>, vector<1x8x8x4xf32>
    %94 = vector.shape_cast %93 : vector<1x8x8x4xf32> to vector<8x8x4xf32>
    %95 = vector.shape_cast %94 : vector<8x8x4xf32> to vector<64x4xf32>
    %cst_89 = arith.constant 0.000000e+00 : f32
    %96 = vector.broadcast %cst_89 : f32 to vector<64x4xf32>
    %97 = arith.maximumf %95, %96 : vector<64x4xf32>
    %c7 = arith.constant 7 : index
    %c0_90 = arith.constant 0 : index
    %c0_91 = arith.constant 0 : index
    %98 = vector.load %arg2[%c7, %c0_90, %c0_91] : memref<9x4x4xf32, #tpu.memory_space<vmem>>, vector<1x4x4xf32>
    %99 = vector.shape_cast %98 : vector<1x4x4xf32> to vector<4x4xf32>
    %cst_92 = arith.constant dense<0.000000e+00> : vector<64x4xf32>
    %100 = tpu.matmul %97, %99, %cst_92 {dimension_numbers = #tpu.dot_dimension_numbers<[1], [0], [0], [1], [0, 0, 1, 1], [], []>} : vector<64x4xf32>, vector<4x4xf32>, vector<64x4xf32> -> vector<64x4xf32>
    %101 = arith.addf %88, %100 : vector<64x4xf32>
    %c7_93 = arith.constant 7 : index
    %c0_94 = arith.constant 0 : index
    %c0_95 = arith.constant 0 : index
    %102 = vector.load %arg4[%c7_93, %c0_94, %c0_95] : memref<9x4x4xf32, #tpu.memory_space<vmem>>, vector<1x4x4xf32>
    %103 = vector.shape_cast %102 : vector<1x4x4xf32> to vector<4x4xf32>
    %cst_96 = arith.constant dense<0.000000e+00> : vector<64x4xf32>
    %104 = tpu.matmul %95, %103, %cst_96 {dimension_numbers = #tpu.dot_dimension_numbers<[1], [0], [0], [1], [0, 0, 1, 1], [], []>} : vector<64x4xf32>, vector<4x4xf32>, vector<64x4xf32> -> vector<64x4xf32>
    %105 = arith.addf %92, %104 : vector<64x4xf32>
    %c0_97 = arith.constant 0 : index
    %c1_98 = arith.constant 1 : index
    %c1_99 = arith.constant 1 : index
    %c0_100 = arith.constant 0 : index
    %106 = vector.load %arg1[%c0_97, %c1_98, %c1_99, %c0_100] : memref<4x9x9x4xf32, #tpu.memory_space<vmem>>, vector<1x8x8x4xf32>
    %107 = vector.shape_cast %106 : vector<1x8x8x4xf32> to vector<8x8x4xf32>
    %108 = vector.shape_cast %107 : vector<8x8x4xf32> to vector<64x4xf32>
    %cst_101 = arith.constant 0.000000e+00 : f32
    %109 = vector.broadcast %cst_101 : f32 to vector<64x4xf32>
    %110 = arith.maximumf %108, %109 : vector<64x4xf32>
    %c8 = arith.constant 8 : index
    %c0_102 = arith.constant 0 : index
    %c0_103 = arith.constant 0 : index
    %111 = vector.load %arg2[%c8, %c0_102, %c0_103] : memref<9x4x4xf32, #tpu.memory_space<vmem>>, vector<1x4x4xf32>
    %112 = vector.shape_cast %111 : vector<1x4x4xf32> to vector<4x4xf32>
    %cst_104 = arith.constant dense<0.000000e+00> : vector<64x4xf32>
    %113 = tpu.matmul %110, %112, %cst_104 {dimension_numbers = #tpu.dot_dimension_numbers<[1], [0], [0], [1], [0, 0, 1, 1], [], []>} : vector<64x4xf32>, vector<4x4xf32>, vector<64x4xf32> -> vector<64x4xf32>
    %114 = arith.addf %101, %113 : vector<64x4xf32>
    %c8_105 = arith.constant 8 : index
    %c0_106 = arith.constant 0 : index
    %c0_107 = arith.constant 0 : index
    %115 = vector.load %arg4[%c8_105, %c0_106, %c0_107] : memref<9x4x4xf32, #tpu.memory_space<vmem>>, vector<1x4x4xf32>
    %116 = vector.shape_cast %115 : vector<1x4x4xf32> to vector<4x4xf32>
    %cst_108 = arith.constant dense<0.000000e+00> : vector<64x4xf32>
    %117 = tpu.matmul %108, %116, %cst_108 {dimension_numbers = #tpu.dot_dimension_numbers<[1], [0], [0], [1], [0, 0, 1, 1], [], []>} : vector<64x4xf32>, vector<4x4xf32>, vector<64x4xf32> -> vector<64x4xf32>
    %118 = arith.addf %105, %117 : vector<64x4xf32>
    %c0_109 = arith.constant 0 : index
    %c0_110 = arith.constant 0 : index
    %119 = vector.load %arg3[%c0_109, %c0_110] : memref<1x4xf32, #tpu.memory_space<vmem>>, vector<1x4xf32>
    %120 = vector.broadcast %119 : vector<1x4xf32> to vector<64x4xf32>
    %121 = arith.addf %114, %120 : vector<64x4xf32>
    %c0_111 = arith.constant 0 : index
    %c0_112 = arith.constant 0 : index
    %c0_113 = arith.constant 0 : index
    %122 = vector.load %arg6[%c0_111, %c0_112, %c0_113] : memref<1x64x4xf32, #tpu.memory_space<vmem>>, vector<1x64x4xf32>
    %123 = vector.shape_cast %122 : vector<1x64x4xf32> to vector<64x4xf32>
    %124 = vector.shape_cast %121 : vector<64x4xf32> to vector<1x64x4xf32>
    tpu.vector_store %arg6[%c0_111, %c0_112, %c0_113], %124 {strides = array<i32>} : memref<1x64x4xf32, #tpu.memory_space<vmem>>, vector<1x64x4xf32>,
    %c0_114 = arith.constant 0 : index
    %c0_115 = arith.constant 0 : index
    %125 = vector.load %arg5[%c0_114, %c0_115] : memref<1x4xf32, #tpu.memory_space<vmem>>, vector<1x4xf32>
    %126 = vector.broadcast %125 : vector<1x4xf32> to vector<64x4xf32>
    %127 = arith.addf %118, %126 : vector<64x4xf32>
    %c0_116 = arith.constant 0 : index
    %c0_117 = arith.constant 0 : index
    %c0_118 = arith.constant 0 : index
    %128 = vector.load %arg7[%c0_116, %c0_117, %c0_118] : memref<1x64x4xf32, #tpu.memory_space<vmem>>, vector<1x64x4xf32>
    %129 = vector.shape_cast %128 : vector<1x64x4xf32> to vector<64x4xf32>
    %130 = vector.shape_cast %127 : vector<64x4xf32> to vector<1x64x4xf32>
    tpu.vector_store %arg7[%c0_116, %c0_117, %c0_118], %130 {strides = array<i32>} : memref<1x64x4xf32, #tpu.memory_space<vmem>>, vector<1x64x4xf32>,
    return
  }
  func.func @transform_0(%arg0: i32) -> (i32, i32, i32, i32) {
    %c0_i32 = arith.constant 0 : i32
    %c0_i32_0 = arith.constant 0 : i32
    %c0_i32_1 = arith.constant 0 : i32
    %c0_i32_2 = arith.constant 0 : i32
    return %arg0, %c0_i32, %c0_i32_0, %c0_i32_1 : i32, i32, i32, i32
  }
  func.func @transform_1(%arg0: i32) -> (i32, i32, i32) {
    %c0_i32 = arith.constant 0 : i32
    %c0_i32_0 = arith.constant 0 : i32
    %c0_i32_1 = arith.constant 0 : i32
    %c0_i32_2 = arith.constant 0 : i32
    return %c0_i32, %c0_i32_0, %c0_i32_1 : i32, i32, i32
  }
  func.func @transform_2(%arg0: i32) -> (i32, i32) {
    %c0_i32 = arith.constant 0 : i32
    %c0_i32_0 = arith.constant 0 : i32
    %c0_i32_1 = arith.constant 0 : i32
    return %c0_i32, %c0_i32_0 : i32, i32
  }
  func.func @transform_3(%arg0: i32) -> (i32, i32, i32) {
    %c0_i32 = arith.constant 0 : i32
    %c0_i32_0 = arith.constant 0 : i32
    %c0_i32_1 = arith.constant 0 : i32
    %c0_i32_2 = arith.constant 0 : i32
    return %c0_i32, %c0_i32_0, %c0_i32_1 : i32, i32, i32
  }
  func.func @transform_4(%arg0: i32) -> (i32, i32) {
    %c0_i32 = arith.constant 0 : i32
    %c0_i32_0 = arith.constant 0 : i32
    %c0_i32_1 = arith.constant 0 : i32
    return %c0_i32, %c0_i32_0 : i32, i32
  }
  func.func @transform_5(%arg0: i32) -> (i32, i32, i32) {
    %c0_i32 = arith.constant 0 : i32
    %c0_i32_0 = arith.constant 0 : i32
    %c0_i32_1 = arith.constant 0 : i32
    return %arg0, %c0_i32, %c0_i32_0 : i32, i32, i32
  }
  func.func @transform_6(%arg0: i32) -> (i32, i32, i32) {
    %c0_i32 = arith.constant 0 : i32
    %c0_i32_0 = arith.constant 0 : i32
    %c0_i32_1 = arith.constant 0 : i32
    return %arg0, %c0_i32, %c0_i32_0 : i32, i32, i32
  }
}

</mosaic_0001>

<llo_original>
// kernel: res_block_discriminator_forward.3
$region0: #{res_block_discriminator_forward.3}
  #allocation0 [shape = 'u32[]', space=smem, size = 0x4, offset = 0x4, fixed_abs, tag = 'smem constant byte address 0x4 - core index']
  #allocation1 [shape = 'u32[72,128]{1,0:T(1,128)}', space=vmem, size = 0x9000, scoped, tag = 'internal scratch']
  %s0 = inlined_call_operand.vmem [shape: f32[2,10,10,4], index: 0, kind: input, shape index: {}]
  %s1 = inlined_call_operand.vmem [shape: f32[9,4,4], index: 1, kind: input, shape index: {}]
  %s2 = inlined_call_operand.vmem [shape: f32[1,4], index: 2, kind: input, shape index: {}]
  %s3 = inlined_call_operand.vmem [shape: f32[2,64,4], index: 3, kind: input, shape index: {}]
  %s4 = inlined_call_operand.vmem [shape: f32[2,64,4], index: 4, kind: output, shape index: {}]
  %s5 = sld [smem:[#allocation0]]
  $region49: #{res_block_discriminator_forward.3} parent=0
    _
  %s7 = ssub.s32 1, %s5
  %s8 = scalar_select 0, %s7, %s5
  loop: start=0, step=1, limit=4
  $region2: #{res_block_discriminator_forward.3} parent=0 // loop_pre_header
    _
  $region3: #{res_block_discriminator_forward.3} parent=0 // loop_header
    %s10 = sphi 0, %s14
    %p11 = scmp.ge.s32.totalorder %s10, 4
    %s20 = sphi 0, %s22
    %s23 = sphi 0, %s20
    %s24 = sphi 0, %s23
    %s40 = sphi 0, %s24
    %s44 = sphi 0, %s44
    %s46 = sphi 0, %s44
    %s47 = sphi 0, %s46
    %s61 = sphi 0, %s47
    %s65 = sphi 0, %s65
    %s67 = sphi 0, %s65
    %s68 = sphi 0, %s67
    %s82 = sphi 0, %s68
    %s88 = sphi 0, %s90
    %s91 = sphi 0, %s88
    %s92 = sphi 0, %s91
    %s108 = sphi 0, %s92
    %s114 = sphi 0, %s116
    %s117 = sphi 0, %s114
    %s118 = sphi 0, %s117
    %s134 = sphi 0, %s118
  $region4: #{res_block_discriminator_forward.3} parent=0 // loop_header_branch
    %13 = sbr.rel (%p11) target = $region8
  $region5: #{res_block_discriminator_forward.3} parent=0 // loop_body
    %s15 = ssub.s32 %s10, 1
    %s16 = ssub.s32 %s10, 2
    %s17 = sadd.s32 %s10, 1
    %s18 = ssub.s32 %s10, %s17
    %p19 = scmp.eq.s32.totalorder %s18, 0
    %s21 = sadd.s32 %s20, 1
    %s22 = scalar_select %p19, %s20, %s21
    %p25 = pneg %p19
    %p26 = scmp.eq.s32.totalorder %s10, 1
    %p27 = por %p25, %p26
    %p28 = scmp.ne.s32.totalorder %s20, %s23
    %p29 = scmp.eq.s32.totalorder %s10, 0
    %p30 = por %p28, %p29
    %p31 = scmp.ne.s32.totalorder %s20, %s23
    %p32 = scmp.eq.s32.totalorder %s15, 1
    %p33 = por %p31, %p32
    %p34 = scmp.ne.s32.totalorder %s23, %s24
    %p35 = scmp.eq.s32.totalorder %s15, 0
    %p36 = por %p34, %p35
    %p37 = scmp.ne.s32.totalorder %s23, %s24
    %p38 = scmp.eq.s32.totalorder %s16, 1
    %p39 = por %p37, %p38
    %p41 = scmp.ne.s32.totalorder %s24, %s40
    %p42 = scmp.eq.s32.totalorder %s16, 0
    %p43 = por %p41, %p42
    %s45 = sadd.s32 %s44, 1
    %p48 = scmp.eq.s32.totalorder %s10, 1
    %p49 = scmp.ne.s32.totalorder %s44, %s46
    %p50 = scmp.eq.s32.totalorder %s10, 0
    %p51 = por %p49, %p50
    %p52 = scmp.ne.s32.totalorder %s44, %s46
    %p53 = scmp.eq.s32.totalorder %s15, 1
    %p54 = por %p52, %p53
    %p55 = scmp.ne.s32.totalorder %s46, %s47
    %p56 = scmp.eq.s32.totalorder %s15, 0
    %p57 = por %p55, %p56
    %p58 = scmp.ne.s32.totalorder %s46, %s47
    %p59 = scmp.eq.s32.totalorder %s16, 1
    %p60 = por %p58, %p59
    %p62 = scmp.ne.s32.totalorder %s47, %s61
    %p63 = scmp.eq.s32.totalorder %s16, 0
    %p64 = por %p62, %p63
    %s66 = sadd.s32 %s65, 1
    %p69 = scmp.eq.s32.totalorder %s10, 1
    %p70 = scmp.ne.s32.totalorder %s65, %s67
    %p71 = scmp.eq.s32.totalorder %s10, 0
    %p72 = por %p70, %p71
    %p73 = scmp.ne.s32.totalorder %s65, %s67
    %p74 = scmp.eq.s32.totalorder %s15, 1
    %p75 = por %p73, %p74
    %p76 = scmp.ne.s32.totalorder %s67, %s68
    %p77 = scmp.eq.s32.totalorder %s15, 0
    %p78 = por %p76, %p77
    %p79 = scmp.ne.s32.totalorder %s67, %s68
    %p80 = scmp.eq.s32.totalorder %s16, 1
    %p81 = por %p79, %p80
    %p83 = scmp.ne.s32.totalorder %s68, %s82
    %p84 = scmp.eq.s32.totalorder %s16, 0
    %p85 = por %p83, %p84
    %s86 = ssub.s32 %s10, %s17
    %p87 = scmp.eq.s32.totalorder %s86, 0
    %s89 = sadd.s32 %s88, 1
    %s90 = scalar_select %p87, %s88, %s89
    %p93 = pneg %p87
    %p94 = scmp.eq.s32.totalorder %s10, 1
    %p95 = por %p93, %p94
    %p96 = scmp.ne.s32.totalorder %s88, %s91
    %p97 = scmp.eq.s32.totalorder %s10, 0
    %p98 = por %p96, %p97
    %p99 = scmp.ne.s32.totalorder %s88, %s91
    %p100 = scmp.eq.s32.totalorder %s15, 1
    %p101 = por %p99, %p100
    %p102 = scmp.ne.s32.totalorder %s91, %s92
    %p103 = scmp.eq.s32.totalorder %s15, 0
    %p104 = por %p102, %p103
    %p105 = scmp.ne.s32.totalorder %s91, %s92
    %p106 = scmp.eq.s32.totalorder %s16, 1
    %p107 = por %p105, %p106
    %p109 = scmp.ne.s32.totalorder %s92, %s108
    %p110 = scmp.eq.s32.totalorder %s16, 0
    %p111 = por %p109, %p110
    %s112 = ssub.s32 %s10, %s17
    %p113 = scmp.eq.s32.totalorder %s112, 0
    %s115 = sadd.s32 %s114, 1
    %s116 = scalar_select %p113, %s114, %s115
    %p119 = pneg %p113
    %p120 = scmp.eq.s32.totalorder %s10, 1
    %p121 = por %p119, %p120
    %p122 = scmp.ne.s32.totalorder %s114, %s117
    %p123 = scmp.eq.s32.totalorder %s10, 0
    %p124 = por %p122, %p123
    %p125 = scmp.ne.s32.totalorder %s114, %s117
    %p126 = scmp.eq.s32.totalorder %s15, 1
    %p127 = por %p125, %p126
    %p128 = scmp.ne.s32.totalorder %s117, %s118
    %p129 = scmp.eq.s32.totalorder %s15, 0
    %p130 = por %p128, %p129
    %p131 = scmp.ne.s32.totalorder %s117, %s118
    %p132 = scmp.eq.s32.totalorder %s16, 1
    %p133 = por %p131, %p132
    %p135 = scmp.ne.s32.totalorder %s118, %s134
    %p136 = scmp.eq.s32.totalorder %s16, 0
    %p137 = por %p135, %p136
    %p138 = scmp.le.s32.totalorder 1, %s10
    %p139 = scmp.lt.s32.totalorder %s10, 3
    %p140 = pnand %p138, %p139
    %p141 = pneg %p140
    // Predicated region
    $region9: #{res_block_discriminator_forward.3} parent=5 // pred_check
      _
    $region10: #{res_block_discriminator_forward.3} parent=5 // pred_check_branch
      %143 = sbr.rel (%p140) target = $region12
    $region11: #{res_block_discriminator_forward.3} parent=5 // pred_region
      %s144 = ssub.s32 %s10, 1
      // Predicated region
      $region13: #{res_block_discriminator_forward.3} parent=11 // pred_check
        %p145 = pneg %p57
      $region14: #{res_block_discriminator_forward.3} parent=11 // pred_check_branch
        %147 = sbr.rel (%p145) target = $region16
      $region15: #{res_block_discriminator_forward.3} parent=11 // pred_region
        _
      $region16: #{res_block_discriminator_forward.3} parent=11 // pred_fallthru
        _
      // Predicated region
      $region17: #{res_block_discriminator_forward.3} parent=11 // pred_check
        %p148 = pneg %p78
      $region18: #{res_block_discriminator_forward.3} parent=11 // pred_check_branch
        %150 = sbr.rel (%p148) target = $region20
      $region19: #{res_block_discriminator_forward.3} parent=11 // pred_region
        _
      $region20: #{res_block_discriminator_forward.3} parent=11 // pred_fallthru
        _
    $region12: #{res_block_discriminator_forward.3} parent=5 // pred_fallthru
      _
    %p151 = scmp.lt.s32.totalorder %s10, 2
    // Predicated region
    $region21: #{res_block_discriminator_forward.3} parent=5 // pred_check
      %p152 = pneg %p151
    $region22: #{res_block_discriminator_forward.3} parent=5 // pred_check_branch
      %154 = sbr.rel (%p152) target = $region24
    $region23: #{res_block_discriminator_forward.3} parent=5 // pred_region
      // Predicated region
      $region25: #{res_block_discriminator_forward.3} parent=23 // pred_check
        %p155 = pneg %p30
      $region26: #{res_block_discriminator_forward.3} parent=23 // pred_check_branch
        %157 = sbr.rel (%p155) target = $region28
      $region27: #{res_block_discriminator_forward.3} parent=23 // pred_region
        %p158 = scmp.lt.s32.totalorder %s10, 1
        %s159 = scalar_select %p158, %s10, 1
        %s160 = smul.addr %s159, 20
        %s161 = smul.addr %s160, 8
        %s162 = scalar_lea.vmem %s0, %s161
      $region28: #{res_block_discriminator_forward.3} parent=23 // pred_fallthru
        _
      // Predicated region
      $region29: #{res_block_discriminator_forward.3} parent=23 // pred_check
        %p163 = pneg %p98
      $region30: #{res_block_discriminator_forward.3} parent=23 // pred_check_branch
        %165 = sbr.rel (%p163) target = $region32
      $region31: #{res_block_discriminator_forward.3} parent=23 // pred_region
        %p166 = scmp.lt.s32.totalorder %s10, 1
        %s167 = scalar_select %p166, %s10, 1
        %s168 = smul.addr %s167, 8
        %s169 = smul.addr %s168, 8
        %s170 = scalar_lea.vmem %s3, %s169
      $region32: #{res_block_discriminator_forward.3} parent=23 // pred_fallthru
        _
    $region24: #{res_block_discriminator_forward.3} parent=5 // pred_fallthru
      _
    %p171 = scmp.le.s32.totalorder 1, %s10
    %p172 = scmp.lt.s32.totalorder %s10, 3
    %p173 = pnand %p171, %p172
    %p174 = pneg %p173
    // Predicated region
    $region33: #{res_block_discriminator_forward.3} parent=5 // pred_check
      _
    $region34: #{res_block_discriminator_forward.3} parent=5 // pred_check_branch
      %176 = sbr.rel (%p173) target = $region36
    $region35: #{res_block_discriminator_forward.3} parent=5 // pred_region
      %s177 = ssub.s32 %s10, 1
      %p178 = scmp.lt.s32.totalorder %s15, 1
      %s179 = scalar_select %p178, %s15, 1
      %s180 = smul.addr %s179, 20
      %s181 = smul.addr %s180, 8
      %s182 = scalar_lea.vmem %s0, %s181
      %p183 = pneg %p36
      %p184 = pneg %p33
      %p185 = pneg %p57
      %p186 = pneg %p54
      %p187 = pneg %p78
      %p188 = pneg %p75
      %p189 = scmp.lt.s32.totalorder %s15, 1
      %s190 = scalar_select %p189, %s15, 1
      %s191 = smul.addr %s190, 8
      %s192 = smul.addr %s191, 8
      %s193 = scalar_lea.vmem %s3, %s192
      %p194 = pneg %p104
      %p195 = pneg %p101
      %p196 = pneg %p130
      %p197 = pneg %p127
      %p198 = scmp.lt.s32.totalorder %s15, 1
      %s199 = scalar_select %p198, %s15, 1
      %s200 = smul.addr %s199, 8
      %s201 = smul.addr %s200, 8
      %s202 = scalar_lea.vmem %s4, %s201
      %p203 = scmp.lt.s32.totalorder %s15, 1
      %s204 = scalar_select %p203, %s15, 1
      %s205 = smul.addr %s204, 20
      %s206 = smul.addr %s205, 8
      %s207 = scalar_lea.vmem %s0, %s206
      %p208 = scmp.lt.s32.totalorder %s15, 1
      %s209 = scalar_select %p208, %s15, 1
      %s210 = smul.addr %s209, 8
      %s211 = smul.addr %s210, 8
      %s212 = scalar_lea.vmem %s3, %s211
      %p213 = scmp.lt.s32.totalorder %s15, 1
      %s214 = scalar_select %p213, %s15, 1
      %s215 = smul.addr %s214, 8
      %s216 = smul.addr %s215, 8
      %s217 = scalar_lea.vmem %s4, %s216
      %v218 = vld [vmem:[%s207] sm:$0xff]
      %v219 = vld [vmem:[%s207 + $0x10] sm:$0xff]
      %v220 = vld [vmem:[%s207 + $0x20] sm:$0xff]
      %v221 = vld [vmem:[%s207 + $0x30] sm:$0xff]
      %v222 = vld [vmem:[%s207 + $0x40] sm:$0xff]
      %v223 = vld [vmem:[%s207 + $0x50] sm:$0xff]
      %v224 = vld [vmem:[%s207 + $0x60] sm:$0xff]
      %v225 = vld [vmem:[%s207 + $0x70] sm:$0xff]
      %v226 = vmax.f32 %v218, 0.0
      %v227 = vmax.f32 %v219, 0.0
      %v228 = vmax.f32 %v220, 0.0
      %v229 = vmax.f32 %v221, 0.0
      %v230 = vmax.f32 %v222, 0.0
      %v231 = vmax.f32 %v223, 0.0
      %v232 = vmax.f32 %v224, 0.0
      %v233 = vmax.f32 %v225, 0.0
      %v234 = vld [vmem:[%s1] sm:$0xf]
      %v235 = vld [vmem:[%s207 + $0x1] sm:$0xff]
      %v236 = vld [vmem:[%s207 + $0x11] sm:$0xff]
      %v237 = vld [vmem:[%s207 + $0x21] sm:$0xff]
      %v238 = vld [vmem:[%s207 + $0x31] sm:$0xff]
      %v239 = vld [vmem:[%s207 + $0x41] sm:$0xff]
      %v240 = vld [vmem:[%s207 + $0x51] sm:$0xff]
      %v241 = vld [vmem:[%s207 + $0x61] sm:$0xff]
      %v242 = vld [vmem:[%s207 + $0x71] sm:$0xff]
      %v243 = vmax.f32 %v235, 0.0
      %v244 = vmax.f32 %v236, 0.0
      %v245 = vmax.f32 %v237, 0.0
      %v246 = vmax.f32 %v238, 0.0
      %v247 = vmax.f32 %v239, 0.0
      %v248 = vmax.f32 %v240, 0.0
      %v249 = vmax.f32 %v241, 0.0
      %v250 = vmax.f32 %v242, 0.0
      %s251 = scalar_lea.vmem %s1, 4
      %v252 = vld [vmem:[%s251] sm:$0xf]
      %vm253 = vcmask 31744
      %v255 = vsel %vm253, %v243, 0
      %v258 = vsel %vm253, %v244, 0
      %v261 = vsel %vm253, %v245, 0
      %v264 = vsel %vm253, %v246, 0
      %v267 = vsel %vm253, %v247, 0
      %v270 = vsel %vm253, %v248, 0
      %v273 = vsel %vm253, %v249, 0
      %v276 = vsel %vm253, %v250, 0
      %vm278 = vcmask 1043456
      %v280 = vsel %vm278, %v252, 0
      %282 = vmatpush.msra.mxu0 0.0
      %283 = vmatpush.msra.mxu0 0.0
      %284 = vmatpush.msra.mxu0 0.0
      %285 = vmatpush.msra.mxu0 0.0
      %286 = vmatpush.msra.mxu0 0.0
      %287 = vmatpush.msra.mxu0 0.0
      %288 = vmatpush.msra.mxu0 0.0
      %289 = vmatpush.msra.mxu0 0.0
      %290 = vmatpush.msra.mxu0 0.0
      %291 = vmatpush.msra.mxu0 0.0
      %292 = vmatpush.msra.mxu0 0.0
      %293 = vmatpush.msra.mxu0 0.0
      %294 = vmatpush.msra.mxu0 0.0
      %295 = vmatpush.msra.mxu0 0.0
      %296 = vmatpush.msra.mxu0 0.0
      %297 = vmatpush.msra.mxu0 %v280
      %298 = vmatmul.f32.gmra.mxu0 %v255
      %v299 = vpop.f32.mrf.mxu0
      %v300 = vadd.f32 0.0, %v299
      %301 = vmatmul.f32.gmra.mxu0 %v258
      %v302 = vpop.f32.mrf.mxu0
      %v303 = vadd.f32 0.0, %v302
      %304 = vmatmul.f32.gmra.mxu0 %v261
      %v305 = vpop.f32.mrf.mxu0
      %v306 = vadd.f32 0.0, %v305
      %307 = vmatmul.f32.gmra.mxu0 %v264
      %v308 = vpop.f32.mrf.mxu0
      %v309 = vadd.f32 0.0, %v308
      %310 = vmatmul.f32.gmra.mxu0 %v267
      %v311 = vpop.f32.mrf.mxu0
      %v312 = vadd.f32 0.0, %v311
      %313 = vmatmul.f32.gmra.mxu0 %v270
      %v314 = vpop.f32.mrf.mxu0
      %v315 = vadd.f32 0.0, %v314
      %316 = vmatmul.f32.gmra.mxu0 %v273
      %v317 = vpop.f32.mrf.mxu0
      %v318 = vadd.f32 0.0, %v317
      %319 = vmatmul.f32.gmra.mxu0 %v276
      %v320 = vpop.f32.mrf.mxu0
      %v321 = vadd.f32 0.0, %v320
      %322 = vdwg.mxu0
      %v324 = vsel %vm253, %v226, 0
      %v327 = vsel %vm253, %v227, 0
      %v330 = vsel %vm253, %v228, 0
      %v333 = vsel %vm253, %v229, 0
      %v336 = vsel %vm253, %v230, 0
      %v339 = vsel %vm253, %v231, 0
      %v342 = vsel %vm253, %v232, 0
      %v345 = vsel %vm253, %v233, 0
      %v348 = vsel %vm278, %v234, 0
      %350 = vmatpush.msra.mxu0 0.0
      %351 = vmatpush.msra.mxu0 0.0
      %352 = vmatpush.msra.mxu0 0.0
      %353 = vmatpush.msra.mxu0 0.0
      %354 = vmatpush.msra.mxu0 0.0
      %355 = vmatpush.msra.mxu0 0.0
      %356 = vmatpush.msra.mxu0 0.0
      %357 = vmatpush.msra.mxu0 0.0
      %358 = vmatpush.msra.mxu0 0.0
      %359 = vmatpush.msra.mxu0 0.0
      %360 = vmatpush.msra.mxu0 0.0
      %361 = vmatpush.msra.mxu0 0.0
      %362 = vmatpush.msra.mxu0 0.0
      %363 = vmatpush.msra.mxu0 0.0
      %364 = vmatpush.msra.mxu0 0.0
      %365 = vmatpush.msra.mxu0 %v348
      %366 = vmatmul.f32.gmra.mxu0 %v324
      %v367 = vpop.f32.mrf.mxu0
      %v368 = vadd.f32 %v300, %v367
      %369 = vmatmul.f32.gmra.mxu0 %v327
      %v370 = vpop.f32.mrf.mxu0
      %v371 = vadd.f32 %v303, %v370
      %372 = vmatmul.f32.gmra.mxu0 %v330
      %v373 = vpop.f32.mrf.mxu0
      %v374 = vadd.f32 %v306, %v373
      %375 = vmatmul.f32.gmra.mxu0 %v333
      %v376 = vpop.f32.mrf.mxu0
      %v377 = vadd.f32 %v309, %v376
      %378 = vmatmul.f32.gmra.mxu0 %v336
      %v379 = vpop.f32.mrf.mxu0
      %v380 = vadd.f32 %v312, %v379
      %381 = vmatmul.f32.gmra.mxu0 %v339
      %v382 = vpop.f32.mrf.mxu0
      %v383 = vadd.f32 %v315, %v382
      %384 = vmatmul.f32.gmra.mxu0 %v342
      %v385 = vpop.f32.mrf.mxu0
      %v386 = vadd.f32 %v318, %v385
      %387 = vmatmul.f32.gmra.mxu0 %v345
      %v388 = vpop.f32.mrf.mxu0
      %v389 = vadd.f32 %v321, %v388
      %390 = vdwg.mxu0
      %v391 = vld [vmem:[%s207 + $0x2] sm:$0xff]
      %v392 = vld [vmem:[%s207 + $0x12] sm:$0xff]
      %v393 = vld [vmem:[%s207 + $0x22] sm:$0xff]
      %v394 = vld [vmem:[%s207 + $0x32] sm:$0xff]
      %v395 = vld [vmem:[%s207 + $0x42] sm:$0xff]
      %v396 = vld [vmem:[%s207 + $0x52] sm:$0xff]
      %v397 = vld [vmem:[%s207 + $0x62] sm:$0xff]
      %v398 = vld [vmem:[%s207 + $0x72] sm:$0xff]
      %v399 = vmax.f32 %v391, 0.0
      %v400 = vmax.f32 %v392, 0.0
      %v401 = vmax.f32 %v393, 0.0
      %v402 = vmax.f32 %v394, 0.0
      %v403 = vmax.f32 %v395, 0.0
      %v404 = vmax.f32 %v396, 0.0
      %v405 = vmax.f32 %v397, 0.0
      %v406 = vmax.f32 %v398, 0.0
      %s407 = scalar_lea.vmem %s1, 8
      %v408 = vld [vmem:[%s407] sm:$0xf]
      %v410 = vsel %vm253, %v399, 0
      %v413 = vsel %vm253, %v400, 0
      %v416 = vsel %vm253, %v401, 0
      %v419 = vsel %vm253, %v402, 0
      %v422 = vsel %vm253, %v403, 0
      %v425 = vsel %vm253, %v404, 0
      %v428 = vsel %vm253, %v405, 0
      %v431 = vsel %vm253, %v406, 0
      %v434 = vsel %vm278, %v408, 0
      %436 = vmatpush.msra.mxu0 0.0
      %437 = vmatpush.msra.mxu0 0.0
      %438 = vmatpush.msra.mxu0 0.0
      %439 = vmatpush.msra.mxu0 0.0
      %440 = vmatpush.msra.mxu0 0.0
      %441 = vmatpush.msra.mxu0 0.0
      %442 = vmatpush.msra.mxu0 0.0
      %443 = vmatpush.msra.mxu0 0.0
      %444 = vmatpush.msra.mxu0 0.0
      %445 = vmatpush.msra.mxu0 0.0
      %446 = vmatpush.msra.mxu0 0.0
      %447 = vmatpush.msra.mxu0 0.0
      %448 = vmatpush.msra.mxu0 0.0
      %449 = vmatpush.msra.mxu0 0.0
      %450 = vmatpush.msra.mxu0 0.0
      %451 = vmatpush.msra.mxu0 %v434
      %452 = vmatmul.f32.gmra.mxu0 %v410
      %v453 = vpop.f32.mrf.mxu0
      %v454 = vadd.f32 0.0, %v453
      %455 = vmatmul.f32.gmra.mxu0 %v413
      %v456 = vpop.f32.mrf.mxu0
      %v457 = vadd.f32 0.0, %v456
      %458 = vmatmul.f32.gmra.mxu0 %v416
      %v459 = vpop.f32.mrf.mxu0
      %v460 = vadd.f32 0.0, %v459
      %461 = vmatmul.f32.gmra.mxu0 %v419
      %v462 = vpop.f32.mrf.mxu0
      %v463 = vadd.f32 0.0, %v462
      %464 = vmatmul.f32.gmra.mxu0 %v422
      %v465 = vpop.f32.mrf.mxu0
      %v466 = vadd.f32 0.0, %v465
      %467 = vmatmul.f32.gmra.mxu0 %v425
      %v468 = vpop.f32.mrf.mxu0
      %v469 = vadd.f32 0.0, %v468
      %470 = vmatmul.f32.gmra.mxu0 %v428
      %v471 = vpop.f32.mrf.mxu0
      %v472 = vadd.f32 0.0, %v471
      %473 = vmatmul.f32.gmra.mxu0 %v431
      %v474 = vpop.f32.mrf.mxu0
      %v475 = vadd.f32 0.0, %v474
      %476 = vdwg.mxu0
      %v477 = vadd.f32 %v368, %v454
      %v478 = vadd.f32 %v371, %v457
      %v479 = vadd.f32 %v374, %v460
      %v480 = vadd.f32 %v377, %v463
      %v481 = vadd.f32 %v380, %v466
      %v482 = vadd.f32 %v383, %v469
      %v483 = vadd.f32 %v386, %v472
      %v484 = vadd.f32 %v389, %v475
      %s485 = scalar_lea.vmem %s207, 16
      %v486 = vld [vmem:[%s485] sm:$0xff]
      %v487 = vld [vmem:[%s485 + $0x10] sm:$0xff]
      %v488 = vld [vmem:[%s485 + $0x20] sm:$0xff]
      %v489 = vld [vmem:[%s485 + $0x30] sm:$0xff]
      %v490 = vld [vmem:[%s485 + $0x40] sm:$0xff]
      %v491 = vld [vmem:[%s485 + $0x50] sm:$0xff]
      %v492 = vld [vmem:[%s485 + $0x60] sm:$0xff]
      %v493 = vld [vmem:[%s485 + $0x70] sm:$0xff]
      %v494 = vmax.f32 %v486, 0.0
      %v495 = vmax.f32 %v487, 0.0
      %v496 = vmax.f32 %v488, 0.0
      %v497 = vmax.f32 %v489, 0.0
      %v498 = vmax.f32 %v490, 0.0
      %v499 = vmax.f32 %v491, 0.0
      %v500 = vmax.f32 %v492, 0.0
      %v501 = vmax.f32 %v493, 0.0
      %s502 = scalar_lea.vmem %s1, 12
      %v503 = vld [vmem:[%s502] sm:$0xf]
      %v505 = vsel %vm253, %v494, 0
      %v508 = vsel %vm253, %v495, 0
      %v511 = vsel %vm253, %v496, 0
      %v514 = vsel %vm253, %v497, 0
      %v517 = vsel %vm253, %v498, 0
      %v520 = vsel %vm253, %v499, 0
      %v523 = vsel %vm253, %v500, 0
      %v526 = vsel %vm253, %v501, 0
      %v529 = vsel %vm278, %v503, 0
      %531 = vmatpush.msra.mxu0 0.0
      %532 = vmatpush.msra.mxu0 0.0
      %533 = vmatpush.msra.mxu0 0.0
      %534 = vmatpush.msra.mxu0 0.0
      %535 = vmatpush.msra.mxu0 0.0
      %536 = vmatpush.msra.mxu0 0.0
      %537 = vmatpush.msra.mxu0 0.0
      %538 = vmatpush.msra.mxu0 0.0
      %539 = vmatpush.msra.mxu0 0.0
      %540 = vmatpush.msra.mxu0 0.0
      %541 = vmatpush.msra.mxu0 0.0
      %542 = vmatpush.msra.mxu0 0.0
      %543 = vmatpush.msra.mxu0 0.0
      %544 = vmatpush.msra.mxu0 0.0
      %545 = vmatpush.msra.mxu0 0.0
      %546 = vmatpush.msra.mxu0 %v529
      %547 = vmatmul.f32.gmra.mxu0 %v505
      %v548 = vpop.f32.mrf.mxu0
      %v549 = vadd.f32 0.0, %v548
      %550 = vmatmul.f32.gmra.mxu0 %v508
      %v551 = vpop.f32.mrf.mxu0
      %v552 = vadd.f32 0.0, %v551
      %553 = vmatmul.f32.gmra.mxu0 %v511
      %v554 = vpop.f32.mrf.mxu0
      %v555 = vadd.f32 0.0, %v554
      %556 = vmatmul.f32.gmra.mxu0 %v514
      %v557 = vpop.f32.mrf.mxu0
      %v558 = vadd.f32 0.0, %v557
      %559 = vmatmul.f32.gmra.mxu0 %v517
      %v560 = vpop.f32.mrf.mxu0
      %v561 = vadd.f32 0.0, %v560
      %562 = vmatmul.f32.gmra.mxu0 %v520
      %v563 = vpop.f32.mrf.mxu0
      %v564 = vadd.f32 0.0, %v563
      %565 = vmatmul.f32.gmra.mxu0 %v523
      %v566 = vpop.f32.mrf.mxu0
      %v567 = vadd.f32 0.0, %v566
      %568 = vmatmul.f32.gmra.mxu0 %v526
      %v569 = vpop.f32.mrf.mxu0
      %v570 = vadd.f32 0.0, %v569
      %571 = vdwg.mxu0
      %v572 = vadd.f32 %v477, %v549
      %v573 = vadd.f32 %v478, %v552
      %v574 = vadd.f32 %v479, %v555
      %v575 = vadd.f32 %v480, %v558
      %v576 = vadd.f32 %v481, %v561
      %v577 = vadd.f32 %v482, %v564
      %v578 = vadd.f32 %v483, %v567
      %v579 = vadd.f32 %v484, %v570
      %v580 = vld [vmem:[%s485 + $0x1] sm:$0xff]
      %v581 = vld [vmem:[%s485 + $0x11] sm:$0xff]
      %v582 = vld [vmem:[%s485 + $0x21] sm:$0xff]
      %v583 = vld [vmem:[%s485 + $0x31] sm:$0xff]
      %v584 = vld [vmem:[%s485 + $0x41] sm:$0xff]
      %v585 = vld [vmem:[%s485 + $0x51] sm:$0xff]
      %v586 = vld [vmem:[%s485 + $0x61] sm:$0xff]
      %v587 = vld [vmem:[%s485 + $0x71] sm:$0xff]
      %v588 = vmax.f32 %v580, 0.0
      %v589 = vmax.f32 %v581, 0.0
      %v590 = vmax.f32 %v582, 0.0
      %v591 = vmax.f32 %v583, 0.0
      %v592 = vmax.f32 %v584, 0.0
      %v593 = vmax.f32 %v585, 0.0
      %v594 = vmax.f32 %v586, 0.0
      %v595 = vmax.f32 %v587, 0.0
      %s596 = scalar_lea.vmem %s1, 16
      %v597 = vld [vmem:[%s596] sm:$0xf]
      %v599 = vsel %vm253, %v588, 0
      %v602 = vsel %vm253, %v589, 0
      %v605 = vsel %vm253, %v590, 0
      %v608 = vsel %vm253, %v591, 0
      %v611 = vsel %vm253, %v592, 0
      %v614 = vsel %vm253, %v593, 0
      %v617 = vsel %vm253, %v594, 0
      %v620 = vsel %vm253, %v595, 0
      %v623 = vsel %vm278, %v597, 0
      %625 = vmatpush.msra.mxu0 0.0
      %626 = vmatpush.msra.mxu0 0.0
      %627 = vmatpush.msra.mxu0 0.0
      %628 = vmatpush.msra.mxu0 0.0
      %629 = vmatpush.msra.mxu0 0.0
      %630 = vmatpush.msra.mxu0 0.0
      %631 = vmatpush.msra.mxu0 0.0
      %632 = vmatpush.msra.mxu0 0.0
      %633 = vmatpush.msra.mxu0 0.0
      %634 = vmatpush.msra.mxu0 0.0
      %635 = vmatpush.msra.mxu0 0.0
      %636 = vmatpush.msra.mxu0 0.0
      %637 = vmatpush.msra.mxu0 0.0
      %638 = vmatpush.msra.mxu0 0.0
      %639 = vmatpush.msra.mxu0 0.0
      %640 = vmatpush.msra.mxu0 %v623
      %641 = vmatmul.f32.gmra.mxu0 %v599
      %v642 = vpop.f32.mrf.mxu0
      %v643 = vadd.f32 0.0, %v642
      %644 = vmatmul.f32.gmra.mxu0 %v602
      %v645 = vpop.f32.mrf.mxu0
      %v646 = vadd.f32 0.0, %v645
      %647 = vmatmul.f32.gmra.mxu0 %v605
      %v648 = vpop.f32.mrf.mxu0
      %v649 = vadd.f32 0.0, %v648
      %650 = vmatmul.f32.gmra.mxu0 %v608
      %v651 = vpop.f32.mrf.mxu0
      %v652 = vadd.f32 0.0, %v651
      %653 = vmatmul.f32.gmra.mxu0 %v611
      %v654 = vpop.f32.mrf.mxu0
      %v655 = vadd.f32 0.0, %v654
      %656 = vmatmul.f32.gmra.mxu0 %v614
      %v657 = vpop.f32.mrf.mxu0
      %v658 = vadd.f32 0.0, %v657
      %659 = vmatmul.f32.gmra.mxu0 %v617
      %v660 = vpop.f32.mrf.mxu0
      %v661 = vadd.f32 0.0, %v660
      %662 = vmatmul.f32.gmra.mxu0 %v620
      %v663 = vpop.f32.mrf.mxu0
      %v664 = vadd.f32 0.0, %v663
      %665 = vdwg.mxu0
      %v666 = vadd.f32 %v572, %v643
      %v667 = vadd.f32 %v573, %v646
      %v668 = vadd.f32 %v574, %v649
      %v669 = vadd.f32 %v575, %v652
      %v670 = vadd.f32 %v576, %v655
      %v671 = vadd.f32 %v577, %v658
      %v672 = vadd.f32 %v578, %v661
      %v673 = vadd.f32 %v579, %v664
      %v674 = vld [vmem:[%s485 + $0x2] sm:$0xff]
      %v675 = vld [vmem:[%s485 + $0x12] sm:$0xff]
      %v676 = vld [vmem:[%s485 + $0x22] sm:$0xff]
      %v677 = vld [vmem:[%s485 + $0x32] sm:$0xff]
      %v678 = vld [vmem:[%s485 + $0x42] sm:$0xff]
      %v679 = vld [vmem:[%s485 + $0x52] sm:$0xff]
      %v680 = vld [vmem:[%s485 + $0x62] sm:$0xff]
      %v681 = vld [vmem:[%s485 + $0x72] sm:$0xff]
      %v682 = vmax.f32 %v674, 0.0
      %v683 = vmax.f32 %v675, 0.0
      %v684 = vmax.f32 %v676, 0.0
      %v685 = vmax.f32 %v677, 0.0
      %v686 = vmax.f32 %v678, 0.0
      %v687 = vmax.f32 %v679, 0.0
      %v688 = vmax.f32 %v680, 0.0
      %v689 = vmax.f32 %v681, 0.0
      %s690 = scalar_lea.vmem %s1, 20
      %v691 = vld [vmem:[%s690] sm:$0xf]
      %v693 = vsel %vm253, %v682, 0
      %v696 = vsel %vm253, %v683, 0
      %v699 = vsel %vm253, %v684, 0
      %v702 = vsel %vm253, %v685, 0
      %v705 = vsel %vm253, %v686, 0
      %v708 = vsel %vm253, %v687, 0
      %v711 = vsel %vm253, %v688, 0
      %v714 = vsel %vm253, %v689, 0
      %v717 = vsel %vm278, %v691, 0
      %719 = vmatpush.msra.mxu0 0.0
      %720 = vmatpush.msra.mxu0 0.0
      %721 = vmatpush.msra.mxu0 0.0
      %722 = vmatpush.msra.mxu0 0.0
      %723 = vmatpush.msra.mxu0 0.0
      %724 = vmatpush.msra.mxu0 0.0
      %725 = vmatpush.msra.mxu0 0.0
      %726 = vmatpush.msra.mxu0 0.0
      %727 = vmatpush.msra.mxu0 0.0
      %728 = vmatpush.msra.mxu0 0.0
      %729 = vmatpush.msra.mxu0 0.0
      %730 = vmatpush.msra.mxu0 0.0
      %731 = vmatpush.msra.mxu0 0.0
      %732 = vmatpush.msra.mxu0 0.0
      %733 = vmatpush.msra.mxu0 0.0
      %734 = vmatpush.msra.mxu0 %v717
      %735 = vmatmul.f32.gmra.mxu0 %v693
      %v736 = vpop.f32.mrf.mxu0
      %v737 = vadd.f32 0.0, %v736
      %738 = vmatmul.f32.gmra.mxu0 %v696
      %v739 = vpop.f32.mrf.mxu0
      %v740 = vadd.f32 0.0, %v739
      %741 = vmatmul.f32.gmra.mxu0 %v699
      %v742 = vpop.f32.mrf.mxu0
      %v743 = vadd.f32 0.0, %v742
      %744 = vmatmul.f32.gmra.mxu0 %v702
      %v745 = vpop.f32.mrf.mxu0
      %v746 = vadd.f32 0.0, %v745
      %747 = vmatmul.f32.gmra.mxu0 %v705
      %v748 = vpop.f32.mrf.mxu0
      %v749 = vadd.f32 0.0, %v748
      %750 = vmatmul.f32.gmra.mxu0 %v708
      %v751 = vpop.f32.mrf.mxu0
      %v752 = vadd.f32 0.0, %v751
      %753 = vmatmul.f32.gmra.mxu0 %v711
      %v754 = vpop.f32.mrf.mxu0
      %v755 = vadd.f32 0.0, %v754
      %756 = vmatmul.f32.gmra.mxu0 %v714
      %v757 = vpop.f32.mrf.mxu0
      %v758 = vadd.f32 0.0, %v757
      %759 = vdwg.mxu0
      %v760 = vadd.f32 %v666, %v737
      %v761 = vadd.f32 %v667, %v740
      %v762 = vadd.f32 %v668, %v743
      %v763 = vadd.f32 %v669, %v746
      %v764 = vadd.f32 %v670, %v749
      %v765 = vadd.f32 %v671, %v752
      %v766 = vadd.f32 %v672, %v755
      %v767 = vadd.f32 %v673, %v758
      %s768 = scalar_lea.vmem %s207, 32
      %v769 = vld [vmem:[%s768] sm:$0xff]
      %v770 = vld [vmem:[%s768 + $0x10] sm:$0xff]
      %v771 = vld [vmem:[%s768 + $0x20] sm:$0xff]
      %v772 = vld [vmem:[%s768 + $0x30] sm:$0xff]
      %v773 = vld [vmem:[%s768 + $0x40] sm:$0xff]
      %v774 = vld [vmem:[%s768 + $0x50] sm:$0xff]
      %v775 = vld [vmem:[%s768 + $0x60] sm:$0xff]
      %v776 = vld [vmem:[%s768 + $0x70] sm:$0xff]
      %v777 = vmax.f32 %v769, 0.0
      %v778 = vmax.f32 %v770, 0.0
      %v779 = vmax.f32 %v771, 0.0
      %v780 = vmax.f32 %v772, 0.0
      %v781 = vmax.f32 %v773, 0.0
      %v782 = vmax.f32 %v774, 0.0
      %v783 = vmax.f32 %v775, 0.0
      %v784 = vmax.f32 %v776, 0.0
      %s785 = scalar_lea.vmem %s1, 24
      %v786 = vld [vmem:[%s785] sm:$0xf]
      %v788 = vsel %vm253, %v777, 0
      %v791 = vsel %vm253, %v778, 0
      %v794 = vsel %vm253, %v779, 0
      %v797 = vsel %vm253, %v780, 0
      %v800 = vsel %vm253, %v781, 0
      %v803 = vsel %vm253, %v782, 0
      %v806 = vsel %vm253, %v783, 0
      %v809 = vsel %vm253, %v784, 0
      %v812 = vsel %vm278, %v786, 0
      %814 = vmatpush.msra.mxu0 0.0
      %815 = vmatpush.msra.mxu0 0.0
      %816 = vmatpush.msra.mxu0 0.0
      %817 = vmatpush.msra.mxu0 0.0
      %818 = vmatpush.msra.mxu0 0.0
      %819 = vmatpush.msra.mxu0 0.0
      %820 = vmatpush.msra.mxu0 0.0
      %821 = vmatpush.msra.mxu0 0.0
      %822 = vmatpush.msra.mxu0 0.0
      %823 = vmatpush.msra.mxu0 0.0
      %824 = vmatpush.msra.mxu0 0.0
      %825 = vmatpush.msra.mxu0 0.0
      %826 = vmatpush.msra.mxu0 0.0
      %827 = vmatpush.msra.mxu0 0.0
      %828 = vmatpush.msra.mxu0 0.0
      %829 = vmatpush.msra.mxu0 %v812
      %830 = vmatmul.f32.gmra.mxu0 %v788
      %v831 = vpop.f32.mrf.mxu0
      %v832 = vadd.f32 0.0, %v831
      %833 = vmatmul.f32.gmra.mxu0 %v791
      %v834 = vpop.f32.mrf.mxu0
      %v835 = vadd.f32 0.0, %v834
      %836 = vmatmul.f32.gmra.mxu0 %v794
      %v837 = vpop.f32.mrf.mxu0
      %v838 = vadd.f32 0.0, %v837
      %839 = vmatmul.f32.gmra.mxu0 %v797
      %v840 = vpop.f32.mrf.mxu0
      %v841 = vadd.f32 0.0, %v840
      %842 = vmatmul.f32.gmra.mxu0 %v800
      %v843 = vpop.f32.mrf.mxu0
      %v844 = vadd.f32 0.0, %v843
      %845 = vmatmul.f32.gmra.mxu0 %v803
      %v846 = vpop.f32.mrf.mxu0
      %v847 = vadd.f32 0.0, %v846
      %848 = vmatmul.f32.gmra.mxu0 %v806
      %v849 = vpop.f32.mrf.mxu0
      %v850 = vadd.f32 0.0, %v849
      %851 = vmatmul.f32.gmra.mxu0 %v809
      %v852 = vpop.f32.mrf.mxu0
      %v853 = vadd.f32 0.0, %v852
      %854 = vdwg.mxu0
      %v855 = vadd.f32 %v760, %v832
      %v856 = vadd.f32 %v761, %v835
      %v857 = vadd.f32 %v762, %v838
      %v858 = vadd.f32 %v763, %v841
      %v859 = vadd.f32 %v764, %v844
      %v860 = vadd.f32 %v765, %v847
      %v861 = vadd.f32 %v766, %v850
      %v862 = vadd.f32 %v767, %v853
      %v863 = vld [vmem:[%s768 + $0x1] sm:$0xff]
      %v864 = vld [vmem:[%s768 + $0x11] sm:$0xff]
      %v865 = vld [vmem:[%s768 + $0x21] sm:$0xff]
      %v866 = vld [vmem:[%s768 + $0x31] sm:$0xff]
      %v867 = vld [vmem:[%s768 + $0x41] sm:$0xff]
      %v868 = vld [vmem:[%s768 + $0x51] sm:$0xff]
      %v869 = vld [vmem:[%s768 + $0x61] sm:$0xff]
      %v870 = vld [vmem:[%s768 + $0x71] sm:$0xff]
      %v871 = vmax.f32 %v863, 0.0
      %v872 = vmax.f32 %v864, 0.0
      %v873 = vmax.f32 %v865, 0.0
      %v874 = vmax.f32 %v866, 0.0
      %v875 = vmax.f32 %v867, 0.0
      %v876 = vmax.f32 %v868, 0.0
      %v877 = vmax.f32 %v869, 0.0
      %v878 = vmax.f32 %v870, 0.0
      %s879 = scalar_lea.vmem %s1, 28
      %v880 = vld [vmem:[%s879] sm:$0xf]
      %v882 = vsel %vm253, %v871, 0
      %v885 = vsel %vm253, %v872, 0
      %v888 = vsel %vm253, %v873, 0
      %v891 = vsel %vm253, %v874, 0
      %v894 = vsel %vm253, %v875, 0
      %v897 = vsel %vm253, %v876, 0
      %v900 = vsel %vm253, %v877, 0
      %v903 = vsel %vm253, %v878, 0
      %v906 = vsel %vm278, %v880, 0
      %908 = vmatpush.msra.mxu0 0.0
      %909 = vmatpush.msra.mxu0 0.0
      %910 = vmatpush.msra.mxu0 0.0
      %911 = vmatpush.msra.mxu0 0.0
      %912 = vmatpush.msra.mxu0 0.0
      %913 = vmatpush.msra.mxu0 0.0
      %914 = vmatpush.msra.mxu0 0.0
      %915 = vmatpush.msra.mxu0 0.0
      %916 = vmatpush.msra.mxu0 0.0
      %917 = vmatpush.msra.mxu0 0.0
      %918 = vmatpush.msra.mxu0 0.0
      %919 = vmatpush.msra.mxu0 0.0
      %920 = vmatpush.msra.mxu0 0.0
      %921 = vmatpush.msra.mxu0 0.0
      %922 = vmatpush.msra.mxu0 0.0
      %923 = vmatpush.msra.mxu0 %v906
      %924 = vmatmul.f32.gmra.mxu0 %v882
      %v925 = vpop.f32.mrf.mxu0
      %v926 = vadd.f32 0.0, %v925
      %927 = vmatmul.f32.gmra.mxu0 %v885
      %v928 = vpop.f32.mrf.mxu0
      %v929 = vadd.f32 0.0, %v928
      %930 = vmatmul.f32.gmra.mxu0 %v888
      %v931 = vpop.f32.mrf.mxu0
      %v932 = vadd.f32 0.0, %v931
      %933 = vmatmul.f32.gmra.mxu0 %v891
      %v934 = vpop.f32.mrf.mxu0
      %v935 = vadd.f32 0.0, %v934
      %936 = vmatmul.f32.gmra.mxu0 %v894
      %v937 = vpop.f32.mrf.mxu0
      %v938 = vadd.f32 0.0, %v937
      %939 = vmatmul.f32.gmra.mxu0 %v897
      %v940 = vpop.f32.mrf.mxu0
      %v941 = vadd.f32 0.0, %v940
      %942 = vmatmul.f32.gmra.mxu0 %v900
      %v943 = vpop.f32.mrf.mxu0
      %v944 = vadd.f32 0.0, %v943
      %945 = vmatmul.f32.gmra.mxu0 %v903
      %v946 = vpop.f32.mrf.mxu0
      %v947 = vadd.f32 0.0, %v946
      %948 = vdwg.mxu0
      %v949 = vadd.f32 %v855, %v926
      %v950 = vadd.f32 %v856, %v929
      %v951 = vadd.f32 %v857, %v932
      %v952 = vadd.f32 %v858, %v935
      %v953 = vadd.f32 %v859, %v938
      %v954 = vadd.f32 %v860, %v941
      %v955 = vadd.f32 %v861, %v944
      %v956 = vadd.f32 %v862, %v947
      %v957 = vld [vmem:[%s768 + $0x2] sm:$0xff]
      %v958 = vld [vmem:[%s768 + $0x12] sm:$0xff]
      %v959 = vld [vmem:[%s768 + $0x22] sm:$0xff]
      %v960 = vld [vmem:[%s768 + $0x32] sm:$0xff]
      %v961 = vld [vmem:[%s768 + $0x42] sm:$0xff]
      %v962 = vld [vmem:[%s768 + $0x52] sm:$0xff]
      %v963 = vld [vmem:[%s768 + $0x62] sm:$0xff]
      %v964 = vld [vmem:[%s768 + $0x72] sm:$0xff]
      %v965 = vmax.f32 %v957, 0.0
      %v966 = vmax.f32 %v958, 0.0
      %v967 = vmax.f32 %v959, 0.0
      %v968 = vmax.f32 %v960, 0.0
      %v969 = vmax.f32 %v961, 0.0
      %v970 = vmax.f32 %v962, 0.0
      %v971 = vmax.f32 %v963, 0.0
      %v972 = vmax.f32 %v964, 0.0
      %s973 = scalar_lea.vmem %s1, 32
      %v974 = vld [vmem:[%s973] sm:$0xf]
      %v976 = vsel %vm253, %v965, 0
      %v979 = vsel %vm253, %v966, 0
      %v982 = vsel %vm253, %v967, 0
      %v985 = vsel %vm253, %v968, 0
      %v988 = vsel %vm253, %v969, 0
      %v991 = vsel %vm253, %v970, 0
      %v994 = vsel %vm253, %v971, 0
      %v997 = vsel %vm253, %v972, 0
      %v1000 = vsel %vm278, %v974, 0
      %1002 = vmatpush.msra.mxu0 0.0
      %1003 = vmatpush.msra.mxu0 0.0
      %1004 = vmatpush.msra.mxu0 0.0
      %1005 = vmatpush.msra.mxu0 0.0
      %1006 = vmatpush.msra.mxu0 0.0
      %1007 = vmatpush.msra.mxu0 0.0
      %1008 = vmatpush.msra.mxu0 0.0
      %1009 = vmatpush.msra.mxu0 0.0
      %1010 = vmatpush.msra.mxu0 0.0
      %1011 = vmatpush.msra.mxu0 0.0
      %1012 = vmatpush.msra.mxu0 0.0
      %1013 = vmatpush.msra.mxu0 0.0
      %1014 = vmatpush.msra.mxu0 0.0
      %1015 = vmatpush.msra.mxu0 0.0
      %1016 = vmatpush.msra.mxu0 0.0
      %1017 = vmatpush.msra.mxu0 %v1000
      %1018 = vmatmul.f32.gmra.mxu0 %v976
      %v1019 = vpop.f32.mrf.mxu0
      %v1020 = vadd.f32 0.0, %v1019
      %1021 = vmatmul.f32.gmra.mxu0 %v979
      %v1022 = vpop.f32.mrf.mxu0
      %v1023 = vadd.f32 0.0, %v1022
      %1024 = vmatmul.f32.gmra.mxu0 %v982
      %v1025 = vpop.f32.mrf.mxu0
      %v1026 = vadd.f32 0.0, %v1025
      %1027 = vmatmul.f32.gmra.mxu0 %v985
      %v1028 = vpop.f32.mrf.mxu0
      %v1029 = vadd.f32 0.0, %v1028
      %1030 = vmatmul.f32.gmra.mxu0 %v988
      %v1031 = vpop.f32.mrf.mxu0
      %v1032 = vadd.f32 0.0, %v1031
      %1033 = vmatmul.f32.gmra.mxu0 %v991
      %v1034 = vpop.f32.mrf.mxu0
      %v1035 = vadd.f32 0.0, %v1034
      %1036 = vmatmul.f32.gmra.mxu0 %v994
      %v1037 = vpop.f32.mrf.mxu0
      %v1038 = vadd.f32 0.0, %v1037
      %1039 = vmatmul.f32.gmra.mxu0 %v997
      %v1040 = vpop.f32.mrf.mxu0
      %v1041 = vadd.f32 0.0, %v1040
      %1042 = vdwg.mxu0
      %v1043 = vadd.f32 %v949, %v1020
      %v1044 = vadd.f32 %v950, %v1023
      %v1045 = vadd.f32 %v951, %v1026
      %v1046 = vadd.f32 %v952, %v1029
      %v1047 = vadd.f32 %v953, %v1032
      %v1048 = vadd.f32 %v954, %v1035
      %v1049 = vadd.f32 %v955, %v1038
      %v1050 = vadd.f32 %v956, %v1041
      %v1051 = vld [vmem:[%s2] sm:$0x1]
      %v1053 = vperm.slane %v1051, 0
      %v1055 = vadd.f32 %v1043, %v1053
      %v1056 = vadd.f32 %v1044, %v1053
      %v1057 = vadd.f32 %v1045, %v1053
      %v1058 = vadd.f32 %v1046, %v1053
      %v1059 = vadd.f32 %v1047, %v1053
      %v1060 = vadd.f32 %v1048, %v1053
      %v1061 = vadd.f32 %v1049, %v1053
      %v1062 = vadd.f32 %v1050, %v1053
      %v1063 = vld [vmem:[%s212] sm:$0xff]
      %v1064 = vld [vmem:[%s212 + $0x8] sm:$0xff]
      %v1065 = vld [vmem:[%s212 + $0x10] sm:$0xff]
      %v1066 = vld [vmem:[%s212 + $0x18] sm:$0xff]
      %v1067 = vld [vmem:[%s212 + $0x20] sm:$0xff]
      %v1068 = vld [vmem:[%s212 + $0x28] sm:$0xff]
      %v1069 = vld [vmem:[%s212 + $0x30] sm:$0xff]
      %v1070 = vld [vmem:[%s212 + $0x38] sm:$0xff]
      %v1071 = vadd.f32 %v1055, %v1063
      %v1072 = vadd.f32 %v1056, %v1064
      %v1073 = vadd.f32 %v1057, %v1065
      %v1074 = vadd.f32 %v1058, %v1066
      %v1075 = vadd.f32 %v1059, %v1067
      %v1076 = vadd.f32 %v1060, %v1068
      %v1077 = vadd.f32 %v1061, %v1069
      %v1078 = vadd.f32 %v1062, %v1070
      %1079 = vst.msk [vmem:[%s217] sm:$0xff] %vm253, %v1071
      %1080 = vst.msk [vmem:[%s217 + $0x8] sm:$0xff] %vm253, %v1072
      %1081 = vst.msk [vmem:[%s217 + $0x10] sm:$0xff] %vm253, %v1073
      %1082 = vst.msk [vmem:[%s217 + $0x18] sm:$0xff] %vm253, %v1074
      %1083 = vst.msk [vmem:[%s217 + $0x20] sm:$0xff] %vm253, %v1075
      %1084 = vst.msk [vmem:[%s217 + $0x28] sm:$0xff] %vm253, %v1076
      %1085 = vst.msk [vmem:[%s217 + $0x30] sm:$0xff] %vm253, %v1077
      %1086 = vst.msk [vmem:[%s217 + $0x38] sm:$0xff] %vm253, %v1078
      %p1087 = scmp.lt.s32.totalorder %s15, 1
      %s1088 = scalar_select %p1087, %s15, 1
      %s1089 = smul.addr %s1088, 8
      %s1090 = smul.addr %s1089, 8
      %s1091 = scalar_lea.vmem %s4, %s1090
      // Predicated region
      $region37: #{res_block_discriminator_forward.3} parent=35 // pred_check
        %p1092 = pneg %p127
      $region38: #{res_block_discriminator_forward.3} parent=35 // pred_check_branch
        %1094 = sbr.rel (%p1092) target = $region40
      $region39: #{res_block_discriminator_forward.3} parent=35 // pred_region
        _
      $region40: #{res_block_discriminator_forward.3} parent=35 // pred_fallthru
        _
    $region36: #{res_block_discriminator_forward.3} parent=5 // pred_fallthru
      _
    %p1095 = scmp.le.s32.totalorder 2, %s10
    // Predicated region
    $region41: #{res_block_discriminator_forward.3} parent=5 // pred_check
      %p1096 = pneg %p1095
    $region42: #{res_block_discriminator_forward.3} parent=5 // pred_check_branch
      %1098 = sbr.rel (%p1096) target = $region44
    $region43: #{res_block_discriminator_forward.3} parent=5 // pred_region
      %s1099 = ssub.s32 %s10, 2
      // Predicated region
      $region45: #{res_block_discriminator_forward.3} parent=43 // pred_check
        %p1100 = pneg %p133
      $region46: #{res_block_discriminator_forward.3} parent=43 // pred_check_branch
        %1102 = sbr.rel (%p1100) target = $region48
      $region47: #{res_block_discriminator_forward.3} parent=43 // pred_region
        %p1103 = scmp.lt.s32.totalorder %s16, 1
        %s1104 = scalar_select %p1103, %s16, 1
        %s1105 = smul.addr %s1104, 8
        %s1106 = smul.addr %s1105, 8
        %s1107 = scalar_lea.vmem %s4, %s1106
      $region48: #{res_block_discriminator_forward.3} parent=43 // pred_fallthru
        _
    $region44: #{res_block_discriminator_forward.3} parent=5 // pred_fallthru
      _
  $region6: #{res_block_discriminator_forward.3} parent=0 // loop_footer
    %s14 = sadd.s32 1, %s10
  $region7: #{res_block_discriminator_forward.3} parent=0 // loop_footer_branch
    %9 = sbr.rel target = $region3
  $region8: #{res_block_discriminator_forward.3} parent=0 // loop_exit
    _

// kernel: res_block_discriminator_forward.2
$region0: #{res_block_discriminator_forward.2}
  #allocation0 [shape = 'u32[]', space=smem, size = 0x4, offset = 0x4, fixed_abs, tag = 'smem constant byte address 0x4 - core index']
  #allocation1 [shape = 'u32[72,128]{1,0:T(1,128)}', space=vmem, size = 0x9000, scoped, tag = 'internal scratch']
  %s0 = inlined_call_operand.vmem [shape: f32[8,9,9,4], index: 0, kind: input, shape index: {}]
  %s1 = inlined_call_operand.vmem [shape: f32[9,4,4], index: 1, kind: input, shape index: {}]
  %s2 = inlined_call_operand.vmem [shape: f32[1,4], index: 2, kind: input, shape index: {}]
  %s3 = inlined_call_operand.vmem [shape: f32[9,4,4], index: 3, kind: input, shape index: {}]
  %s4 = inlined_call_operand.vmem [shape: f32[1,4], index: 4, kind: input, shape index: {}]
  %s5 = inlined_call_operand.vmem [shape: f32[2,64,4], index: 5, kind: output, shape index: {0}]
  %s6 = inlined_call_operand.vmem [shape: f32[2,64,4], index: 6, kind: output, shape index: {1}]
  %7 = xla_tuple %s5, %s6
  %s8 = sld [smem:[#allocation0]]
  $region61: #{res_block_discriminator_forward.2} parent=0
    _
  %s10 = ssub.s32 1, %s8
  %s11 = scalar_select 0, %s10, %s8
  loop: start=0, step=1, limit=4
  $region2: #{res_block_discriminator_forward.2} parent=0 // loop_pre_header
    _
  $region3: #{res_block_discriminator_forward.2} parent=0 // loop_header
    %s13 = sphi 0, %s17
    %p14 = scmp.ge.s32.totalorder %s13, 4
    %s23 = sphi 0, %s25
    %s26 = sphi 0, %s23
    %s27 = sphi 0, %s26
    %s43 = sphi 0, %s27
    %s47 = sphi 0, %s47
    %s49 = sphi 0, %s47
    %s50 = sphi 0, %s49
    %s64 = sphi 0, %s50
    %s68 = sphi 0, %s68
    %s70 = sphi 0, %s68
    %s71 = sphi 0, %s70
    %s85 = sphi 0, %s71
    %s89 = sphi 0, %s89
    %s91 = sphi 0, %s89
    %s92 = sphi 0, %s91
    %s106 = sphi 0, %s92
    %s110 = sphi 0, %s110
    %s112 = sphi 0, %s110
    %s113 = sphi 0, %s112
    %s127 = sphi 0, %s113
    %s133 = sphi 0, %s135
    %s136 = sphi 0, %s133
    %s137 = sphi 0, %s136
    %s153 = sphi 0, %s137
    %s159 = sphi 0, %s161
    %s162 = sphi 0, %s159
    %s163 = sphi 0, %s162
    %s179 = sphi 0, %s163
  $region4: #{res_block_discriminator_forward.2} parent=0 // loop_header_branch
    %16 = sbr.rel (%p14) target = $region8
  $region5: #{res_block_discriminator_forward.2} parent=0 // loop_body
    %s18 = ssub.s32 %s13, 1
    %s19 = ssub.s32 %s13, 2
    %s20 = sadd.s32 %s13, 1
    %s21 = ssub.s32 %s13, %s20
    %p22 = scmp.eq.s32.totalorder %s21, 0
    %s24 = sadd.s32 %s23, 1
    %s25 = scalar_select %p22, %s23, %s24
    %p28 = pneg %p22
    %p29 = scmp.eq.s32.totalorder %s13, 1
    %p30 = por %p28, %p29
    %p31 = scmp.ne.s32.totalorder %s23, %s26
    %p32 = scmp.eq.s32.totalorder %s13, 0
    %p33 = por %p31, %p32
    %p34 = scmp.ne.s32.totalorder %s23, %s26
    %p35 = scmp.eq.s32.totalorder %s18, 1
    %p36 = por %p34, %p35
    %p37 = scmp.ne.s32.totalorder %s26, %s27
    %p38 = scmp.eq.s32.totalorder %s18, 0
    %p39 = por %p37, %p38
    %p40 = scmp.ne.s32.totalorder %s26, %s27
    %p41 = scmp.eq.s32.totalorder %s19, 1
    %p42 = por %p40, %p41
    %p44 = scmp.ne.s32.totalorder %s27, %s43
    %p45 = scmp.eq.s32.totalorder %s19, 0
    %p46 = por %p44, %p45
    %s48 = sadd.s32 %s47, 1
    %p51 = scmp.eq.s32.totalorder %s13, 1
    %p52 = scmp.ne.s32.totalorder %s47, %s49
    %p53 = scmp.eq.s32.totalorder %s13, 0
    %p54 = por %p52, %p53
    %p55 = scmp.ne.s32.totalorder %s47, %s49
    %p56 = scmp.eq.s32.totalorder %s18, 1
    %p57 = por %p55, %p56
    %p58 = scmp.ne.s32.totalorder %s49, %s50
    %p59 = scmp.eq.s32.totalorder %s18, 0
    %p60 = por %p58, %p59
    %p61 = scmp.ne.s32.totalorder %s49, %s50
    %p62 = scmp.eq.s32.totalorder %s19, 1
    %p63 = por %p61, %p62
    %p65 = scmp.ne.s32.totalorder %s50, %s64
    %p66 = scmp.eq.s32.totalorder %s19, 0
    %p67 = por %p65, %p66
    %s69 = sadd.s32 %s68, 1
    %p72 = scmp.eq.s32.totalorder %s13, 1
    %p73 = scmp.ne.s32.totalorder %s68, %s70
    %p74 = scmp.eq.s32.totalorder %s13, 0
    %p75 = por %p73, %p74
    %p76 = scmp.ne.s32.totalorder %s68, %s70
    %p77 = scmp.eq.s32.totalorder %s18, 1
    %p78 = por %p76, %p77
    %p79 = scmp.ne.s32.totalorder %s70, %s71
    %p80 = scmp.eq.s32.totalorder %s18, 0
    %p81 = por %p79, %p80
    %p82 = scmp.ne.s32.totalorder %s70, %s71
    %p83 = scmp.eq.s32.totalorder %s19, 1
    %p84 = por %p82, %p83
    %p86 = scmp.ne.s32.totalorder %s71, %s85
    %p87 = scmp.eq.s32.totalorder %s19, 0
    %p88 = por %p86, %p87
    %s90 = sadd.s32 %s89, 1
    %p93 = scmp.eq.s32.totalorder %s13, 1
    %p94 = scmp.ne.s32.totalorder %s89, %s91
    %p95 = scmp.eq.s32.totalorder %s13, 0
    %p96 = por %p94, %p95
    %p97 = scmp.ne.s32.totalorder %s89, %s91
    %p98 = scmp.eq.s32.totalorder %s18, 1
    %p99 = por %p97, %p98
    %p100 = scmp.ne.s32.totalorder %s91, %s92
    %p101 = scmp.eq.s32.totalorder %s18, 0
    %p102 = por %p100, %p101
    %p103 = scmp.ne.s32.totalorder %s91, %s92
    %p104 = scmp.eq.s32.totalorder %s19, 1
    %p105 = por %p103, %p104
    %p107 = scmp.ne.s32.totalorder %s92, %s106
    %p108 = scmp.eq.s32.totalorder %s19, 0
    %p109 = por %p107, %p108
    %s111 = sadd.s32 %s110, 1
    %p114 = scmp.eq.s32.totalorder %s13, 1
    %p115 = scmp.ne.s32.totalorder %s110, %s112
    %p116 = scmp.eq.s32.totalorder %s13, 0
    %p117 = por %p115, %p116
    %p118 = scmp.ne.s32.totalorder %s110, %s112
    %p119 = scmp.eq.s32.totalorder %s18, 1
    %p120 = por %p118, %p119
    %p121 = scmp.ne.s32.totalorder %s112, %s113
    %p122 = scmp.eq.s32.totalorder %s18, 0
    %p123 = por %p121, %p122
    %p124 = scmp.ne.s32.totalorder %s112, %s113
    %p125 = scmp.eq.s32.totalorder %s19, 1
    %p126 = por %p124, %p125
    %p128 = scmp.ne.s32.totalorder %s113, %s127
    %p129 = scmp.eq.s32.totalorder %s19, 0
    %p130 = por %p128, %p129
    %s131 = ssub.s32 %s13, %s20
    %p132 = scmp.eq.s32.totalorder %s131, 0
    %s134 = sadd.s32 %s133, 1
    %s135 = scalar_select %p132, %s133, %s134
    %p138 = pneg %p132
    %p139 = scmp.eq.s32.totalorder %s13, 1
    %p140 = por %p138, %p139
    %p141 = scmp.ne.s32.totalorder %s133, %s136
    %p142 = scmp.eq.s32.totalorder %s13, 0
    %p143 = por %p141, %p142
    %p144 = scmp.ne.s32.totalorder %s133, %s136
    %p145 = scmp.eq.s32.totalorder %s18, 1
    %p146 = por %p144, %p145
    %p147 = scmp.ne.s32.totalorder %s136, %s137
    %p148 = scmp.eq.s32.totalorder %s18, 0
    %p149 = por %p147, %p148
    %p150 = scmp.ne.s32.totalorder %s136, %s137
    %p151 = scmp.eq.s32.totalorder %s19, 1
    %p152 = por %p150, %p151
    %p154 = scmp.ne.s32.totalorder %s137, %s153
    %p155 = scmp.eq.s32.totalorder %s19, 0
    %p156 = por %p154, %p155
    %s157 = ssub.s32 %s13, %s20
    %p158 = scmp.eq.s32.totalorder %s157, 0
    %s160 = sadd.s32 %s159, 1
    %s161 = scalar_select %p158, %s159, %s160
    %p164 = pneg %p158
    %p165 = scmp.eq.s32.totalorder %s13, 1
    %p166 = por %p164, %p165
    %p167 = scmp.ne.s32.totalorder %s159, %s162
    %p168 = scmp.eq.s32.totalorder %s13, 0
    %p169 = por %p167, %p168
    %p170 = scmp.ne.s32.totalorder %s159, %s162
    %p171 = scmp.eq.s32.totalorder %s18, 1
    %p172 = por %p170, %p171
    %p173 = scmp.ne.s32.totalorder %s162, %s163
    %p174 = scmp.eq.s32.totalorder %s18, 0
    %p175 = por %p173, %p174
    %p176 = scmp.ne.s32.totalorder %s162, %s163
    %p177 = scmp.eq.s32.totalorder %s19, 1
    %p178 = por %p176, %p177
    %p180 = scmp.ne.s32.totalorder %s163, %s179
    %p181 = scmp.eq.s32.totalorder %s19, 0
    %p182 = por %p180, %p181
    %p183 = scmp.le.s32.totalorder 1, %s13
    %p184 = scmp.lt.s32.totalorder %s13, 3
    %p185 = pnand %p183, %p184
    %p186 = pneg %p185
    // Predicated region
    $region9: #{res_block_discriminator_forward.2} parent=5 // pred_check
      _
    $region10: #{res_block_discriminator_forward.2} parent=5 // pred_check_branch
      %188 = sbr.rel (%p185) target = $region12
    $region11: #{res_block_discriminator_forward.2} parent=5 // pred_region
      %s189 = ssub.s32 %s13, 1
      // Predicated region
      $region13: #{res_block_discriminator_forward.2} parent=11 // pred_check
        %p190 = pneg %p60
      $region14: #{res_block_discriminator_forward.2} parent=11 // pred_check_branch
        %192 = sbr.rel (%p190) target = $region16
      $region15: #{res_block_discriminator_forward.2} parent=11 // pred_region
        _
      $region16: #{res_block_discriminator_forward.2} parent=11 // pred_fallthru
        _
      // Predicated region
      $region17: #{res_block_discriminator_forward.2} parent=11 // pred_check
        %p193 = pneg %p81
      $region18: #{res_block_discriminator_forward.2} parent=11 // pred_check_branch
        %195 = sbr.rel (%p193) target = $region20
      $region19: #{res_block_discriminator_forward.2} parent=11 // pred_region
        _
      $region20: #{res_block_discriminator_forward.2} parent=11 // pred_fallthru
        _
      // Predicated region
      $region21: #{res_block_discriminator_forward.2} parent=11 // pred_check
        %p196 = pneg %p102
      $region22: #{res_block_discriminator_forward.2} parent=11 // pred_check_branch
        %198 = sbr.rel (%p196) target = $region24
      $region23: #{res_block_discriminator_forward.2} parent=11 // pred_region
        _
      $region24: #{res_block_discriminator_forward.2} parent=11 // pred_fallthru
        _
      // Predicated region
      $region25: #{res_block_discriminator_forward.2} parent=11 // pred_check
        %p199 = pneg %p123
      $region26: #{res_block_discriminator_forward.2} parent=11 // pred_check_branch
        %201 = sbr.rel (%p199) target = $region28
      $region27: #{res_block_discriminator_forward.2} parent=11 // pred_region
        _
      $region28: #{res_block_discriminator_forward.2} parent=11 // pred_fallthru
        _
    $region12: #{res_block_discriminator_forward.2} parent=5 // pred_fallthru
      _
    %p202 = scmp.lt.s32.totalorder %s13, 2
    // Predicated region
    $region29: #{res_block_discriminator_forward.2} parent=5 // pred_check
      %p203 = pneg %p202
    $region30: #{res_block_discriminator_forward.2} parent=5 // pred_check_branch
      %205 = sbr.rel (%p203) target = $region32
    $region31: #{res_block_discriminator_forward.2} parent=5 // pred_region
      // Predicated region
      $region33: #{res_block_discriminator_forward.2} parent=31 // pred_check
        %p206 = pneg %p33
      $region34: #{res_block_discriminator_forward.2} parent=31 // pred_check_branch
        %208 = sbr.rel (%p206) target = $region36
      $region35: #{res_block_discriminator_forward.2} parent=31 // pred_region
        %s209 = smul.u32 4, %s13
        %p210 = scmp.lt.s32.totalorder %s209, 7
        %s211 = scalar_select %p210, %s209, 7
        %s212 = smul.addr %s211, 18
        %s213 = smul.addr %s212, 8
        %s214 = scalar_lea.vmem %s0, %s213
        %s215 = smul.u32 4, %s13
      $region36: #{res_block_discriminator_forward.2} parent=31 // pred_fallthru
        _
    $region32: #{res_block_discriminator_forward.2} parent=5 // pred_fallthru
      _
    %p216 = scmp.le.s32.totalorder 1, %s13
    %p217 = scmp.lt.s32.totalorder %s13, 3
    %p218 = pnand %p216, %p217
    %p219 = pneg %p218
    // Predicated region
    $region37: #{res_block_discriminator_forward.2} parent=5 // pred_check
      _
    $region38: #{res_block_discriminator_forward.2} parent=5 // pred_check_branch
      %221 = sbr.rel (%p218) target = $region40
    $region39: #{res_block_discriminator_forward.2} parent=5 // pred_region
      %s222 = ssub.s32 %s13, 1
      %s223 = smul.u32 4, %s18
      %p224 = scmp.lt.s32.totalorder %s223, 7
      %s225 = scalar_select %p224, %s223, 7
      %s226 = smul.addr %s225, 18
      %s227 = smul.addr %s226, 8
      %s228 = scalar_lea.vmem %s0, %s227
      %p229 = pneg %p39
      %p230 = pneg %p36
      %p231 = pneg %p60
      %p232 = pneg %p57
      %p233 = pneg %p81
      %p234 = pneg %p78
      %p235 = pneg %p102
      %p236 = pneg %p99
      %p237 = pneg %p123
      %p238 = pneg %p120
      %p239 = pneg %p149
      %p240 = pneg %p146
      %p241 = scmp.lt.s32.totalorder %s18, 1
      %s242 = scalar_select %p241, %s18, 1
      %s243 = smul.addr %s242, 8
      %s244 = smul.addr %s243, 8
      %s245 = scalar_lea.vmem %s5, %s244
      %p246 = pneg %p175
      %p247 = pneg %p172
      %p248 = scmp.lt.s32.totalorder %s18, 1
      %s249 = scalar_select %p248, %s18, 1
      %s250 = smul.addr %s249, 8
      %s251 = smul.addr %s250, 8
      %s252 = scalar_lea.vmem %s6, %s251
      %s253 = smul.u32 4, %s18
      %p254 = scmp.lt.s32.totalorder %s253, 7
      %s255 = scalar_select %p254, %s253, 7
      %s256 = smul.addr %s255, 18
      %s257 = smul.addr %s256, 8
      %s258 = scalar_lea.vmem %s0, %s257
      %s259 = smul.u32 4, %s18
      %p260 = scmp.lt.s32.totalorder %s18, 1
      %s261 = scalar_select %p260, %s18, 1
      %s262 = smul.addr %s261, 8
      %s263 = smul.addr %s262, 8
      %s264 = scalar_lea.vmem %s5, %s263
      %p265 = scmp.lt.s32.totalorder %s18, 1
      %s266 = scalar_select %p265, %s18, 1
      %s267 = smul.addr %s266, 8
      %s268 = smul.addr %s267, 8
      %s269 = scalar_lea.vmem %s6, %s268
      %v270 = vld [vmem:[%s258] sm:$0xff]
      %v271 = vld [vmem:[%s258 + $0x10] sm:$0xff]
      %v272 = vld [vmem:[%s258 + $0x20] sm:$0xff]
      %v273 = vld [vmem:[%s258 + $0x30] sm:$0xff]
      %v274 = vld [vmem:[%s258 + $0x40] sm:$0xff]
      %v275 = vld [vmem:[%s258 + $0x50] sm:$0xff]
      %v276 = vld [vmem:[%s258 + $0x60] sm:$0xff]
      %v277 = vld [vmem:[%s258 + $0x70] sm:$0xff]
      %v278 = vmax.f32 %v270, 0.0
      %v279 = vmax.f32 %v271, 0.0
      %v280 = vmax.f32 %v272, 0.0
      %v281 = vmax.f32 %v273, 0.0
      %v282 = vmax.f32 %v274, 0.0
      %v283 = vmax.f32 %v275, 0.0
      %v284 = vmax.f32 %v276, 0.0
      %v285 = vmax.f32 %v277, 0.0
      %v286 = vld [vmem:[%s1] sm:$0xf]
      %v287 = vld [vmem:[%s3] sm:$0xf]
      %s288 = scalar_lea.vmem %s258, 144
      %v289 = vld [vmem:[%s288] sm:$0xff]
      %v290 = vld [vmem:[%s288 + $0x10] sm:$0xff]
      %v291 = vld [vmem:[%s288 + $0x20] sm:$0xff]
      %v292 = vld [vmem:[%s288 + $0x30] sm:$0xff]
      %v293 = vld [vmem:[%s288 + $0x40] sm:$0xff]
      %v294 = vld [vmem:[%s288 + $0x50] sm:$0xff]
      %v295 = vld [vmem:[%s288 + $0x60] sm:$0xff]
      %v296 = vld [vmem:[%s288 + $0x70] sm:$0xff]
      %v297 = vmax.f32 %v289, 0.0
      %v298 = vmax.f32 %v290, 0.0
      %v299 = vmax.f32 %v291, 0.0
      %v300 = vmax.f32 %v292, 0.0
      %v301 = vmax.f32 %v293, 0.0
      %v302 = vmax.f32 %v294, 0.0
      %v303 = vmax.f32 %v295, 0.0
      %v304 = vmax.f32 %v296, 0.0
      %s305 = scalar_lea.vmem %s1, 4
      %v306 = vld [vmem:[%s305] sm:$0xf]
      %vm307 = vcmask 31744
      %v309 = vsel %vm307, %v297, 0
      %v312 = vsel %vm307, %v298, 0
      %v315 = vsel %vm307, %v299, 0
      %v318 = vsel %vm307, %v300, 0
      %v321 = vsel %vm307, %v301, 0
      %v324 = vsel %vm307, %v302, 0
      %v327 = vsel %vm307, %v303, 0
      %v330 = vsel %vm307, %v304, 0
      %vm332 = vcmask 1043456
      %v334 = vsel %vm332, %v306, 0
      %336 = vmatpush.msra.mxu0 0.0
      %337 = vmatpush.msra.mxu0 0.0
      %338 = vmatpush.msra.mxu0 0.0
      %339 = vmatpush.msra.mxu0 0.0
      %340 = vmatpush.msra.mxu0 0.0
      %341 = vmatpush.msra.mxu0 0.0
      %342 = vmatpush.msra.mxu0 0.0
      %343 = vmatpush.msra.mxu0 0.0
      %344 = vmatpush.msra.mxu0 0.0
      %345 = vmatpush.msra.mxu0 0.0
      %346 = vmatpush.msra.mxu0 0.0
      %347 = vmatpush.msra.mxu0 0.0
      %348 = vmatpush.msra.mxu0 0.0
      %349 = vmatpush.msra.mxu0 0.0
      %350 = vmatpush.msra.mxu0 0.0
      %351 = vmatpush.msra.mxu0 %v334
      %352 = vmatmul.f32.gmra.mxu0 %v309
      %v353 = vpop.f32.mrf.mxu0
      %v354 = vadd.f32 0.0, %v353
      %355 = vmatmul.f32.gmra.mxu0 %v312
      %v356 = vpop.f32.mrf.mxu0
      %v357 = vadd.f32 0.0, %v356
      %358 = vmatmul.f32.gmra.mxu0 %v315
      %v359 = vpop.f32.mrf.mxu0
      %v360 = vadd.f32 0.0, %v359
      %361 = vmatmul.f32.gmra.mxu0 %v318
      %v362 = vpop.f32.mrf.mxu0
      %v363 = vadd.f32 0.0, %v362
      %364 = vmatmul.f32.gmra.mxu0 %v321
      %v365 = vpop.f32.mrf.mxu0
      %v366 = vadd.f32 0.0, %v365
      %367 = vmatmul.f32.gmra.mxu0 %v324
      %v368 = vpop.f32.mrf.mxu0
      %v369 = vadd.f32 0.0, %v368
      %370 = vmatmul.f32.gmra.mxu0 %v327
      %v371 = vpop.f32.mrf.mxu0
      %v372 = vadd.f32 0.0, %v371
      %373 = vmatmul.f32.gmra.mxu0 %v330
      %v374 = vpop.f32.mrf.mxu0
      %v375 = vadd.f32 0.0, %v374
      %376 = vdwg.mxu0
      %v378 = vsel %vm307, %v278, 0
      %v381 = vsel %vm307, %v279, 0
      %v384 = vsel %vm307, %v280, 0
      %v387 = vsel %vm307, %v281, 0
      %v390 = vsel %vm307, %v282, 0
      %v393 = vsel %vm307, %v283, 0
      %v396 = vsel %vm307, %v284, 0
      %v399 = vsel %vm307, %v285, 0
      %v402 = vsel %vm332, %v286, 0
      %404 = vmatpush.msra.mxu0 0.0
      %405 = vmatpush.msra.mxu0 0.0
      %406 = vmatpush.msra.mxu0 0.0
      %407 = vmatpush.msra.mxu0 0.0
      %408 = vmatpush.msra.mxu0 0.0
      %409 = vmatpush.msra.mxu0 0.0
      %410 = vmatpush.msra.mxu0 0.0
      %411 = vmatpush.msra.mxu0 0.0
      %412 = vmatpush.msra.mxu0 0.0
      %413 = vmatpush.msra.mxu0 0.0
      %414 = vmatpush.msra.mxu0 0.0
      %415 = vmatpush.msra.mxu0 0.0
      %416 = vmatpush.msra.mxu0 0.0
      %417 = vmatpush.msra.mxu0 0.0
      %418 = vmatpush.msra.mxu0 0.0
      %419 = vmatpush.msra.mxu0 %v402
      %420 = vmatmul.f32.gmra.mxu0 %v378
      %v421 = vpop.f32.mrf.mxu0
      %v422 = vadd.f32 %v354, %v421
      %423 = vmatmul.f32.gmra.mxu0 %v381
      %v424 = vpop.f32.mrf.mxu0
      %v425 = vadd.f32 %v357, %v424
      %426 = vmatmul.f32.gmra.mxu0 %v384
      %v427 = vpop.f32.mrf.mxu0
      %v428 = vadd.f32 %v360, %v427
      %429 = vmatmul.f32.gmra.mxu0 %v387
      %v430 = vpop.f32.mrf.mxu0
      %v431 = vadd.f32 %v363, %v430
      %432 = vmatmul.f32.gmra.mxu0 %v390
      %v433 = vpop.f32.mrf.mxu0
      %v434 = vadd.f32 %v366, %v433
      %435 = vmatmul.f32.gmra.mxu0 %v393
      %v436 = vpop.f32.mrf.mxu0
      %v437 = vadd.f32 %v369, %v436
      %438 = vmatmul.f32.gmra.mxu0 %v396
      %v439 = vpop.f32.mrf.mxu0
      %v440 = vadd.f32 %v372, %v439
      %441 = vmatmul.f32.gmra.mxu0 %v399
      %v442 = vpop.f32.mrf.mxu0
      %v443 = vadd.f32 %v375, %v442
      %444 = vdwg.mxu0
      %s445 = scalar_lea.vmem %s3, 4
      %v446 = vld [vmem:[%s445] sm:$0xf]
      %v448 = vsel %vm307, %v289, 0
      %v451 = vsel %vm307, %v290, 0
      %v454 = vsel %vm307, %v291, 0
      %v457 = vsel %vm307, %v292, 0
      %v460 = vsel %vm307, %v293, 0
      %v463 = vsel %vm307, %v294, 0
      %v466 = vsel %vm307, %v295, 0
      %v469 = vsel %vm307, %v296, 0
      %v472 = vsel %vm332, %v446, 0
      %474 = vmatpush.msra.mxu0 0.0
      %475 = vmatpush.msra.mxu0 0.0
      %476 = vmatpush.msra.mxu0 0.0
      %477 = vmatpush.msra.mxu0 0.0
      %478 = vmatpush.msra.mxu0 0.0
      %479 = vmatpush.msra.mxu0 0.0
      %480 = vmatpush.msra.mxu0 0.0
      %481 = vmatpush.msra.mxu0 0.0
      %482 = vmatpush.msra.mxu0 0.0
      %483 = vmatpush.msra.mxu0 0.0
      %484 = vmatpush.msra.mxu0 0.0
      %485 = vmatpush.msra.mxu0 0.0
      %486 = vmatpush.msra.mxu0 0.0
      %487 = vmatpush.msra.mxu0 0.0
      %488 = vmatpush.msra.mxu0 0.0
      %489 = vmatpush.msra.mxu0 %v472
      %490 = vmatmul.f32.gmra.mxu0 %v448
      %v491 = vpop.f32.mrf.mxu0
      %v492 = vadd.f32 0.0, %v491
      %493 = vmatmul.f32.gmra.mxu0 %v451
      %v494 = vpop.f32.mrf.mxu0
      %v495 = vadd.f32 0.0, %v494
      %496 = vmatmul.f32.gmra.mxu0 %v454
      %v497 = vpop.f32.mrf.mxu0
      %v498 = vadd.f32 0.0, %v497
      %499 = vmatmul.f32.gmra.mxu0 %v457
      %v500 = vpop.f32.mrf.mxu0
      %v501 = vadd.f32 0.0, %v500
      %502 = vmatmul.f32.gmra.mxu0 %v460
      %v503 = vpop.f32.mrf.mxu0
      %v504 = vadd.f32 0.0, %v503
      %505 = vmatmul.f32.gmra.mxu0 %v463
      %v506 = vpop.f32.mrf.mxu0
      %v507 = vadd.f32 0.0, %v506
      %508 = vmatmul.f32.gmra.mxu0 %v466
      %v509 = vpop.f32.mrf.mxu0
      %v510 = vadd.f32 0.0, %v509
      %511 = vmatmul.f32.gmra.mxu0 %v469
      %v512 = vpop.f32.mrf.mxu0
      %v513 = vadd.f32 0.0, %v512
      %514 = vdwg.mxu0
      %v516 = vsel %vm307, %v270, 0
      %v519 = vsel %vm307, %v271, 0
      %v522 = vsel %vm307, %v272, 0
      %v525 = vsel %vm307, %v273, 0
      %v528 = vsel %vm307, %v274, 0
      %v531 = vsel %vm307, %v275, 0
      %v534 = vsel %vm307, %v276, 0
      %v537 = vsel %vm307, %v277, 0
      %v540 = vsel %vm332, %v287, 0
      %542 = vmatpush.msra.mxu0 0.0
      %543 = vmatpush.msra.mxu0 0.0
      %544 = vmatpush.msra.mxu0 0.0
      %545 = vmatpush.msra.mxu0 0.0
      %546 = vmatpush.msra.mxu0 0.0
      %547 = vmatpush.msra.mxu0 0.0
      %548 = vmatpush.msra.mxu0 0.0
      %549 = vmatpush.msra.mxu0 0.0
      %550 = vmatpush.msra.mxu0 0.0
      %551 = vmatpush.msra.mxu0 0.0
      %552 = vmatpush.msra.mxu0 0.0
      %553 = vmatpush.msra.mxu0 0.0
      %554 = vmatpush.msra.mxu0 0.0
      %555 = vmatpush.msra.mxu0 0.0
      %556 = vmatpush.msra.mxu0 0.0
      %557 = vmatpush.msra.mxu0 %v540
      %558 = vmatmul.f32.gmra.mxu0 %v516
      %v559 = vpop.f32.mrf.mxu0
      %v560 = vadd.f32 %v492, %v559
      %561 = vmatmul.f32.gmra.mxu0 %v519
      %v562 = vpop.f32.mrf.mxu0
      %v563 = vadd.f32 %v495, %v562
      %564 = vmatmul.f32.gmra.mxu0 %v522
      %v565 = vpop.f32.mrf.mxu0
      %v566 = vadd.f32 %v498, %v565
      %567 = vmatmul.f32.gmra.mxu0 %v525
      %v568 = vpop.f32.mrf.mxu0
      %v569 = vadd.f32 %v501, %v568
      %570 = vmatmul.f32.gmra.mxu0 %v528
      %v571 = vpop.f32.mrf.mxu0
      %v572 = vadd.f32 %v504, %v571
      %573 = vmatmul.f32.gmra.mxu0 %v531
      %v574 = vpop.f32.mrf.mxu0
      %v575 = vadd.f32 %v507, %v574
      %576 = vmatmul.f32.gmra.mxu0 %v534
      %v577 = vpop.f32.mrf.mxu0
      %v578 = vadd.f32 %v510, %v577
      %579 = vmatmul.f32.gmra.mxu0 %v537
      %v580 = vpop.f32.mrf.mxu0
      %v581 = vadd.f32 %v513, %v580
      %582 = vdwg.mxu0
      %v583 = vld [vmem:[%s258 + $0x1] sm:$0xff]
      %v584 = vld [vmem:[%s258 + $0x11] sm:$0xff]
      %v585 = vld [vmem:[%s258 + $0x21] sm:$0xff]
      %v586 = vld [vmem:[%s258 + $0x31] sm:$0xff]
      %v587 = vld [vmem:[%s258 + $0x41] sm:$0xff]
      %v588 = vld [vmem:[%s258 + $0x51] sm:$0xff]
      %v589 = vld [vmem:[%s258 + $0x61] sm:$0xff]
      %v590 = vld [vmem:[%s258 + $0x71] sm:$0xff]
      %v591 = vmax.f32 %v583, 0.0
      %v592 = vmax.f32 %v584, 0.0
      %v593 = vmax.f32 %v585, 0.0
      %v594 = vmax.f32 %v586, 0.0
      %v595 = vmax.f32 %v587, 0.0
      %v596 = vmax.f32 %v588, 0.0
      %v597 = vmax.f32 %v589, 0.0
      %v598 = vmax.f32 %v590, 0.0
      %s599 = scalar_lea.vmem %s1, 8
      %v600 = vld [vmem:[%s599] sm:$0xf]
      %v602 = vsel %vm307, %v591, 0
      %v605 = vsel %vm307, %v592, 0
      %v608 = vsel %vm307, %v593, 0
      %v611 = vsel %vm307, %v594, 0
      %v614 = vsel %vm307, %v595, 0
      %v617 = vsel %vm307, %v596, 0
      %v620 = vsel %vm307, %v597, 0
      %v623 = vsel %vm307, %v598, 0
      %v626 = vsel %vm332, %v600, 0
      %628 = vmatpush.msra.mxu0 0.0
      %629 = vmatpush.msra.mxu0 0.0
      %630 = vmatpush.msra.mxu0 0.0
      %631 = vmatpush.msra.mxu0 0.0
      %632 = vmatpush.msra.mxu0 0.0
      %633 = vmatpush.msra.mxu0 0.0
      %634 = vmatpush.msra.mxu0 0.0
      %635 = vmatpush.msra.mxu0 0.0
      %636 = vmatpush.msra.mxu0 0.0
      %637 = vmatpush.msra.mxu0 0.0
      %638 = vmatpush.msra.mxu0 0.0
      %639 = vmatpush.msra.mxu0 0.0
      %640 = vmatpush.msra.mxu0 0.0
      %641 = vmatpush.msra.mxu0 0.0
      %642 = vmatpush.msra.mxu0 0.0
      %643 = vmatpush.msra.mxu0 %v626
      %644 = vmatmul.f32.gmra.mxu0 %v602
      %v645 = vpop.f32.mrf.mxu0
      %v646 = vadd.f32 0.0, %v645
      %647 = vmatmul.f32.gmra.mxu0 %v605
      %v648 = vpop.f32.mrf.mxu0
      %v649 = vadd.f32 0.0, %v648
      %650 = vmatmul.f32.gmra.mxu0 %v608
      %v651 = vpop.f32.mrf.mxu0
      %v652 = vadd.f32 0.0, %v651
      %653 = vmatmul.f32.gmra.mxu0 %v611
      %v654 = vpop.f32.mrf.mxu0
      %v655 = vadd.f32 0.0, %v654
      %656 = vmatmul.f32.gmra.mxu0 %v614
      %v657 = vpop.f32.mrf.mxu0
      %v658 = vadd.f32 0.0, %v657
      %659 = vmatmul.f32.gmra.mxu0 %v617
      %v660 = vpop.f32.mrf.mxu0
      %v661 = vadd.f32 0.0, %v660
      %662 = vmatmul.f32.gmra.mxu0 %v620
      %v663 = vpop.f32.mrf.mxu0
      %v664 = vadd.f32 0.0, %v663
      %665 = vmatmul.f32.gmra.mxu0 %v623
      %v666 = vpop.f32.mrf.mxu0
      %v667 = vadd.f32 0.0, %v666
      %668 = vdwg.mxu0
      %v669 = vadd.f32 %v422, %v646
      %v670 = vadd.f32 %v425, %v649
      %v671 = vadd.f32 %v428, %v652
      %v672 = vadd.f32 %v431, %v655
      %v673 = vadd.f32 %v434, %v658
      %v674 = vadd.f32 %v437, %v661
      %v675 = vadd.f32 %v440, %v664
      %v676 = vadd.f32 %v443, %v667
      %s677 = scalar_lea.vmem %s3, 8
      %v678 = vld [vmem:[%s677] sm:$0xf]
      %v680 = vsel %vm307, %v583, 0
      %v683 = vsel %vm307, %v584, 0
      %v686 = vsel %vm307, %v585, 0
      %v689 = vsel %vm307, %v586, 0
      %v692 = vsel %vm307, %v587, 0
      %v695 = vsel %vm307, %v588, 0
      %v698 = vsel %vm307, %v589, 0
      %v701 = vsel %vm307, %v590, 0
      %v704 = vsel %vm332, %v678, 0
      %706 = vmatpush.msra.mxu0 0.0
      %707 = vmatpush.msra.mxu0 0.0
      %708 = vmatpush.msra.mxu0 0.0
      %709 = vmatpush.msra.mxu0 0.0
      %710 = vmatpush.msra.mxu0 0.0
      %711 = vmatpush.msra.mxu0 0.0
      %712 = vmatpush.msra.mxu0 0.0
      %713 = vmatpush.msra.mxu0 0.0
      %714 = vmatpush.msra.mxu0 0.0
      %715 = vmatpush.msra.mxu0 0.0
      %716 = vmatpush.msra.mxu0 0.0
      %717 = vmatpush.msra.mxu0 0.0
      %718 = vmatpush.msra.mxu0 0.0
      %719 = vmatpush.msra.mxu0 0.0
      %720 = vmatpush.msra.mxu0 0.0
      %721 = vmatpush.msra.mxu0 %v704
      %722 = vmatmul.f32.gmra.mxu0 %v680
      %v723 = vpop.f32.mrf.mxu0
      %v724 = vadd.f32 0.0, %v723
      %725 = vmatmul.f32.gmra.mxu0 %v683
      %v726 = vpop.f32.mrf.mxu0
      %v727 = vadd.f32 0.0, %v726
      %728 = vmatmul.f32.gmra.mxu0 %v686
      %v729 = vpop.f32.mrf.mxu0
      %v730 = vadd.f32 0.0, %v729
      %731 = vmatmul.f32.gmra.mxu0 %v689
      %v732 = vpop.f32.mrf.mxu0
      %v733 = vadd.f32 0.0, %v732
      %734 = vmatmul.f32.gmra.mxu0 %v692
      %v735 = vpop.f32.mrf.mxu0
      %v736 = vadd.f32 0.0, %v735
      %737 = vmatmul.f32.gmra.mxu0 %v695
      %v738 = vpop.f32.mrf.mxu0
      %v739 = vadd.f32 0.0, %v738
      %740 = vmatmul.f32.gmra.mxu0 %v698
      %v741 = vpop.f32.mrf.mxu0
      %v742 = vadd.f32 0.0, %v741
      %743 = vmatmul.f32.gmra.mxu0 %v701
      %v744 = vpop.f32.mrf.mxu0
      %v745 = vadd.f32 0.0, %v744
      %746 = vdwg.mxu0
      %v747 = vadd.f32 %v560, %v724
      %v748 = vadd.f32 %v563, %v727
      %v749 = vadd.f32 %v566, %v730
      %v750 = vadd.f32 %v569, %v733
      %v751 = vadd.f32 %v572, %v736
      %v752 = vadd.f32 %v575, %v739
      %v753 = vadd.f32 %v578, %v742
      %v754 = vadd.f32 %v581, %v745
      %s755 = scalar_lea.vmem %s258, 288
      %v756 = vld [vmem:[%s755] sm:$0xff]
      %v757 = vld [vmem:[%s755 + $0x10] sm:$0xff]
      %v758 = vld [vmem:[%s755 + $0x20] sm:$0xff]
      %v759 = vld [vmem:[%s755 + $0x30] sm:$0xff]
      %v760 = vld [vmem:[%s755 + $0x40] sm:$0xff]
      %v761 = vld [vmem:[%s755 + $0x50] sm:$0xff]
      %v762 = vld [vmem:[%s755 + $0x60] sm:$0xff]
      %v763 = vld [vmem:[%s755 + $0x70] sm:$0xff]
      %v764 = vmax.f32 %v756, 0.0
      %v765 = vmax.f32 %v757, 0.0
      %v766 = vmax.f32 %v758, 0.0
      %v767 = vmax.f32 %v759, 0.0
      %v768 = vmax.f32 %v760, 0.0
      %v769 = vmax.f32 %v761, 0.0
      %v770 = vmax.f32 %v762, 0.0
      %v771 = vmax.f32 %v763, 0.0
      %s772 = scalar_lea.vmem %s1, 12
      %v773 = vld [vmem:[%s772] sm:$0xf]
      %v775 = vsel %vm307, %v764, 0
      %v778 = vsel %vm307, %v765, 0
      %v781 = vsel %vm307, %v766, 0
      %v784 = vsel %vm307, %v767, 0
      %v787 = vsel %vm307, %v768, 0
      %v790 = vsel %vm307, %v769, 0
      %v793 = vsel %vm307, %v770, 0
      %v796 = vsel %vm307, %v771, 0
      %v799 = vsel %vm332, %v773, 0
      %801 = vmatpush.msra.mxu0 0.0
      %802 = vmatpush.msra.mxu0 0.0
      %803 = vmatpush.msra.mxu0 0.0
      %804 = vmatpush.msra.mxu0 0.0
      %805 = vmatpush.msra.mxu0 0.0
      %806 = vmatpush.msra.mxu0 0.0
      %807 = vmatpush.msra.mxu0 0.0
      %808 = vmatpush.msra.mxu0 0.0
      %809 = vmatpush.msra.mxu0 0.0
      %810 = vmatpush.msra.mxu0 0.0
      %811 = vmatpush.msra.mxu0 0.0
      %812 = vmatpush.msra.mxu0 0.0
      %813 = vmatpush.msra.mxu0 0.0
      %814 = vmatpush.msra.mxu0 0.0
      %815 = vmatpush.msra.mxu0 0.0
      %816 = vmatpush.msra.mxu0 %v799
      %817 = vmatmul.f32.gmra.mxu0 %v775
      %v818 = vpop.f32.mrf.mxu0
      %v819 = vadd.f32 0.0, %v818
      %820 = vmatmul.f32.gmra.mxu0 %v778
      %v821 = vpop.f32.mrf.mxu0
      %v822 = vadd.f32 0.0, %v821
      %823 = vmatmul.f32.gmra.mxu0 %v781
      %v824 = vpop.f32.mrf.mxu0
      %v825 = vadd.f32 0.0, %v824
      %826 = vmatmul.f32.gmra.mxu0 %v784
      %v827 = vpop.f32.mrf.mxu0
      %v828 = vadd.f32 0.0, %v827
      %829 = vmatmul.f32.gmra.mxu0 %v787
      %v830 = vpop.f32.mrf.mxu0
      %v831 = vadd.f32 0.0, %v830
      %832 = vmatmul.f32.gmra.mxu0 %v790
      %v833 = vpop.f32.mrf.mxu0
      %v834 = vadd.f32 0.0, %v833
      %835 = vmatmul.f32.gmra.mxu0 %v793
      %v836 = vpop.f32.mrf.mxu0
      %v837 = vadd.f32 0.0, %v836
      %838 = vmatmul.f32.gmra.mxu0 %v796
      %v839 = vpop.f32.mrf.mxu0
      %v840 = vadd.f32 0.0, %v839
      %841 = vdwg.mxu0
      %v842 = vadd.f32 %v669, %v819
      %v843 = vadd.f32 %v670, %v822
      %v844 = vadd.f32 %v671, %v825
      %v845 = vadd.f32 %v672, %v828
      %v846 = vadd.f32 %v673, %v831
      %v847 = vadd.f32 %v674, %v834
      %v848 = vadd.f32 %v675, %v837
      %v849 = vadd.f32 %v676, %v840
      %s850 = scalar_lea.vmem %s3, 12
      %v851 = vld [vmem:[%s850] sm:$0xf]
      %v853 = vsel %vm307, %v756, 0
      %v856 = vsel %vm307, %v757, 0
      %v859 = vsel %vm307, %v758, 0
      %v862 = vsel %vm307, %v759, 0
      %v865 = vsel %vm307, %v760, 0
      %v868 = vsel %vm307, %v761, 0
      %v871 = vsel %vm307, %v762, 0
      %v874 = vsel %vm307, %v763, 0
      %v877 = vsel %vm332, %v851, 0
      %879 = vmatpush.msra.mxu0 0.0
      %880 = vmatpush.msra.mxu0 0.0
      %881 = vmatpush.msra.mxu0 0.0
      %882 = vmatpush.msra.mxu0 0.0
      %883 = vmatpush.msra.mxu0 0.0
      %884 = vmatpush.msra.mxu0 0.0
      %885 = vmatpush.msra.mxu0 0.0
      %886 = vmatpush.msra.mxu0 0.0
      %887 = vmatpush.msra.mxu0 0.0
      %888 = vmatpush.msra.mxu0 0.0
      %889 = vmatpush.msra.mxu0 0.0
      %890 = vmatpush.msra.mxu0 0.0
      %891 = vmatpush.msra.mxu0 0.0
      %892 = vmatpush.msra.mxu0 0.0
      %893 = vmatpush.msra.mxu0 0.0
      %894 = vmatpush.msra.mxu0 %v877
      %895 = vmatmul.f32.gmra.mxu0 %v853
      %v896 = vpop.f32.mrf.mxu0
      %v897 = vadd.f32 0.0, %v896
      %898 = vmatmul.f32.gmra.mxu0 %v856
      %v899 = vpop.f32.mrf.mxu0
      %v900 = vadd.f32 0.0, %v899
      %901 = vmatmul.f32.gmra.mxu0 %v859
      %v902 = vpop.f32.mrf.mxu0
      %v903 = vadd.f32 0.0, %v902
      %904 = vmatmul.f32.gmra.mxu0 %v862
      %v905 = vpop.f32.mrf.mxu0
      %v906 = vadd.f32 0.0, %v905
      %907 = vmatmul.f32.gmra.mxu0 %v865
      %v908 = vpop.f32.mrf.mxu0
      %v909 = vadd.f32 0.0, %v908
      %910 = vmatmul.f32.gmra.mxu0 %v868
      %v911 = vpop.f32.mrf.mxu0
      %v912 = vadd.f32 0.0, %v911
      %913 = vmatmul.f32.gmra.mxu0 %v871
      %v914 = vpop.f32.mrf.mxu0
      %v915 = vadd.f32 0.0, %v914
      %916 = vmatmul.f32.gmra.mxu0 %v874
      %v917 = vpop.f32.mrf.mxu0
      %v918 = vadd.f32 0.0, %v917
      %919 = vdwg.mxu0
      %v920 = vadd.f32 %v747, %v897
      %v921 = vadd.f32 %v748, %v900
      %v922 = vadd.f32 %v749, %v903
      %v923 = vadd.f32 %v750, %v906
      %v924 = vadd.f32 %v751, %v909
      %v925 = vadd.f32 %v752, %v912
      %v926 = vadd.f32 %v753, %v915
      %v927 = vadd.f32 %v754, %v918
      %s928 = scalar_lea.vmem %s258, 432
      %v929 = vld [vmem:[%s928] sm:$0xff]
      %v930 = vld [vmem:[%s928 + $0x10] sm:$0xff]
      %v931 = vld [vmem:[%s928 + $0x20] sm:$0xff]
      %v932 = vld [vmem:[%s928 + $0x30] sm:$0xff]
      %v933 = vld [vmem:[%s928 + $0x40] sm:$0xff]
      %v934 = vld [vmem:[%s928 + $0x50] sm:$0xff]
      %v935 = vld [vmem:[%s928 + $0x60] sm:$0xff]
      %v936 = vld [vmem:[%s928 + $0x70] sm:$0xff]
      %v937 = vmax.f32 %v929, 0.0
      %v938 = vmax.f32 %v930, 0.0
      %v939 = vmax.f32 %v931, 0.0
      %v940 = vmax.f32 %v932, 0.0
      %v941 = vmax.f32 %v933, 0.0
      %v942 = vmax.f32 %v934, 0.0
      %v943 = vmax.f32 %v935, 0.0
      %v944 = vmax.f32 %v936, 0.0
      %s945 = scalar_lea.vmem %s1, 16
      %v946 = vld [vmem:[%s945] sm:$0xf]
      %v948 = vsel %vm307, %v937, 0
      %v951 = vsel %vm307, %v938, 0
      %v954 = vsel %vm307, %v939, 0
      %v957 = vsel %vm307, %v940, 0
      %v960 = vsel %vm307, %v941, 0
      %v963 = vsel %vm307, %v942, 0
      %v966 = vsel %vm307, %v943, 0
      %v969 = vsel %vm307, %v944, 0
      %v972 = vsel %vm332, %v946, 0
      %974 = vmatpush.msra.mxu0 0.0
      %975 = vmatpush.msra.mxu0 0.0
      %976 = vmatpush.msra.mxu0 0.0
      %977 = vmatpush.msra.mxu0 0.0
      %978 = vmatpush.msra.mxu0 0.0
      %979 = vmatpush.msra.mxu0 0.0
      %980 = vmatpush.msra.mxu0 0.0
      %981 = vmatpush.msra.mxu0 0.0
      %982 = vmatpush.msra.mxu0 0.0
      %983 = vmatpush.msra.mxu0 0.0
      %984 = vmatpush.msra.mxu0 0.0
      %985 = vmatpush.msra.mxu0 0.0
      %986 = vmatpush.msra.mxu0 0.0
      %987 = vmatpush.msra.mxu0 0.0
      %988 = vmatpush.msra.mxu0 0.0
      %989 = vmatpush.msra.mxu0 %v972
      %990 = vmatmul.f32.gmra.mxu0 %v948
      %v991 = vpop.f32.mrf.mxu0
      %v992 = vadd.f32 0.0, %v991
      %993 = vmatmul.f32.gmra.mxu0 %v951
      %v994 = vpop.f32.mrf.mxu0
      %v995 = vadd.f32 0.0, %v994
      %996 = vmatmul.f32.gmra.mxu0 %v954
      %v997 = vpop.f32.mrf.mxu0
      %v998 = vadd.f32 0.0, %v997
      %999 = vmatmul.f32.gmra.mxu0 %v957
      %v1000 = vpop.f32.mrf.mxu0
      %v1001 = vadd.f32 0.0, %v1000
      %1002 = vmatmul.f32.gmra.mxu0 %v960
      %v1003 = vpop.f32.mrf.mxu0
      %v1004 = vadd.f32 0.0, %v1003
      %1005 = vmatmul.f32.gmra.mxu0 %v963
      %v1006 = vpop.f32.mrf.mxu0
      %v1007 = vadd.f32 0.0, %v1006
      %1008 = vmatmul.f32.gmra.mxu0 %v966
      %v1009 = vpop.f32.mrf.mxu0
      %v1010 = vadd.f32 0.0, %v1009
      %1011 = vmatmul.f32.gmra.mxu0 %v969
      %v1012 = vpop.f32.mrf.mxu0
      %v1013 = vadd.f32 0.0, %v1012
      %1014 = vdwg.mxu0
      %v1015 = vadd.f32 %v842, %v992
      %v1016 = vadd.f32 %v843, %v995
      %v1017 = vadd.f32 %v844, %v998
      %v1018 = vadd.f32 %v845, %v1001
      %v1019 = vadd.f32 %v846, %v1004
      %v1020 = vadd.f32 %v847, %v1007
      %v1021 = vadd.f32 %v848, %v1010
      %v1022 = vadd.f32 %v849, %v1013
      %s1023 = scalar_lea.vmem %s3, 16
      %v1024 = vld [vmem:[%s1023] sm:$0xf]
      %v1026 = vsel %vm307, %v929, 0
      %v1029 = vsel %vm307, %v930, 0
      %v1032 = vsel %vm307, %v931, 0
      %v1035 = vsel %vm307, %v932, 0
      %v1038 = vsel %vm307, %v933, 0
      %v1041 = vsel %vm307, %v934, 0
      %v1044 = vsel %vm307, %v935, 0
      %v1047 = vsel %vm307, %v936, 0
      %v1050 = vsel %vm332, %v1024, 0
      %1052 = vmatpush.msra.mxu0 0.0
      %1053 = vmatpush.msra.mxu0 0.0
      %1054 = vmatpush.msra.mxu0 0.0
      %1055 = vmatpush.msra.mxu0 0.0
      %1056 = vmatpush.msra.mxu0 0.0
      %1057 = vmatpush.msra.mxu0 0.0
      %1058 = vmatpush.msra.mxu0 0.0
      %1059 = vmatpush.msra.mxu0 0.0
      %1060 = vmatpush.msra.mxu0 0.0
      %1061 = vmatpush.msra.mxu0 0.0
      %1062 = vmatpush.msra.mxu0 0.0
      %1063 = vmatpush.msra.mxu0 0.0
      %1064 = vmatpush.msra.mxu0 0.0
      %1065 = vmatpush.msra.mxu0 0.0
      %1066 = vmatpush.msra.mxu0 0.0
      %1067 = vmatpush.msra.mxu0 %v1050
      %1068 = vmatmul.f32.gmra.mxu0 %v1026
      %v1069 = vpop.f32.mrf.mxu0
      %v1070 = vadd.f32 0.0, %v1069
      %1071 = vmatmul.f32.gmra.mxu0 %v1029
      %v1072 = vpop.f32.mrf.mxu0
      %v1073 = vadd.f32 0.0, %v1072
      %1074 = vmatmul.f32.gmra.mxu0 %v1032
      %v1075 = vpop.f32.mrf.mxu0
      %v1076 = vadd.f32 0.0, %v1075
      %1077 = vmatmul.f32.gmra.mxu0 %v1035
      %v1078 = vpop.f32.mrf.mxu0
      %v1079 = vadd.f32 0.0, %v1078
      %1080 = vmatmul.f32.gmra.mxu0 %v1038
      %v1081 = vpop.f32.mrf.mxu0
      %v1082 = vadd.f32 0.0, %v1081
      %1083 = vmatmul.f32.gmra.mxu0 %v1041
      %v1084 = vpop.f32.mrf.mxu0
      %v1085 = vadd.f32 0.0, %v1084
      %1086 = vmatmul.f32.gmra.mxu0 %v1044
      %v1087 = vpop.f32.mrf.mxu0
      %v1088 = vadd.f32 0.0, %v1087
      %1089 = vmatmul.f32.gmra.mxu0 %v1047
      %v1090 = vpop.f32.mrf.mxu0
      %v1091 = vadd.f32 0.0, %v1090
      %1092 = vdwg.mxu0
      %v1093 = vadd.f32 %v920, %v1070
      %v1094 = vadd.f32 %v921, %v1073
      %v1095 = vadd.f32 %v922, %v1076
      %v1096 = vadd.f32 %v923, %v1079
      %v1097 = vadd.f32 %v924, %v1082
      %v1098 = vadd.f32 %v925, %v1085
      %v1099 = vadd.f32 %v926, %v1088
      %v1100 = vadd.f32 %v927, %v1091
      %v1101 = vld [vmem:[%s755 + $0x1] sm:$0xff]
      %v1102 = vld [vmem:[%s755 + $0x11] sm:$0xff]
      %v1103 = vld [vmem:[%s755 + $0x21] sm:$0xff]
      %v1104 = vld [vmem:[%s755 + $0x31] sm:$0xff]
      %v1105 = vld [vmem:[%s755 + $0x41] sm:$0xff]
      %v1106 = vld [vmem:[%s755 + $0x51] sm:$0xff]
      %v1107 = vld [vmem:[%s755 + $0x61] sm:$0xff]
      %v1108 = vld [vmem:[%s755 + $0x71] sm:$0xff]
      %v1109 = vmax.f32 %v1101, 0.0
      %v1110 = vmax.f32 %v1102, 0.0
      %v1111 = vmax.f32 %v1103, 0.0
      %v1112 = vmax.f32 %v1104, 0.0
      %v1113 = vmax.f32 %v1105, 0.0
      %v1114 = vmax.f32 %v1106, 0.0
      %v1115 = vmax.f32 %v1107, 0.0
      %v1116 = vmax.f32 %v1108, 0.0
      %s1117 = scalar_lea.vmem %s1, 20
      %v1118 = vld [vmem:[%s1117] sm:$0xf]
      %v1120 = vsel %vm307, %v1109, 0
      %v1123 = vsel %vm307, %v1110, 0
      %v1126 = vsel %vm307, %v1111, 0
      %v1129 = vsel %vm307, %v1112, 0
      %v1132 = vsel %vm307, %v1113, 0
      %v1135 = vsel %vm307, %v1114, 0
      %v1138 = vsel %vm307, %v1115, 0
      %v1141 = vsel %vm307, %v1116, 0
      %v1144 = vsel %vm332, %v1118, 0
      %1146 = vmatpush.msra.mxu0 0.0
      %1147 = vmatpush.msra.mxu0 0.0
      %1148 = vmatpush.msra.mxu0 0.0
      %1149 = vmatpush.msra.mxu0 0.0
      %1150 = vmatpush.msra.mxu0 0.0
      %1151 = vmatpush.msra.mxu0 0.0
      %1152 = vmatpush.msra.mxu0 0.0
      %1153 = vmatpush.msra.mxu0 0.0
      %1154 = vmatpush.msra.mxu0 0.0
      %1155 = vmatpush.msra.mxu0 0.0
      %1156 = vmatpush.msra.mxu0 0.0
      %1157 = vmatpush.msra.mxu0 0.0
      %1158 = vmatpush.msra.mxu0 0.0
      %1159 = vmatpush.msra.mxu0 0.0
      %1160 = vmatpush.msra.mxu0 0.0
      %1161 = vmatpush.msra.mxu0 %v1144
      %1162 = vmatmul.f32.gmra.mxu0 %v1120
      %v1163 = vpop.f32.mrf.mxu0
      %v1164 = vadd.f32 0.0, %v1163
      %1165 = vmatmul.f32.gmra.mxu0 %v1123
      %v1166 = vpop.f32.mrf.mxu0
      %v1167 = vadd.f32 0.0, %v1166
      %1168 = vmatmul.f32.gmra.mxu0 %v1126
      %v1169 = vpop.f32.mrf.mxu0
      %v1170 = vadd.f32 0.0, %v1169
      %1171 = vmatmul.f32.gmra.mxu0 %v1129
      %v1172 = vpop.f32.mrf.mxu0
      %v1173 = vadd.f32 0.0, %v1172
      %1174 = vmatmul.f32.gmra.mxu0 %v1132
      %v1175 = vpop.f32.mrf.mxu0
      %v1176 = vadd.f32 0.0, %v1175
      %1177 = vmatmul.f32.gmra.mxu0 %v1135
      %v1178 = vpop.f32.mrf.mxu0
      %v1179 = vadd.f32 0.0, %v1178
      %1180 = vmatmul.f32.gmra.mxu0 %v1138
      %v1181 = vpop.f32.mrf.mxu0
      %v1182 = vadd.f32 0.0, %v1181
      %1183 = vmatmul.f32.gmra.mxu0 %v1141
      %v1184 = vpop.f32.mrf.mxu0
      %v1185 = vadd.f32 0.0, %v1184
      %1186 = vdwg.mxu0
      %v1187 = vadd.f32 %v1015, %v1164
      %v1188 = vadd.f32 %v1016, %v1167
      %v1189 = vadd.f32 %v1017, %v1170
      %v1190 = vadd.f32 %v1018, %v1173
      %v1191 = vadd.f32 %v1019, %v1176
      %v1192 = vadd.f32 %v1020, %v1179
      %v1193 = vadd.f32 %v1021, %v1182
      %v1194 = vadd.f32 %v1022, %v1185
      %s1195 = scalar_lea.vmem %s3, 20
      %v1196 = vld [vmem:[%s1195] sm:$0xf]
      %v1198 = vsel %vm307, %v1101, 0
      %v1201 = vsel %vm307, %v1102, 0
      %v1204 = vsel %vm307, %v1103, 0
      %v1207 = vsel %vm307, %v1104, 0
      %v1210 = vsel %vm307, %v1105, 0
      %v1213 = vsel %vm307, %v1106, 0
      %v1216 = vsel %vm307, %v1107, 0
      %v1219 = vsel %vm307, %v1108, 0
      %v1222 = vsel %vm332, %v1196, 0
      %1224 = vmatpush.msra.mxu0 0.0
      %1225 = vmatpush.msra.mxu0 0.0
      %1226 = vmatpush.msra.mxu0 0.0
      %1227 = vmatpush.msra.mxu0 0.0
      %1228 = vmatpush.msra.mxu0 0.0
      %1229 = vmatpush.msra.mxu0 0.0
      %1230 = vmatpush.msra.mxu0 0.0
      %1231 = vmatpush.msra.mxu0 0.0
      %1232 = vmatpush.msra.mxu0 0.0
      %1233 = vmatpush.msra.mxu0 0.0
      %1234 = vmatpush.msra.mxu0 0.0
      %1235 = vmatpush.msra.mxu0 0.0
      %1236 = vmatpush.msra.mxu0 0.0
      %1237 = vmatpush.msra.mxu0 0.0
      %1238 = vmatpush.msra.mxu0 0.0
      %1239 = vmatpush.msra.mxu0 %v1222
      %1240 = vmatmul.f32.gmra.mxu0 %v1198
      %v1241 = vpop.f32.mrf.mxu0
      %v1242 = vadd.f32 0.0, %v1241
      %1243 = vmatmul.f32.gmra.mxu0 %v1201
      %v1244 = vpop.f32.mrf.mxu0
      %v1245 = vadd.f32 0.0, %v1244
      %1246 = vmatmul.f32.gmra.mxu0 %v1204
      %v1247 = vpop.f32.mrf.mxu0
      %v1248 = vadd.f32 0.0, %v1247
      %1249 = vmatmul.f32.gmra.mxu0 %v1207
      %v1250 = vpop.f32.mrf.mxu0
      %v1251 = vadd.f32 0.0, %v1250
      %1252 = vmatmul.f32.gmra.mxu0 %v1210
      %v1253 = vpop.f32.mrf.mxu0
      %v1254 = vadd.f32 0.0, %v1253
      %1255 = vmatmul.f32.gmra.mxu0 %v1213
      %v1256 = vpop.f32.mrf.mxu0
      %v1257 = vadd.f32 0.0, %v1256
      %1258 = vmatmul.f32.gmra.mxu0 %v1216
      %v1259 = vpop.f32.mrf.mxu0
      %v1260 = vadd.f32 0.0, %v1259
      %1261 = vmatmul.f32.gmra.mxu0 %v1219
      %v1262 = vpop.f32.mrf.mxu0
      %v1263 = vadd.f32 0.0, %v1262
      %1264 = vdwg.mxu0
      %v1265 = vadd.f32 %v1093, %v1242
      %v1266 = vadd.f32 %v1094, %v1245
      %v1267 = vadd.f32 %v1095, %v1248
      %v1268 = vadd.f32 %v1096, %v1251
      %v1269 = vadd.f32 %v1097, %v1254
      %v1270 = vadd.f32 %v1098, %v1257
      %v1271 = vadd.f32 %v1099, %v1260
      %v1272 = vadd.f32 %v1100, %v1263
      %s1273 = scalar_lea.vmem %s258, 16
      %v1274 = vld [vmem:[%s1273] sm:$0xff]
      %v1275 = vld [vmem:[%s1273 + $0x10] sm:$0xff]
      %v1276 = vld [vmem:[%s1273 + $0x20] sm:$0xff]
      %v1277 = vld [vmem:[%s1273 + $0x30] sm:$0xff]
      %v1278 = vld [vmem:[%s1273 + $0x40] sm:$0xff]
      %v1279 = vld [vmem:[%s1273 + $0x50] sm:$0xff]
      %v1280 = vld [vmem:[%s1273 + $0x60] sm:$0xff]
      %v1281 = vld [vmem:[%s1273 + $0x70] sm:$0xff]
      %v1282 = vmax.f32 %v1274, 0.0
      %v1283 = vmax.f32 %v1275, 0.0
      %v1284 = vmax.f32 %v1276, 0.0
      %v1285 = vmax.f32 %v1277, 0.0
      %v1286 = vmax.f32 %v1278, 0.0
      %v1287 = vmax.f32 %v1279, 0.0
      %v1288 = vmax.f32 %v1280, 0.0
      %v1289 = vmax.f32 %v1281, 0.0
      %s1290 = scalar_lea.vmem %s1, 24
      %v1291 = vld [vmem:[%s1290] sm:$0xf]
      %v1293 = vsel %vm307, %v1282, 0
      %v1296 = vsel %vm307, %v1283, 0
      %v1299 = vsel %vm307, %v1284, 0
      %v1302 = vsel %vm307, %v1285, 0
      %v1305 = vsel %vm307, %v1286, 0
      %v1308 = vsel %vm307, %v1287, 0
      %v1311 = vsel %vm307, %v1288, 0
      %v1314 = vsel %vm307, %v1289, 0
      %v1317 = vsel %vm332, %v1291, 0
      %1319 = vmatpush.msra.mxu0 0.0
      %1320 = vmatpush.msra.mxu0 0.0
      %1321 = vmatpush.msra.mxu0 0.0
      %1322 = vmatpush.msra.mxu0 0.0
      %1323 = vmatpush.msra.mxu0 0.0
      %1324 = vmatpush.msra.mxu0 0.0
      %1325 = vmatpush.msra.mxu0 0.0
      %1326 = vmatpush.msra.mxu0 0.0
      %1327 = vmatpush.msra.mxu0 0.0
      %1328 = vmatpush.msra.mxu0 0.0
      %1329 = vmatpush.msra.mxu0 0.0
      %1330 = vmatpush.msra.mxu0 0.0
      %1331 = vmatpush.msra.mxu0 0.0
      %1332 = vmatpush.msra.mxu0 0.0
      %1333 = vmatpush.msra.mxu0 0.0
      %1334 = vmatpush.msra.mxu0 %v1317
      %1335 = vmatmul.f32.gmra.mxu0 %v1293
      %v1336 = vpop.f32.mrf.mxu0
      %v1337 = vadd.f32 0.0, %v1336
      %1338 = vmatmul.f32.gmra.mxu0 %v1296
      %v1339 = vpop.f32.mrf.mxu0
      %v1340 = vadd.f32 0.0, %v1339
      %1341 = vmatmul.f32.gmra.mxu0 %v1299
      %v1342 = vpop.f32.mrf.mxu0
      %v1343 = vadd.f32 0.0, %v1342
      %1344 = vmatmul.f32.gmra.mxu0 %v1302
      %v1345 = vpop.f32.mrf.mxu0
      %v1346 = vadd.f32 0.0, %v1345
      %1347 = vmatmul.f32.gmra.mxu0 %v1305
      %v1348 = vpop.f32.mrf.mxu0
      %v1349 = vadd.f32 0.0, %v1348
      %1350 = vmatmul.f32.gmra.mxu0 %v1308
      %v1351 = vpop.f32.mrf.mxu0
      %v1352 = vadd.f32 0.0, %v1351
      %1353 = vmatmul.f32.gmra.mxu0 %v1311
      %v1354 = vpop.f32.mrf.mxu0
      %v1355 = vadd.f32 0.0, %v1354
      %1356 = vmatmul.f32.gmra.mxu0 %v1314
      %v1357 = vpop.f32.mrf.mxu0
      %v1358 = vadd.f32 0.0, %v1357
      %1359 = vdwg.mxu0
      %v1360 = vadd.f32 %v1187, %v1337
      %v1361 = vadd.f32 %v1188, %v1340
      %v1362 = vadd.f32 %v1189, %v1343
      %v1363 = vadd.f32 %v1190, %v1346
      %v1364 = vadd.f32 %v1191, %v1349
      %v1365 = vadd.f32 %v1192, %v1352
      %v1366 = vadd.f32 %v1193, %v1355
      %v1367 = vadd.f32 %v1194, %v1358
      %s1368 = scalar_lea.vmem %s3, 24
      %v1369 = vld [vmem:[%s1368] sm:$0xf]
      %v1371 = vsel %vm307, %v1274, 0
      %v1374 = vsel %vm307, %v1275, 0
      %v1377 = vsel %vm307, %v1276, 0
      %v1380 = vsel %vm307, %v1277, 0
      %v1383 = vsel %vm307, %v1278, 0
      %v1386 = vsel %vm307, %v1279, 0
      %v1389 = vsel %vm307, %v1280, 0
      %v1392 = vsel %vm307, %v1281, 0
      %v1395 = vsel %vm332, %v1369, 0
      %1397 = vmatpush.msra.mxu0 0.0
      %1398 = vmatpush.msra.mxu0 0.0
      %1399 = vmatpush.msra.mxu0 0.0
      %1400 = vmatpush.msra.mxu0 0.0
      %1401 = vmatpush.msra.mxu0 0.0
      %1402 = vmatpush.msra.mxu0 0.0
      %1403 = vmatpush.msra.mxu0 0.0
      %1404 = vmatpush.msra.mxu0 0.0
      %1405 = vmatpush.msra.mxu0 0.0
      %1406 = vmatpush.msra.mxu0 0.0
      %1407 = vmatpush.msra.mxu0 0.0
      %1408 = vmatpush.msra.mxu0 0.0
      %1409 = vmatpush.msra.mxu0 0.0
      %1410 = vmatpush.msra.mxu0 0.0
      %1411 = vmatpush.msra.mxu0 0.0
      %1412 = vmatpush.msra.mxu0 %v1395
      %1413 = vmatmul.f32.gmra.mxu0 %v1371
      %v1414 = vpop.f32.mrf.mxu0
      %v1415 = vadd.f32 0.0, %v1414
      %1416 = vmatmul.f32.gmra.mxu0 %v1374
      %v1417 = vpop.f32.mrf.mxu0
      %v1418 = vadd.f32 0.0, %v1417
      %1419 = vmatmul.f32.gmra.mxu0 %v1377
      %v1420 = vpop.f32.mrf.mxu0
      %v1421 = vadd.f32 0.0, %v1420
      %1422 = vmatmul.f32.gmra.mxu0 %v1380
      %v1423 = vpop.f32.mrf.mxu0
      %v1424 = vadd.f32 0.0, %v1423
      %1425 = vmatmul.f32.gmra.mxu0 %v1383
      %v1426 = vpop.f32.mrf.mxu0
      %v1427 = vadd.f32 0.0, %v1426
      %1428 = vmatmul.f32.gmra.mxu0 %v1386
      %v1429 = vpop.f32.mrf.mxu0
      %v1430 = vadd.f32 0.0, %v1429
      %1431 = vmatmul.f32.gmra.mxu0 %v1389
      %v1432 = vpop.f32.mrf.mxu0
      %v1433 = vadd.f32 0.0, %v1432
      %1434 = vmatmul.f32.gmra.mxu0 %v1392
      %v1435 = vpop.f32.mrf.mxu0
      %v1436 = vadd.f32 0.0, %v1435
      %1437 = vdwg.mxu0
      %v1438 = vadd.f32 %v1265, %v1415
      %v1439 = vadd.f32 %v1266, %v1418
      %v1440 = vadd.f32 %v1267, %v1421
      %v1441 = vadd.f32 %v1268, %v1424
      %v1442 = vadd.f32 %v1269, %v1427
      %v1443 = vadd.f32 %v1270, %v1430
      %v1444 = vadd.f32 %v1271, %v1433
      %v1445 = vadd.f32 %v1272, %v1436
      %s1446 = scalar_lea.vmem %s258, 160
      %v1447 = vld [vmem:[%s1446] sm:$0xff]
      %v1448 = vld [vmem:[%s1446 + $0x10] sm:$0xff]
      %v1449 = vld [vmem:[%s1446 + $0x20] sm:$0xff]
      %v1450 = vld [vmem:[%s1446 + $0x30] sm:$0xff]
      %v1451 = vld [vmem:[%s1446 + $0x40] sm:$0xff]
      %v1452 = vld [vmem:[%s1446 + $0x50] sm:$0xff]
      %v1453 = vld [vmem:[%s1446 + $0x60] sm:$0xff]
      %v1454 = vld [vmem:[%s1446 + $0x70] sm:$0xff]
      %v1455 = vmax.f32 %v1447, 0.0
      %v1456 = vmax.f32 %v1448, 0.0
      %v1457 = vmax.f32 %v1449, 0.0
      %v1458 = vmax.f32 %v1450, 0.0
      %v1459 = vmax.f32 %v1451, 0.0
      %v1460 = vmax.f32 %v1452, 0.0
      %v1461 = vmax.f32 %v1453, 0.0
      %v1462 = vmax.f32 %v1454, 0.0
      %s1463 = scalar_lea.vmem %s1, 28
      %v1464 = vld [vmem:[%s1463] sm:$0xf]
      %v1466 = vsel %vm307, %v1455, 0
      %v1469 = vsel %vm307, %v1456, 0
      %v1472 = vsel %vm307, %v1457, 0
      %v1475 = vsel %vm307, %v1458, 0
      %v1478 = vsel %vm307, %v1459, 0
      %v1481 = vsel %vm307, %v1460, 0
      %v1484 = vsel %vm307, %v1461, 0
      %v1487 = vsel %vm307, %v1462, 0
      %v1490 = vsel %vm332, %v1464, 0
      %1492 = vmatpush.msra.mxu0 0.0
      %1493 = vmatpush.msra.mxu0 0.0
      %1494 = vmatpush.msra.mxu0 0.0
      %1495 = vmatpush.msra.mxu0 0.0
      %1496 = vmatpush.msra.mxu0 0.0
      %1497 = vmatpush.msra.mxu0 0.0
      %1498 = vmatpush.msra.mxu0 0.0
      %1499 = vmatpush.msra.mxu0 0.0
      %1500 = vmatpush.msra.mxu0 0.0
      %1501 = vmatpush.msra.mxu0 0.0
      %1502 = vmatpush.msra.mxu0 0.0
      %1503 = vmatpush.msra.mxu0 0.0
      %1504 = vmatpush.msra.mxu0 0.0
      %1505 = vmatpush.msra.mxu0 0.0
      %1506 = vmatpush.msra.mxu0 0.0
      %1507 = vmatpush.msra.mxu0 %v1490
      %1508 = vmatmul.f32.gmra.mxu0 %v1466
      %v1509 = vpop.f32.mrf.mxu0
      %v1510 = vadd.f32 0.0, %v1509
      %1511 = vmatmul.f32.gmra.mxu0 %v1469
      %v1512 = vpop.f32.mrf.mxu0
      %v1513 = vadd.f32 0.0, %v1512
      %1514 = vmatmul.f32.gmra.mxu0 %v1472
      %v1515 = vpop.f32.mrf.mxu0
      %v1516 = vadd.f32 0.0, %v1515
      %1517 = vmatmul.f32.gmra.mxu0 %v1475
      %v1518 = vpop.f32.mrf.mxu0
      %v1519 = vadd.f32 0.0, %v1518
      %1520 = vmatmul.f32.gmra.mxu0 %v1478
      %v1521 = vpop.f32.mrf.mxu0
      %v1522 = vadd.f32 0.0, %v1521
      %1523 = vmatmul.f32.gmra.mxu0 %v1481
      %v1524 = vpop.f32.mrf.mxu0
      %v1525 = vadd.f32 0.0, %v1524
      %1526 = vmatmul.f32.gmra.mxu0 %v1484
      %v1527 = vpop.f32.mrf.mxu0
      %v1528 = vadd.f32 0.0, %v1527
      %1529 = vmatmul.f32.gmra.mxu0 %v1487
      %v1530 = vpop.f32.mrf.mxu0
      %v1531 = vadd.f32 0.0, %v1530
      %1532 = vdwg.mxu0
      %v1533 = vadd.f32 %v1360, %v1510
      %v1534 = vadd.f32 %v1361, %v1513
      %v1535 = vadd.f32 %v1362, %v1516
      %v1536 = vadd.f32 %v1363, %v1519
      %v1537 = vadd.f32 %v1364, %v1522
      %v1538 = vadd.f32 %v1365, %v1525
      %v1539 = vadd.f32 %v1366, %v1528
      %v1540 = vadd.f32 %v1367, %v1531
      %s1541 = scalar_lea.vmem %s3, 28
      %v1542 = vld [vmem:[%s1541] sm:$0xf]
      %v1544 = vsel %vm307, %v1447, 0
      %v1547 = vsel %vm307, %v1448, 0
      %v1550 = vsel %vm307, %v1449, 0
      %v1553 = vsel %vm307, %v1450, 0
      %v1556 = vsel %vm307, %v1451, 0
      %v1559 = vsel %vm307, %v1452, 0
      %v1562 = vsel %vm307, %v1453, 0
      %v1565 = vsel %vm307, %v1454, 0
      %v1568 = vsel %vm332, %v1542, 0
      %1570 = vmatpush.msra.mxu0 0.0
      %1571 = vmatpush.msra.mxu0 0.0
      %1572 = vmatpush.msra.mxu0 0.0
      %1573 = vmatpush.msra.mxu0 0.0
      %1574 = vmatpush.msra.mxu0 0.0
      %1575 = vmatpush.msra.mxu0 0.0
      %1576 = vmatpush.msra.mxu0 0.0
      %1577 = vmatpush.msra.mxu0 0.0
      %1578 = vmatpush.msra.mxu0 0.0
      %1579 = vmatpush.msra.mxu0 0.0
      %1580 = vmatpush.msra.mxu0 0.0
      %1581 = vmatpush.msra.mxu0 0.0
      %1582 = vmatpush.msra.mxu0 0.0
      %1583 = vmatpush.msra.mxu0 0.0
      %1584 = vmatpush.msra.mxu0 0.0
      %1585 = vmatpush.msra.mxu0 %v1568
      %1586 = vmatmul.f32.gmra.mxu0 %v1544
      %v1587 = vpop.f32.mrf.mxu0
      %v1588 = vadd.f32 0.0, %v1587
      %1589 = vmatmul.f32.gmra.mxu0 %v1547
      %v1590 = vpop.f32.mrf.mxu0
      %v1591 = vadd.f32 0.0, %v1590
      %1592 = vmatmul.f32.gmra.mxu0 %v1550
      %v1593 = vpop.f32.mrf.mxu0
      %v1594 = vadd.f32 0.0, %v1593
      %1595 = vmatmul.f32.gmra.mxu0 %v1553
      %v1596 = vpop.f32.mrf.mxu0
      %v1597 = vadd.f32 0.0, %v1596
      %1598 = vmatmul.f32.gmra.mxu0 %v1556
      %v1599 = vpop.f32.mrf.mxu0
      %v1600 = vadd.f32 0.0, %v1599
      %1601 = vmatmul.f32.gmra.mxu0 %v1559
      %v1602 = vpop.f32.mrf.mxu0
      %v1603 = vadd.f32 0.0, %v1602
      %1604 = vmatmul.f32.gmra.mxu0 %v1562
      %v1605 = vpop.f32.mrf.mxu0
      %v1606 = vadd.f32 0.0, %v1605
      %1607 = vmatmul.f32.gmra.mxu0 %v1565
      %v1608 = vpop.f32.mrf.mxu0
      %v1609 = vadd.f32 0.0, %v1608
      %1610 = vdwg.mxu0
      %v1611 = vadd.f32 %v1438, %v1588
      %v1612 = vadd.f32 %v1439, %v1591
      %v1613 = vadd.f32 %v1440, %v1594
      %v1614 = vadd.f32 %v1441, %v1597
      %v1615 = vadd.f32 %v1442, %v1600
      %v1616 = vadd.f32 %v1443, %v1603
      %v1617 = vadd.f32 %v1444, %v1606
      %v1618 = vadd.f32 %v1445, %v1609
      %v1619 = vld [vmem:[%s1273 + $0x1] sm:$0xff]
      %v1620 = vld [vmem:[%s1273 + $0x11] sm:$0xff]
      %v1621 = vld [vmem:[%s1273 + $0x21] sm:$0xff]
      %v1622 = vld [vmem:[%s1273 + $0x31] sm:$0xff]
      %v1623 = vld [vmem:[%s1273 + $0x41] sm:$0xff]
      %v1624 = vld [vmem:[%s1273 + $0x51] sm:$0xff]
      %v1625 = vld [vmem:[%s1273 + $0x61] sm:$0xff]
      %v1626 = vld [vmem:[%s1273 + $0x71] sm:$0xff]
      %v1627 = vmax.f32 %v1619, 0.0
      %v1628 = vmax.f32 %v1620, 0.0
      %v1629 = vmax.f32 %v1621, 0.0
      %v1630 = vmax.f32 %v1622, 0.0
      %v1631 = vmax.f32 %v1623, 0.0
      %v1632 = vmax.f32 %v1624, 0.0
      %v1633 = vmax.f32 %v1625, 0.0
      %v1634 = vmax.f32 %v1626, 0.0
      %s1635 = scalar_lea.vmem %s1, 32
      %v1636 = vld [vmem:[%s1635] sm:$0xf]
      %v1638 = vsel %vm307, %v1627, 0
      %v1641 = vsel %vm307, %v1628, 0
      %v1644 = vsel %vm307, %v1629, 0
      %v1647 = vsel %vm307, %v1630, 0
      %v1650 = vsel %vm307, %v1631, 0
      %v1653 = vsel %vm307, %v1632, 0
      %v1656 = vsel %vm307, %v1633, 0
      %v1659 = vsel %vm307, %v1634, 0
      %v1662 = vsel %vm332, %v1636, 0
      %1664 = vmatpush.msra.mxu0 0.0
      %1665 = vmatpush.msra.mxu0 0.0
      %1666 = vmatpush.msra.mxu0 0.0
      %1667 = vmatpush.msra.mxu0 0.0
      %1668 = vmatpush.msra.mxu0 0.0
      %1669 = vmatpush.msra.mxu0 0.0
      %1670 = vmatpush.msra.mxu0 0.0
      %1671 = vmatpush.msra.mxu0 0.0
      %1672 = vmatpush.msra.mxu0 0.0
      %1673 = vmatpush.msra.mxu0 0.0
      %1674 = vmatpush.msra.mxu0 0.0
      %1675 = vmatpush.msra.mxu0 0.0
      %1676 = vmatpush.msra.mxu0 0.0
      %1677 = vmatpush.msra.mxu0 0.0
      %1678 = vmatpush.msra.mxu0 0.0
      %1679 = vmatpush.msra.mxu0 %v1662
      %1680 = vmatmul.f32.gmra.mxu0 %v1638
      %v1681 = vpop.f32.mrf.mxu0
      %v1682 = vadd.f32 0.0, %v1681
      %1683 = vmatmul.f32.gmra.mxu0 %v1641
      %v1684 = vpop.f32.mrf.mxu0
      %v1685 = vadd.f32 0.0, %v1684
      %1686 = vmatmul.f32.gmra.mxu0 %v1644
      %v1687 = vpop.f32.mrf.mxu0
      %v1688 = vadd.f32 0.0, %v1687
      %1689 = vmatmul.f32.gmra.mxu0 %v1647
      %v1690 = vpop.f32.mrf.mxu0
      %v1691 = vadd.f32 0.0, %v1690
      %1692 = vmatmul.f32.gmra.mxu0 %v1650
      %v1693 = vpop.f32.mrf.mxu0
      %v1694 = vadd.f32 0.0, %v1693
      %1695 = vmatmul.f32.gmra.mxu0 %v1653
      %v1696 = vpop.f32.mrf.mxu0
      %v1697 = vadd.f32 0.0, %v1696
      %1698 = vmatmul.f32.gmra.mxu0 %v1656
      %v1699 = vpop.f32.mrf.mxu0
      %v1700 = vadd.f32 0.0, %v1699
      %1701 = vmatmul.f32.gmra.mxu0 %v1659
      %v1702 = vpop.f32.mrf.mxu0
      %v1703 = vadd.f32 0.0, %v1702
      %1704 = vdwg.mxu0
      %v1705 = vadd.f32 %v1533, %v1682
      %v1706 = vadd.f32 %v1534, %v1685
      %v1707 = vadd.f32 %v1535, %v1688
      %v1708 = vadd.f32 %v1536, %v1691
      %v1709 = vadd.f32 %v1537, %v1694
      %v1710 = vadd.f32 %v1538, %v1697
      %v1711 = vadd.f32 %v1539, %v1700
      %v1712 = vadd.f32 %v1540, %v1703
      %s1713 = scalar_lea.vmem %s3, 32
      %v1714 = vld [vmem:[%s1713] sm:$0xf]
      %v1716 = vsel %vm307, %v1619, 0
      %v1719 = vsel %vm307, %v1620, 0
      %v1722 = vsel %vm307, %v1621, 0
      %v1725 = vsel %vm307, %v1622, 0
      %v1728 = vsel %vm307, %v1623, 0
      %v1731 = vsel %vm307, %v1624, 0
      %v1734 = vsel %vm307, %v1625, 0
      %v1737 = vsel %vm307, %v1626, 0
      %v1740 = vsel %vm332, %v1714, 0
      %1742 = vmatpush.msra.mxu0 0.0
      %1743 = vmatpush.msra.mxu0 0.0
      %1744 = vmatpush.msra.mxu0 0.0
      %1745 = vmatpush.msra.mxu0 0.0
      %1746 = vmatpush.msra.mxu0 0.0
      %1747 = vmatpush.msra.mxu0 0.0
      %1748 = vmatpush.msra.mxu0 0.0
      %1749 = vmatpush.msra.mxu0 0.0
      %1750 = vmatpush.msra.mxu0 0.0
      %1751 = vmatpush.msra.mxu0 0.0
      %1752 = vmatpush.msra.mxu0 0.0
      %1753 = vmatpush.msra.mxu0 0.0
      %1754 = vmatpush.msra.mxu0 0.0
      %1755 = vmatpush.msra.mxu0 0.0
      %1756 = vmatpush.msra.mxu0 0.0
      %1757 = vmatpush.msra.mxu0 %v1740
      %1758 = vmatmul.f32.gmra.mxu0 %v1716
      %v1759 = vpop.f32.mrf.mxu0
      %v1760 = vadd.f32 0.0, %v1759
      %1761 = vmatmul.f32.gmra.mxu0 %v1719
      %v1762 = vpop.f32.mrf.mxu0
      %v1763 = vadd.f32 0.0, %v1762
      %1764 = vmatmul.f32.gmra.mxu0 %v1722
      %v1765 = vpop.f32.mrf.mxu0
      %v1766 = vadd.f32 0.0, %v1765
      %1767 = vmatmul.f32.gmra.mxu0 %v1725
      %v1768 = vpop.f32.mrf.mxu0
      %v1769 = vadd.f32 0.0, %v1768
      %1770 = vmatmul.f32.gmra.mxu0 %v1728
      %v1771 = vpop.f32.mrf.mxu0
      %v1772 = vadd.f32 0.0, %v1771
      %1773 = vmatmul.f32.gmra.mxu0 %v1731
      %v1774 = vpop.f32.mrf.mxu0
      %v1775 = vadd.f32 0.0, %v1774
      %1776 = vmatmul.f32.gmra.mxu0 %v1734
      %v1777 = vpop.f32.mrf.mxu0
      %v1778 = vadd.f32 0.0, %v1777
      %1779 = vmatmul.f32.gmra.mxu0 %v1737
      %v1780 = vpop.f32.mrf.mxu0
      %v1781 = vadd.f32 0.0, %v1780
      %1782 = vdwg.mxu0
      %v1783 = vadd.f32 %v1611, %v1760
      %v1784 = vadd.f32 %v1612, %v1763
      %v1785 = vadd.f32 %v1613, %v1766
      %v1786 = vadd.f32 %v1614, %v1769
      %v1787 = vadd.f32 %v1615, %v1772
      %v1788 = vadd.f32 %v1616, %v1775
      %v1789 = vadd.f32 %v1617, %v1778
      %v1790 = vadd.f32 %v1618, %v1781
      %v1791 = vld [vmem:[%s2] sm:$0x1]
      %v1793 = vperm.slane %v1791, 0
      %v1795 = vadd.f32 %v1705, %v1793
      %v1796 = vadd.f32 %v1706, %v1793
      %v1797 = vadd.f32 %v1707, %v1793
      %v1798 = vadd.f32 %v1708, %v1793
      %v1799 = vadd.f32 %v1709, %v1793
      %v1800 = vadd.f32 %v1710, %v1793
      %v1801 = vadd.f32 %v1711, %v1793
      %v1802 = vadd.f32 %v1712, %v1793
      %1803 = vst.msk [vmem:[%s264] sm:$0xff] %vm307, %v1795
      %1804 = vst.msk [vmem:[%s264 + $0x8] sm:$0xff] %vm307, %v1796
      %1805 = vst.msk [vmem:[%s264 + $0x10] sm:$0xff] %vm307, %v1797
      %1806 = vst.msk [vmem:[%s264 + $0x18] sm:$0xff] %vm307, %v1798
      %1807 = vst.msk [vmem:[%s264 + $0x20] sm:$0xff] %vm307, %v1799
      %1808 = vst.msk [vmem:[%s264 + $0x28] sm:$0xff] %vm307, %v1800
      %1809 = vst.msk [vmem:[%s264 + $0x30] sm:$0xff] %vm307, %v1801
      %1810 = vst.msk [vmem:[%s264 + $0x38] sm:$0xff] %vm307, %v1802
      %v1811 = vld [vmem:[%s4] sm:$0x1]
      %v1813 = vperm.slane %v1811, 0
      %v1815 = vadd.f32 %v1783, %v1813
      %v1816 = vadd.f32 %v1784, %v1813
      %v1817 = vadd.f32 %v1785, %v1813
      %v1818 = vadd.f32 %v1786, %v1813
      %v1819 = vadd.f32 %v1787, %v1813
      %v1820 = vadd.f32 %v1788, %v1813
      %v1821 = vadd.f32 %v1789, %v1813
      %v1822 = vadd.f32 %v1790, %v1813
      %1823 = vst.msk [vmem:[%s269] sm:$0xff] %vm307, %v1815
      %1824 = vst.msk [vmem:[%s269 + $0x8] sm:$0xff] %vm307, %v1816
      %1825 = vst.msk [vmem:[%s269 + $0x10] sm:$0xff] %vm307, %v1817
      %1826 = vst.msk [vmem:[%s269 + $0x18] sm:$0xff] %vm307, %v1818
      %1827 = vst.msk [vmem:[%s269 + $0x20] sm:$0xff] %vm307, %v1819
      %1828 = vst.msk [vmem:[%s269 + $0x28] sm:$0xff] %vm307, %v1820
      %1829 = vst.msk [vmem:[%s269 + $0x30] sm:$0xff] %vm307, %v1821
      %1830 = vst.msk [vmem:[%s269 + $0x38] sm:$0xff] %vm307, %v1822
      %p1831 = scmp.lt.s32.totalorder %s18, 1
      %s1832 = scalar_select %p1831, %s18, 1
      %s1833 = smul.addr %s1832, 8
      %s1834 = smul.addr %s1833, 8
      %s1835 = scalar_lea.vmem %s5, %s1834
      %p1836 = scmp.lt.s32.totalorder %s18, 1
      %s1837 = scalar_select %p1836, %s18, 1
      %s1838 = smul.addr %s1837, 8
      %s1839 = smul.addr %s1838, 8
      %s1840 = scalar_lea.vmem %s6, %s1839
      // Predicated region
      $region41: #{res_block_discriminator_forward.2} parent=39 // pred_check
        %p1841 = pneg %p146
      $region42: #{res_block_discriminator_forward.2} parent=39 // pred_check_branch
        %1843 = sbr.rel (%p1841) target = $region44
      $region43: #{res_block_discriminator_forward.2} parent=39 // pred_region
        _
      $region44: #{res_block_discriminator_forward.2} parent=39 // pred_fallthru
        _
      // Predicated region
      $region45: #{res_block_discriminator_forward.2} parent=39 // pred_check
        %p1844 = pneg %p172
      $region46: #{res_block_discriminator_forward.2} parent=39 // pred_check_branch
        %1846 = sbr.rel (%p1844) target = $region48
      $region47: #{res_block_discriminator_forward.2} parent=39 // pred_region
        _
      $region48: #{res_block_discriminator_forward.2} parent=39 // pred_fallthru
        _
    $region40: #{res_block_discriminator_forward.2} parent=5 // pred_fallthru
      _
    %p1847 = scmp.le.s32.totalorder 2, %s13
    // Predicated region
    $region49: #{res_block_discriminator_forward.2} parent=5 // pred_check
      %p1848 = pneg %p1847
    $region50: #{res_block_discriminator_forward.2} parent=5 // pred_check_branch
      %1850 = sbr.rel (%p1848) target = $region52
    $region51: #{res_block_discriminator_forward.2} parent=5 // pred_region
      %s1851 = ssub.s32 %s13, 2
      // Predicated region
      $region53: #{res_block_discriminator_forward.2} parent=51 // pred_check
        %p1852 = pneg %p152
      $region54: #{res_block_discriminator_forward.2} parent=51 // pred_check_branch
        %1854 = sbr.rel (%p1852) target = $region56
      $region55: #{res_block_discriminator_forward.2} parent=51 // pred_region
        %p1855 = scmp.lt.s32.totalorder %s19, 1
        %s1856 = scalar_select %p1855, %s19, 1
        %s1857 = smul.addr %s1856, 8
        %s1858 = smul.addr %s1857, 8
        %s1859 = scalar_lea.vmem %s5, %s1858
      $region56: #{res_block_discriminator_forward.2} parent=51 // pred_fallthru
        _
      // Predicated region
      $region57: #{res_block_discriminator_forward.2} parent=51 // pred_check
        %p1860 = pneg %p178
      $region58: #{res_block_discriminator_forward.2} parent=51 // pred_check_branch
        %1862 = sbr.rel (%p1860) target = $region60
      $region59: #{res_block_discriminator_forward.2} parent=51 // pred_region
        %p1863 = scmp.lt.s32.totalorder %s19, 1
        %s1864 = scalar_select %p1863, %s19, 1
        %s1865 = smul.addr %s1864, 8
        %s1866 = smul.addr %s1865, 8
        %s1867 = scalar_lea.vmem %s6, %s1866
      $region60: #{res_block_discriminator_forward.2} parent=51 // pred_fallthru
        _
    $region52: #{res_block_discriminator_forward.2} parent=5 // pred_fallthru
      _
  $region6: #{res_block_discriminator_forward.2} parent=0 // loop_footer
    %s17 = sadd.s32 1, %s13
  $region7: #{res_block_discriminator_forward.2} parent=0 // loop_footer_branch
    %12 = sbr.rel target = $region3
  $region8: #{res_block_discriminator_forward.2} parent=0 // loop_exit
    _

</llo_original>
